<compile_context>
chip_gen: v7x
topology: tpu7x:2x2x1
jax: 0.10.0
libtpu: 0.0.40
codegen_flags: <defaults>
</compile_context>

<pallas_src>
import jax
import jax.numpy as jnp
from jax import lax
from jax.experimental import pallas as pl
from jax.experimental.pallas import tpu as pltpu


# ----------------------------------------------------------------------------- kernels

def conv_ln_relu_kernel(p_ref, w_ref, b_ref, g_ref, be_ref, o_ref):
    # S samples per grid step.
    #   p_ref : (S, P, K) bf16  im2col patches, feature order (kh, kw, in_c)
    #   w_ref : (K, C)    bf16  conv weight rows in matching order
    #   b_ref : (1, C)    f32
    #   g_ref, be_ref : (P, C) f32  LayerNorm affine in NHWC flatten order
    #   o_ref : (S, P, C) bf16
    w = w_ref[...]
    b = b_ref[...]
    g = g_ref[...]
    be = be_ref[...]
    P, C = g.shape
    inv_n = 1.0 / (P * C)
    S = p_ref.shape[0]
    for s in range(S):                       # static unroll; per-sample LayerNorm([C,H,W])
        y = jnp.dot(p_ref[s], w, preferred_element_type=jnp.float32) + b
        mu = jnp.sum(y) * inv_n              # one-pass stats (biased var, eps=1e-5)
        ex2 = jnp.sum(y * y) * inv_n
        var = ex2 - mu * mu
        z = (y - mu) * lax.rsqrt(var + 1e-5) * g + be
        o_ref[s] = jnp.maximum(z, 0.0).astype(o_ref.dtype)


def fc_ln_gates_kernel(x_ref, w_ref, bw_ref, g_ref, bb_ref, wih_ref, bl_ref, gx_ref):
    # Fused Linear(3136,512) -> per-row LayerNorm(512) -> ReLU -> @ W_ih + (b_ih + b_hh).
    y = jnp.dot(x_ref[...], w_ref[...], preferred_element_type=jnp.float32) + bw_ref[...]
    n = y.shape[-1]
    mu = jnp.sum(y, axis=-1, keepdims=True) / n
    ex2 = jnp.sum(y * y, axis=-1, keepdims=True) / n
    var = ex2 - mu * mu
    z = (y - mu) * lax.rsqrt(var + 1e-5) * g_ref[...] + bb_ref[...]
    h = jnp.maximum(z, 0.0)
    wih = wih_ref[...]
    gx_ref[...] = (
        jnp.dot(h.astype(wih.dtype), wih, preferred_element_type=jnp.float32)
        + bl_ref[...]
    )


def lstm_q_kernel(gx_ref, d_ref, h0_ref, c0_ref, whh_ref, qw_ref, qb_ref,
                  q_ref, hN_ref, cN_ref):
    # grid=(T//Tc,), sequential. h/c carried in the resident hN/cN output blocks.
    #   gx_ref : (Tc, B, 4H) f32  precomputed x @ W_ih + (b_ih + b_hh)
    #   d_ref  : (Tc, B, 1)  f32  done flags
    #   h0/c0  : (B, H)      f32  initial state (consumed at block 0 only)
    #   whh    : (H, 4H)     bf16 resident recurrent weight
    #   qw     : (H, 128)    bf16 q head, columns zero-padded to a lane-dense 128
    #   qb     : (1, 128)    f32
    #   q_ref  : (Tc, B, 128) f32 padded per-step q values
    #   hN/cN  : (B, H)      f32 final state (accumulator blocks)
    @pl.when(pl.program_id(0) == 0)
    def _():
        hN_ref[...] = h0_ref[...]
        cN_ref[...] = c0_ref[...]

    whh = whh_ref[...]
    qw = qw_ref[...]
    qb = qb_ref[...]
    H = hN_ref.shape[-1]
    h = hN_ref[...]
    c = cN_ref[...]
    for t in range(gx_ref.shape[0]):         # static unroll over the time chunk
        mask = 1.0 - d_ref[t]                # (B, 1) -> reset state where done
        h = h * mask
        c = c * mask
        gates = gx_ref[t] + jnp.dot(h.astype(whh.dtype), whh,
                                    preferred_element_type=jnp.float32)
        i_g = jax.nn.sigmoid(gates[:, 0 * H:1 * H])   # PyTorch gate order: i, f, g, o
        f_g = jax.nn.sigmoid(gates[:, 1 * H:2 * H])
        g_g = jnp.tanh(gates[:, 2 * H:3 * H])
        o_g = jax.nn.sigmoid(gates[:, 3 * H:4 * H])
        c = f_g * c + i_g * g_g
        h = o_g * jnp.tanh(c)
        q_ref[t] = jnp.dot(h.astype(qw.dtype), qw,
                           preferred_element_type=jnp.float32) + qb
    hN_ref[...] = h
    cN_ref[...] = c


# ----------------------------------------------------------------------------- wrappers

def _divisor_block(n, target, align=1):
    """Largest b <= target with n % b == 0 and b % align == 0; falls back to n (full)."""
    b = min(target, n)
    while b >= align:
        if n % b == 0 and b % align == 0:
            return b
        b -= 1
    return n


def fused_conv_ln_relu(patches, w, b, gamma, beta, samples_per_step=16):
    # patches: (N, P, K) bf16 per-sample im2col; gamma/beta: (P, C) in NHWC flatten order.
    N, P, K = patches.shape
    C = w.shape[1]
    S = _divisor_block(N, samples_per_step)
    return pl.pallas_call(
        conv_ln_relu_kernel,
        out_shape=jax.ShapeDtypeStruct((N, P, C), jnp.bfloat16),
        grid=(N // S,),
        in_specs=[
            pl.BlockSpec((S, P, K), lambda i: (i, 0, 0)),
            pl.BlockSpec((K, C), lambda i: (0, 0)),
            pl.BlockSpec((1, C), lambda i: (0, 0)),
            pl.BlockSpec((P, C), lambda i: (0, 0)),
            pl.BlockSpec((P, C), lambda i: (0, 0)),
        ],
        out_specs=pl.BlockSpec((S, P, C), lambda i: (i, 0, 0)),
        compiler_params=pltpu.CompilerParams(dimension_semantics=("parallel",)),
    )(patches, w, b.reshape(1, C), gamma, beta)


def fused_fc_ln_gates(x, w, bw, gamma, beta, wih, bl, block_m=512):
    # x: (M, 3136) bf16; w: (3136, 512) bf16; wih: (512, 4*128) bf16. Returns gates_x f32.
    M, K = x.shape
    Nh = w.shape[1]
    G = wih.shape[1]
    bm = _divisor_block(M, block_m, align=8)
    return pl.pallas_call(
        fc_ln_gates_kernel,
        out_shape=jax.ShapeDtypeStruct((M, G), jnp.float32),
        grid=(M // bm,),
        in_specs=[
            pl.BlockSpec((bm, K), lambda i: (i, 0)),
            pl.BlockSpec((K, Nh), lambda i: (0, 0)),
            pl.BlockSpec((1, Nh), lambda i: (0, 0)),
            pl.BlockSpec((1, Nh), lambda i: (0, 0)),
            pl.BlockSpec((1, Nh), lambda i: (0, 0)),
            pl.BlockSpec((Nh, G), lambda i: (0, 0)),
            pl.BlockSpec((1, G), lambda i: (0, 0)),
        ],
        out_specs=pl.BlockSpec((bm, G), lambda i: (i, 0)),
        compiler_params=pltpu.CompilerParams(
            dimension_semantics=("parallel",),
            vmem_limit_bytes=48 * 1024 * 1024,   # resident bf16 fc/ih weights + 512-row tiles
        ),
    )(x, w, bw.reshape(1, Nh), gamma.reshape(1, Nh), beta.reshape(1, Nh),
      wih, bl.reshape(1, G))


def pallas_lstm_q(gates_x, done, h0, c0, whh, qw_pad, qb_pad, steps_per_block=8):
    # gates_x: (T, B, 4H) f32; done: (T, B, 1) f32; h0/c0: (B, H); whh: (H, 4H) bf16;
    # qw_pad: (H, 128) bf16; qb_pad: (128,) f32.
    # Returns (q_pad (T, B, 128) f32, h_final (B, H), c_final (B, H)).
    T, B, G = gates_x.shape
    H = whh.shape[0]
    Ap = qw_pad.shape[1]
    Tc = _divisor_block(T, steps_per_block)
    return pl.pallas_call(
        lstm_q_kernel,
        out_shape=(
            jax.ShapeDtypeStruct((T, B, Ap), jnp.float32),
            jax.ShapeDtypeStruct((B, H), jnp.float32),
            jax.ShapeDtypeStruct((B, H), jnp.float32),
        ),
        grid=(T // Tc,),
        in_specs=[
            pl.BlockSpec((Tc, B, G), lambda t: (t, 0, 0)),
            pl.BlockSpec((Tc, B, 1), lambda t: (t, 0, 0)),
            pl.BlockSpec((B, H), lambda t: (0, 0)),
            pl.BlockSpec((B, H), lambda t: (0, 0)),
            pl.BlockSpec((H, G), lambda t: (0, 0)),
            pl.BlockSpec((H, Ap), lambda t: (0, 0)),
            pl.BlockSpec((1, Ap), lambda t: (0, 0)),
        ],
        out_specs=(
            pl.BlockSpec((Tc, B, Ap), lambda t: (t, 0, 0)),
            pl.BlockSpec((B, H), lambda t: (0, 0)),
            pl.BlockSpec((B, H), lambda t: (0, 0)),
        ),
        compiler_params=pltpu.CompilerParams(dimension_semantics=("arbitrary",)),
    )(gates_x, done, h0, c0, whh, qw_pad, qb_pad.reshape(1, Ap))


# ----------------------------------------------------------------------------- glue

def im2col_nhwc(x, kh, kw, stride):
    """NHWC (N,H,W,C) -> (N, Ho*Wo, kh*kw*C) patches; feature order = (kh, kw, C)."""
    N, H, W, C = x.shape
    Ho = (H - kh) // stride + 1
    Wo = (W - kw) // stride + 1
    cols = []
    for i in range(kh):
        for j in range(kw):
            cols.append(x[:, i:i + stride * Ho:stride, j:j + stride * Wo:stride, :])
    patches = jnp.stack(cols, axis=3)                       # (N, Ho, Wo, kh*kw, C)
    patches = patches.reshape(N, Ho * Wo, kh * kw * C)      # idx = (i*kw + j)*C + c
    return patches, Ho, Wo


# ----------------------------------------------------------------------------- params

def _orth(key, shape, gain):
    return jax.nn.initializers.orthogonal(scale=gain)(key, shape, jnp.float32)


def _conv_weight(key, out_c, in_c, kh, kw, gain):
    """Orthogonal init in PyTorch (out_c, in_c*kh*kw) order, rows permuted to (kh, kw, in_c)
    order to match im2col_nhwc, stored transposed as (kh*kw*in_c, out_c)."""
    w = _orth(key, (out_c, in_c * kh * kw), gain)
    w = w.reshape(out_c, in_c, kh, kw).transpose(0, 2, 3, 1).reshape(out_c, kh * kw * in_c)
    return w.T


def init_params(key, n_actions):
    gain = float(jnp.sqrt(2.0))
    ks = jax.random.split(key, 8)
    p = {}
    # conv1: Conv2d(1, 32, 8, stride=4). The 1/255 input scaling is folded into the weight
    # (conv is linear; LayerNorm comes after, so the function is unchanged).
    p["c1_w"] = (_conv_weight(ks[0], 32, 1, 8, 8, gain) / 255.0).astype(jnp.bfloat16)
    p["c1_b"] = jnp.zeros((32,), jnp.float32)
    # conv LN affine stored in NHWC flatten order (P = Ho*Wo, C). A trained PyTorch (C,H,W)
    # gamma would map via gamma.permute(1,2,0).reshape(P, C).
    p["ln1_g"] = jnp.ones((20 * 20, 32), jnp.float32)
    p["ln1_b"] = jnp.zeros((20 * 20, 32), jnp.float32)
    # conv2: Conv2d(32, 64, 4, stride=2)
    p["c2_w"] = _conv_weight(ks[1], 64, 32, 4, 4, gain).astype(jnp.bfloat16)
    p["c2_b"] = jnp.zeros((64,), jnp.float32)
    p["ln2_g"] = jnp.ones((9 * 9, 64), jnp.float32)
    p["ln2_b"] = jnp.zeros((9 * 9, 64), jnp.float32)
    # conv3: Conv2d(64, 64, 3, stride=1)
    p["c3_w"] = _conv_weight(ks[2], 64, 64, 3, 3, gain).astype(jnp.bfloat16)
    p["c3_b"] = jnp.zeros((64,), jnp.float32)
    p["ln3_g"] = jnp.ones((7 * 7, 64), jnp.float32)
    p["ln3_b"] = jnp.zeros((7 * 7, 64), jnp.float32)
    # Linear(3136, 512): columns permuted from NCHW (c*49 + hw) to NHWC (hw*64 + c) order.
    fc = _orth(ks[3], (512, 3136), gain)
    fc = fc.reshape(512, 64, 7, 7).transpose(0, 2, 3, 1).reshape(512, 3136)
    p["fc_w"] = fc.T.astype(jnp.bfloat16)                      # (3136, 512)
    p["fc_b"] = jnp.zeros((512,), jnp.float32)
    p["ln4_g"] = jnp.ones((512,), jnp.float32)
    p["ln4_b"] = jnp.zeros((512,), jnp.float32)
    # LSTM(512, 128): orth gain 1, biases 0 (b_ih + b_hh folded into one vector).
    p["lstm_wih"] = _orth(ks[4], (4 * 128, 512), 1.0).T.astype(jnp.bfloat16)   # (512, 512)
    p["lstm_whh"] = _orth(ks[5], (4 * 128, 128), 1.0).T.astype(jnp.bfloat16)   # (128, 512)
    p["lstm_b"] = jnp.zeros((4 * 128,), jnp.float32)
    # q_func: Linear(128, n_actions), pre-padded at init to a lane-dense 128 columns.
    A_pad = max(128, ((n_actions + 127) // 128) * 128)
    qw = _orth(ks[6], (n_actions, 128), gain).T                # (128, n_actions)
    p["q_w"] = jnp.pad(qw, ((0, 0), (0, A_pad - n_actions))).astype(jnp.bfloat16)
    p["q_b"] = jnp.pad(jnp.zeros((n_actions,), jnp.float32), (0, A_pad - n_actions))
    return p


# ----------------------------------------------------------------------------- forward

def qnetwork_forward(params, x, lstm_state, done, n_actions):
    """x: (T*B, 1, 84, 84) float32 in [0,255], lstm_state: (h, c) each (1, B, 128),
    done: (T*B,) float32. Returns (q (T*B, n_actions), (h, c))."""
    N = x.shape[0]
    # NCHW -> NHWC (C=1: trivial). bf16 activations feed the MXU directly; the /255 scale
    # is folded into the conv1 weight.
    x = jnp.transpose(x, (0, 2, 3, 1)).astype(jnp.bfloat16)

    # conv stack: im2col + fused matmul/bias/LayerNorm/ReLU, S samples per grid step.
    p1, ho1, wo1 = im2col_nhwc(x, 8, 8, 4)                         # (N, 400, 64)
    a1 = fused_conv_ln_relu(p1, params["c1_w"], params["c1_b"],
                            params["ln1_g"], params["ln1_b"])       # (N, 400, 32) bf16
    a1 = a1.reshape(N, ho1, wo1, 32)

    p2, ho2, wo2 = im2col_nhwc(a1, 4, 4, 2)                        # (N, 81, 512)
    a2 = fused_conv_ln_relu(p2, params["c2_w"], params["c2_b"],
                            params["ln2_g"], params["ln2_b"])       # (N, 81, 64) bf16
    a2 = a2.reshape(N, ho2, wo2, 64)

    p3, ho3, wo3 = im2col_nhwc(a2, 3, 3, 1)                        # (N, 49, 576)
    a3 = fused_conv_ln_relu(p3, params["c3_w"], params["c3_b"],
                            params["ln3_g"], params["ln3_b"])       # (N, 49, 64) bf16

    flat = a3.reshape(N, 49 * 64)                                  # NHWC flatten (fc_w permuted)
    # Fused Linear + LayerNorm + ReLU + LSTM input projection -> per-step gate pre-acts.
    gates_x = fused_fc_ln_gates(flat, params["fc_w"], params["fc_b"],
                                params["ln4_g"], params["ln4_b"],
                                params["lstm_wih"], params["lstm_b"])   # (N, 512) f32

    h0, c0 = lstm_state
    B = h0.shape[1]
    T = N // B
    gates_x = gates_x.reshape(T, B, 4 * 128)
    done3 = done.reshape(T, B, 1).astype(jnp.float32)

    # Time-chunked LSTM recurrence with the q head fused in (lane-dense padded output).
    q_pad, h_fin, c_fin = pallas_lstm_q(gates_x, done3, h0[0], c0[0],
                                        params["lstm_whh"], params["q_w"], params["q_b"])
    q = q_pad.reshape(T * B, -1)[:, :n_actions]
    return q, (h_fin[None], c_fin[None])


# ----------------------------------------------------------------------------- main

if __name__ == "__main__":
    n_actions = 6
    T, B = 2, 2

    key = jax.random.PRNGKey(0)
    k_params, k_x, k_done = jax.random.split(key, 3)

    params = init_params(k_params, n_actions)
    x = jax.random.uniform(k_x, (T * B, 1, 84, 84), jnp.float32, minval=0.0, maxval=255.0)
    done = (jax.random.uniform(k_done, (T * B,)) < 0.3).astype(jnp.float32)
    h0 = jnp.zeros((1, B, 128), jnp.float32)
    c0 = jnp.zeros((1, B, 128), jnp.float32)

    q, (h_new, c_new) = qnetwork_forward(params, x, (h0, c0), done, n_actions)
    jax.block_until_ready((q, h_new, c_new))
    assert q.shape == (T * B, n_actions)
    assert h_new.shape == (1, B, 128) and c_new.shape == (1, B, 128)
    assert bool(jnp.all(jnp.isfinite(q)))
    print("KERNEL_OK")
</pallas_src>

<mosaic_0001>
module attributes {stable_mosaic.version = 11 : i64} {
  func.func @conv_ln_relu_kernel(%arg0: i32, %arg1: memref<4x400x64xbf16, #tpu.memory_space<vmem>>, %arg2: memref<64x32xbf16, #tpu.memory_space<vmem>>, %arg3: memref<1x32xf32, #tpu.memory_space<vmem>>, %arg4: memref<400x32xf32, #tpu.memory_space<vmem>>, %arg5: memref<400x32xf32, #tpu.memory_space<vmem>>, %arg6: memref<4x400x32xbf16, #tpu.memory_space<vmem>>) attributes {dimension_semantics = [#tpu.dimension_semantics<parallel>], iteration_bounds = array<i64: 1>, scalar_prefetch = 0 : i64, scratch_operands = 0 : i64, tpu.core_type = #tpu.core_type<tc>, window_params = [{transform_indices = @transform_0, window_bounds = array<i64: 4, 400, 64>}, {pipeline_mode = #tpu.pipeline_mode<synchronous>, transform_indices = @transform_1, window_bounds = array<i64: 64, 32>}, {pipeline_mode = #tpu.pipeline_mode<synchronous>, transform_indices = @transform_2, window_bounds = array<i64: 1, 32>}, {pipeline_mode = #tpu.pipeline_mode<synchronous>, transform_indices = @transform_3, window_bounds = array<i64: 400, 32>}, {pipeline_mode = #tpu.pipeline_mode<synchronous>, transform_indices = @transform_4, window_bounds = array<i64: 400, 32>}, {transform_indices = @transform_5, window_bounds = array<i64: 4, 400, 32>}]} {
    %c0 = arith.constant 0 : index
    %c0_0 = arith.constant 0 : index
    %0 = vector.load %arg2[%c0, %c0_0] : memref<64x32xbf16, #tpu.memory_space<vmem>>, vector<64x32xbf16>
    %c0_1 = arith.constant 0 : index
    %c0_2 = arith.constant 0 : index
    %1 = vector.load %arg3[%c0_1, %c0_2] : memref<1x32xf32, #tpu.memory_space<vmem>>, vector<1x32xf32>
    %c0_3 = arith.constant 0 : index
    %c0_4 = arith.constant 0 : index
    %2 = vector.load %arg4[%c0_3, %c0_4] : memref<400x32xf32, #tpu.memory_space<vmem>>, vector<400x32xf32>
    %c0_5 = arith.constant 0 : index
    %c0_6 = arith.constant 0 : index
    %3 = vector.load %arg5[%c0_5, %c0_6] : memref<400x32xf32, #tpu.memory_space<vmem>>, vector<400x32xf32>
    %c0_7 = arith.constant 0 : index
    %c0_8 = arith.constant 0 : index
    %c0_9 = arith.constant 0 : index
    %4 = vector.load %arg1[%c0_7, %c0_8, %c0_9] : memref<4x400x64xbf16, #tpu.memory_space<vmem>>, vector<1x400x64xbf16>
    %5 = vector.shape_cast %4 : vector<1x400x64xbf16> to vector<400x64xbf16>
    %cst = arith.constant dense<0.000000e+00> : vector<400x32xf32>
    %6 = tpu.matmul %5, %0, %cst {dimension_numbers = #tpu.dot_dimension_numbers<[1], [0], [0], [1], [0, 0, 1, 1], [], []>} : vector<400x64xbf16>, vector<64x32xbf16>, vector<400x32xf32> -> vector<400x32xf32>
    %7 = vector.broadcast %1 : vector<1x32xf32> to vector<400x32xf32>
    %8 = arith.addf %6, %7 : vector<400x32xf32>
    %9 = vector.shape_cast %8 : vector<400x32xf32> to vector<1x400x32xf32>
    %cst_10 = arith.constant dense<0.000000e+00> : vector<1xf32>
    %10 = vector.multi_reduction <add>, %9, %cst_10 [1, 2] : vector<1x400x32xf32> to vector<1xf32>
    %11 = vector.shape_cast %10 : vector<1xf32> to vector<1x1x1xf32>
    %12 = vector.extract %11[0, 0, 0] : f32 from vector<1x1x1xf32>
    %cst_11 = arith.constant 7.812500e-05 : f32
    %13 = arith.mulf %12, %cst_11 : f32
    %14 = arith.mulf %8, %8 : vector<400x32xf32>
    %15 = vector.shape_cast %14 : vector<400x32xf32> to vector<1x400x32xf32>
    %cst_12 = arith.constant dense<0.000000e+00> : vector<1xf32>
    %16 = vector.multi_reduction <add>, %15, %cst_12 [1, 2] : vector<1x400x32xf32> to vector<1xf32>
    %17 = vector.shape_cast %16 : vector<1xf32> to vector<1x1x1xf32>
    %18 = vector.extract %17[0, 0, 0] : f32 from vector<1x1x1xf32>
    %cst_13 = arith.constant 7.812500e-05 : f32
    %19 = arith.mulf %18, %cst_13 : f32
    %20 = arith.mulf %13, %13 : f32
    %21 = arith.subf %19, %20 : f32
    %22 = vector.broadcast %13 : f32 to vector<400x32xf32>
    %23 = arith.subf %8, %22 : vector<400x32xf32>
    %cst_14 = arith.constant 9.99999974E-6 : f32
    %24 = arith.addf %21, %cst_14 : f32
    %25 = math.rsqrt %24 : f32
    %26 = vector.broadcast %25 : f32 to vector<400x32xf32>
    %27 = arith.mulf %23, %26 : vector<400x32xf32>
    %28 = arith.mulf %27, %2 : vector<400x32xf32>
    %29 = arith.addf %28, %3 : vector<400x32xf32>
    %cst_15 = arith.constant 0.000000e+00 : f32
    %30 = vector.broadcast %cst_15 : f32 to vector<400x32xf32>
    %31 = arith.maximumf %29, %30 : vector<400x32xf32>
    %32 = arith.truncf %31 : vector<400x32xf32> to vector<400x32xbf16>
    %c0_16 = arith.constant 0 : index
    %c0_17 = arith.constant 0 : index
    %c0_18 = arith.constant 0 : index
    %33 = vector.load %arg6[%c0_16, %c0_17, %c0_18] : memref<4x400x32xbf16, #tpu.memory_space<vmem>>, vector<1x400x32xbf16>
    %34 = vector.shape_cast %33 : vector<1x400x32xbf16> to vector<400x32xbf16>
    %35 = vector.shape_cast %32 : vector<400x32xbf16> to vector<1x400x32xbf16>
    tpu.vector_store %arg6[%c0_16, %c0_17, %c0_18], %35 {strides = array<i32>} : memref<4x400x32xbf16, #tpu.memory_space<vmem>>, vector<1x400x32xbf16>,
    %c1 = arith.constant 1 : index
    %c0_19 = arith.constant 0 : index
    %c0_20 = arith.constant 0 : index
    %36 = vector.load %arg1[%c1, %c0_19, %c0_20] : memref<4x400x64xbf16, #tpu.memory_space<vmem>>, vector<1x400x64xbf16>
    %37 = vector.shape_cast %36 : vector<1x400x64xbf16> to vector<400x64xbf16>
    %cst_21 = arith.constant dense<0.000000e+00> : vector<400x32xf32>
    %38 = tpu.matmul %37, %0, %cst_21 {dimension_numbers = #tpu.dot_dimension_numbers<[1], [0], [0], [1], [0, 0, 1, 1], [], []>} : vector<400x64xbf16>, vector<64x32xbf16>, vector<400x32xf32> -> vector<400x32xf32>
    %39 = vector.broadcast %1 : vector<1x32xf32> to vector<400x32xf32>
    %40 = arith.addf %38, %39 : vector<400x32xf32>
    %41 = vector.shape_cast %40 : vector<400x32xf32> to vector<1x400x32xf32>
    %cst_22 = arith.constant dense<0.000000e+00> : vector<1xf32>
    %42 = vector.multi_reduction <add>, %41, %cst_22 [1, 2] : vector<1x400x32xf32> to vector<1xf32>
    %43 = vector.shape_cast %42 : vector<1xf32> to vector<1x1x1xf32>
    %44 = vector.extract %43[0, 0, 0] : f32 from vector<1x1x1xf32>
    %cst_23 = arith.constant 7.812500e-05 : f32
    %45 = arith.mulf %44, %cst_23 : f32
    %46 = arith.mulf %40, %40 : vector<400x32xf32>
    %47 = vector.shape_cast %46 : vector<400x32xf32> to vector<1x400x32xf32>
    %cst_24 = arith.constant dense<0.000000e+00> : vector<1xf32>
    %48 = vector.multi_reduction <add>, %47, %cst_24 [1, 2] : vector<1x400x32xf32> to vector<1xf32>
    %49 = vector.shape_cast %48 : vector<1xf32> to vector<1x1x1xf32>
    %50 = vector.extract %49[0, 0, 0] : f32 from vector<1x1x1xf32>
    %cst_25 = arith.constant 7.812500e-05 : f32
    %51 = arith.mulf %50, %cst_25 : f32
    %52 = arith.mulf %45, %45 : f32
    %53 = arith.subf %51, %52 : f32
    %54 = vector.broadcast %45 : f32 to vector<400x32xf32>
    %55 = arith.subf %40, %54 : vector<400x32xf32>
    %cst_26 = arith.constant 9.99999974E-6 : f32
    %56 = arith.addf %53, %cst_26 : f32
    %57 = math.rsqrt %56 : f32
    %58 = vector.broadcast %57 : f32 to vector<400x32xf32>
    %59 = arith.mulf %55, %58 : vector<400x32xf32>
    %60 = arith.mulf %59, %2 : vector<400x32xf32>
    %61 = arith.addf %60, %3 : vector<400x32xf32>
    %cst_27 = arith.constant 0.000000e+00 : f32
    %62 = vector.broadcast %cst_27 : f32 to vector<400x32xf32>
    %63 = arith.maximumf %61, %62 : vector<400x32xf32>
    %64 = arith.truncf %63 : vector<400x32xf32> to vector<400x32xbf16>
    %c1_28 = arith.constant 1 : index
    %c0_29 = arith.constant 0 : index
    %c0_30 = arith.constant 0 : index
    %65 = vector.load %arg6[%c1_28, %c0_29, %c0_30] : memref<4x400x32xbf16, #tpu.memory_space<vmem>>, vector<1x400x32xbf16>
    %66 = vector.shape_cast %65 : vector<1x400x32xbf16> to vector<400x32xbf16>
    %67 = vector.shape_cast %64 : vector<400x32xbf16> to vector<1x400x32xbf16>
    tpu.vector_store %arg6[%c1_28, %c0_29, %c0_30], %67 {strides = array<i32>} : memref<4x400x32xbf16, #tpu.memory_space<vmem>>, vector<1x400x32xbf16>,
    %c2 = arith.constant 2 : index
    %c0_31 = arith.constant 0 : index
    %c0_32 = arith.constant 0 : index
    %68 = vector.load %arg1[%c2, %c0_31, %c0_32] : memref<4x400x64xbf16, #tpu.memory_space<vmem>>, vector<1x400x64xbf16>
    %69 = vector.shape_cast %68 : vector<1x400x64xbf16> to vector<400x64xbf16>
    %cst_33 = arith.constant dense<0.000000e+00> : vector<400x32xf32>
    %70 = tpu.matmul %69, %0, %cst_33 {dimension_numbers = #tpu.dot_dimension_numbers<[1], [0], [0], [1], [0, 0, 1, 1], [], []>} : vector<400x64xbf16>, vector<64x32xbf16>, vector<400x32xf32> -> vector<400x32xf32>
    %71 = vector.broadcast %1 : vector<1x32xf32> to vector<400x32xf32>
    %72 = arith.addf %70, %71 : vector<400x32xf32>
    %73 = vector.shape_cast %72 : vector<400x32xf32> to vector<1x400x32xf32>
    %cst_34 = arith.constant dense<0.000000e+00> : vector<1xf32>
    %74 = vector.multi_reduction <add>, %73, %cst_34 [1, 2] : vector<1x400x32xf32> to vector<1xf32>
    %75 = vector.shape_cast %74 : vector<1xf32> to vector<1x1x1xf32>
    %76 = vector.extract %75[0, 0, 0] : f32 from vector<1x1x1xf32>
    %cst_35 = arith.constant 7.812500e-05 : f32
    %77 = arith.mulf %76, %cst_35 : f32
    %78 = arith.mulf %72, %72 : vector<400x32xf32>
    %79 = vector.shape_cast %78 : vector<400x32xf32> to vector<1x400x32xf32>
    %cst_36 = arith.constant dense<0.000000e+00> : vector<1xf32>
    %80 = vector.multi_reduction <add>, %79, %cst_36 [1, 2] : vector<1x400x32xf32> to vector<1xf32>
    %81 = vector.shape_cast %80 : vector<1xf32> to vector<1x1x1xf32>
    %82 = vector.extract %81[0, 0, 0] : f32 from vector<1x1x1xf32>
    %cst_37 = arith.constant 7.812500e-05 : f32
    %83 = arith.mulf %82, %cst_37 : f32
    %84 = arith.mulf %77, %77 : f32
    %85 = arith.subf %83, %84 : f32
    %86 = vector.broadcast %77 : f32 to vector<400x32xf32>
    %87 = arith.subf %72, %86 : vector<400x32xf32>
    %cst_38 = arith.constant 9.99999974E-6 : f32
    %88 = arith.addf %85, %cst_38 : f32
    %89 = math.rsqrt %88 : f32
    %90 = vector.broadcast %89 : f32 to vector<400x32xf32>
    %91 = arith.mulf %87, %90 : vector<400x32xf32>
    %92 = arith.mulf %91, %2 : vector<400x32xf32>
    %93 = arith.addf %92, %3 : vector<400x32xf32>
    %cst_39 = arith.constant 0.000000e+00 : f32
    %94 = vector.broadcast %cst_39 : f32 to vector<400x32xf32>
    %95 = arith.maximumf %93, %94 : vector<400x32xf32>
    %96 = arith.truncf %95 : vector<400x32xf32> to vector<400x32xbf16>
    %c2_40 = arith.constant 2 : index
    %c0_41 = arith.constant 0 : index
    %c0_42 = arith.constant 0 : index
    %97 = vector.load %arg6[%c2_40, %c0_41, %c0_42] : memref<4x400x32xbf16, #tpu.memory_space<vmem>>, vector<1x400x32xbf16>
    %98 = vector.shape_cast %97 : vector<1x400x32xbf16> to vector<400x32xbf16>
    %99 = vector.shape_cast %96 : vector<400x32xbf16> to vector<1x400x32xbf16>
    tpu.vector_store %arg6[%c2_40, %c0_41, %c0_42], %99 {strides = array<i32>} : memref<4x400x32xbf16, #tpu.memory_space<vmem>>, vector<1x400x32xbf16>,
    %c3 = arith.constant 3 : index
    %c0_43 = arith.constant 0 : index
    %c0_44 = arith.constant 0 : index
    %100 = vector.load %arg1[%c3, %c0_43, %c0_44] : memref<4x400x64xbf16, #tpu.memory_space<vmem>>, vector<1x400x64xbf16>
    %101 = vector.shape_cast %100 : vector<1x400x64xbf16> to vector<400x64xbf16>
    %cst_45 = arith.constant dense<0.000000e+00> : vector<400x32xf32>
    %102 = tpu.matmul %101, %0, %cst_45 {dimension_numbers = #tpu.dot_dimension_numbers<[1], [0], [0], [1], [0, 0, 1, 1], [], []>} : vector<400x64xbf16>, vector<64x32xbf16>, vector<400x32xf32> -> vector<400x32xf32>
    %103 = vector.broadcast %1 : vector<1x32xf32> to vector<400x32xf32>
    %104 = arith.addf %102, %103 : vector<400x32xf32>
    %105 = vector.shape_cast %104 : vector<400x32xf32> to vector<1x400x32xf32>
    %cst_46 = arith.constant dense<0.000000e+00> : vector<1xf32>
    %106 = vector.multi_reduction <add>, %105, %cst_46 [1, 2] : vector<1x400x32xf32> to vector<1xf32>
    %107 = vector.shape_cast %106 : vector<1xf32> to vector<1x1x1xf32>
    %108 = vector.extract %107[0, 0, 0] : f32 from vector<1x1x1xf32>
    %cst_47 = arith.constant 7.812500e-05 : f32
    %109 = arith.mulf %108, %cst_47 : f32
    %110 = arith.mulf %104, %104 : vector<400x32xf32>
    %111 = vector.shape_cast %110 : vector<400x32xf32> to vector<1x400x32xf32>
    %cst_48 = arith.constant dense<0.000000e+00> : vector<1xf32>
    %112 = vector.multi_reduction <add>, %111, %cst_48 [1, 2] : vector<1x400x32xf32> to vector<1xf32>
    %113 = vector.shape_cast %112 : vector<1xf32> to vector<1x1x1xf32>
    %114 = vector.extract %113[0, 0, 0] : f32 from vector<1x1x1xf32>
    %cst_49 = arith.constant 7.812500e-05 : f32
    %115 = arith.mulf %114, %cst_49 : f32
    %116 = arith.mulf %109, %109 : f32
    %117 = arith.subf %115, %116 : f32
    %118 = vector.broadcast %109 : f32 to vector<400x32xf32>
    %119 = arith.subf %104, %118 : vector<400x32xf32>
    %cst_50 = arith.constant 9.99999974E-6 : f32
    %120 = arith.addf %117, %cst_50 : f32
    %121 = math.rsqrt %120 : f32
    %122 = vector.broadcast %121 : f32 to vector<400x32xf32>
    %123 = arith.mulf %119, %122 : vector<400x32xf32>
    %124 = arith.mulf %123, %2 : vector<400x32xf32>
    %125 = arith.addf %124, %3 : vector<400x32xf32>
    %cst_51 = arith.constant 0.000000e+00 : f32
    %126 = vector.broadcast %cst_51 : f32 to vector<400x32xf32>
    %127 = arith.maximumf %125, %126 : vector<400x32xf32>
    %128 = arith.truncf %127 : vector<400x32xf32> to vector<400x32xbf16>
    %c3_52 = arith.constant 3 : index
    %c0_53 = arith.constant 0 : index
    %c0_54 = arith.constant 0 : index
    %129 = vector.load %arg6[%c3_52, %c0_53, %c0_54] : memref<4x400x32xbf16, #tpu.memory_space<vmem>>, vector<1x400x32xbf16>
    %130 = vector.shape_cast %129 : vector<1x400x32xbf16> to vector<400x32xbf16>
    %131 = vector.shape_cast %128 : vector<400x32xbf16> to vector<1x400x32xbf16>
    tpu.vector_store %arg6[%c3_52, %c0_53, %c0_54], %131 {strides = array<i32>} : memref<4x400x32xbf16, #tpu.memory_space<vmem>>, vector<1x400x32xbf16>,
    return
  }
  func.func @transform_0(%arg0: i32) -> (i32, i32, i32) {
    %c0_i32 = arith.constant 0 : i32
    %c0_i32_0 = arith.constant 0 : i32
    %c0_i32_1 = arith.constant 0 : i32
    return %arg0, %c0_i32, %c0_i32_0 : i32, i32, i32
  }
  func.func @transform_1(%arg0: i32) -> (i32, i32) {
    %c0_i32 = arith.constant 0 : i32
    %c0_i32_0 = arith.constant 0 : i32
    %c0_i32_1 = arith.constant 0 : i32
    return %c0_i32, %c0_i32_0 : i32, i32
  }
  func.func @transform_2(%arg0: i32) -> (i32, i32) {
    %c0_i32 = arith.constant 0 : i32
    %c0_i32_0 = arith.constant 0 : i32
    %c0_i32_1 = arith.constant 0 : i32
    return %c0_i32, %c0_i32_0 : i32, i32
  }
  func.func @transform_3(%arg0: i32) -> (i32, i32) {
    %c0_i32 = arith.constant 0 : i32
    %c0_i32_0 = arith.constant 0 : i32
    %c0_i32_1 = arith.constant 0 : i32
    return %c0_i32, %c0_i32_0 : i32, i32
  }
  func.func @transform_4(%arg0: i32) -> (i32, i32) {
    %c0_i32 = arith.constant 0 : i32
    %c0_i32_0 = arith.constant 0 : i32
    %c0_i32_1 = arith.constant 0 : i32
    return %c0_i32, %c0_i32_0 : i32, i32
  }
  func.func @transform_5(%arg0: i32) -> (i32, i32, i32) {
    %c0_i32 = arith.constant 0 : i32
    %c0_i32_0 = arith.constant 0 : i32
    %c0_i32_1 = arith.constant 0 : i32
    return %arg0, %c0_i32, %c0_i32_0 : i32, i32, i32
  }
}

</mosaic_0001>

<llo_original>
// kernel: tpu_custom_call.1
$region0: #{tpu_custom_call.1}
  #allocation0 [shape = 'u32[]', space=smem, size = 0x4, offset = 0x4, fixed_abs, tag = 'smem constant byte address 0x4 - core index']
  #allocation1 [shape = 'u32[144,128]{1,0:T(1,128)}', space=vmem, size = 0x12000, scoped, tag = 'internal scratch']
  %s0 = inlined_call_operand.vmem [shape: bf16[4,400,64], index: 0, kind: input, shape index: {}]
  %s1 = inlined_call_operand.vmem [shape: bf16[64,32], index: 1, kind: input, shape index: {}]
  %s2 = inlined_call_operand.vmem [shape: f32[1,32], index: 2, kind: input, shape index: {}]
  %s3 = inlined_call_operand.vmem [shape: f32[400,32], index: 3, kind: input, shape index: {}]
  %s4 = inlined_call_operand.vmem [shape: f32[400,32], index: 4, kind: input, shape index: {}]
  %s5 = inlined_call_operand.vmem [shape: bf16[4,400,32], index: 5, kind: output, shape index: {}]
  %s6 = sld [smem:[#allocation0]]
  $region30: #{tpu_custom_call.1} parent=0
    _
  %s8 = ssub.s32 1, %s6
  %s9 = scalar_select 0, %s8, %s6
  // Predicated region
  $region2: #{tpu_custom_call.1} parent=0 // pred_check
    _
  $region3: #{tpu_custom_call.1} parent=0 // pred_check_branch
    %11 = sbr.rel (0) target = $region5
  $region4: #{tpu_custom_call.1} parent=0 // pred_region
    _
  $region5: #{tpu_custom_call.1} parent=0 // pred_fallthru
    _
  // Predicated region
  $region6: #{tpu_custom_call.1} parent=0 // pred_check
    _
  $region7: #{tpu_custom_call.1} parent=0 // pred_check_branch
    %13 = sbr.rel (0) target = $region9
  $region8: #{tpu_custom_call.1} parent=0 // pred_region
    _
  $region9: #{tpu_custom_call.1} parent=0 // pred_fallthru
    _
  // Predicated region
  $region10: #{tpu_custom_call.1} parent=0 // pred_check
    _
  $region11: #{tpu_custom_call.1} parent=0 // pred_check_branch
    %15 = sbr.rel (0) target = $region13
  $region12: #{tpu_custom_call.1} parent=0 // pred_region
    _
  $region13: #{tpu_custom_call.1} parent=0 // pred_fallthru
    _
  // Predicated region
  $region14: #{tpu_custom_call.1} parent=0 // pred_check
    _
  $region15: #{tpu_custom_call.1} parent=0 // pred_check_branch
    %17 = sbr.rel (0) target = $region17
  $region16: #{tpu_custom_call.1} parent=0 // pred_region
    _
  $region17: #{tpu_custom_call.1} parent=0 // pred_fallthru
    _
  // Predicated region
  $region18: #{tpu_custom_call.1} parent=0 // pred_check
    _
  $region19: #{tpu_custom_call.1} parent=0 // pred_check_branch
    %19 = sbr.rel (0) target = $region21
  $region20: #{tpu_custom_call.1} parent=0 // pred_region
    _
  $region21: #{tpu_custom_call.1} parent=0 // pred_fallthru
    _
  %v21 = vld [vmem:[%s1] sm:$0xf]
  %v22 = vld [vmem:[%s1 + $0x4] sm:$0xf]
  %v23 = vld [vmem:[%s1 + $0x8] sm:$0xf]
  %v24 = vld [vmem:[%s1 + $0xc] sm:$0xf]
  %v25 = vld [vmem:[%s1 + $0x10] sm:$0xf]
  %v26 = vld [vmem:[%s1 + $0x14] sm:$0xf]
  %v27 = vld [vmem:[%s1 + $0x18] sm:$0xf]
  %v28 = vld [vmem:[%s1 + $0x1c] sm:$0xf]
  %v29 = vld [vmem:[%s2] sm:$0x1]
  %v30 = vld [vmem:[%s3] sm:$0xff]
  %v31 = vld [vmem:[%s3 + $0x8] sm:$0xff]
  %v32 = vld [vmem:[%s3 + $0x10] sm:$0xff]
  %v33 = vld [vmem:[%s3 + $0x18] sm:$0xff]
  %v34 = vld [vmem:[%s3 + $0x20] sm:$0xff]
  %v35 = vld [vmem:[%s3 + $0x28] sm:$0xff]
  %v36 = vld [vmem:[%s3 + $0x30] sm:$0xff]
  %v37 = vld [vmem:[%s3 + $0x38] sm:$0xff]
  %v38 = vld [vmem:[%s3 + $0x40] sm:$0xff]
  %v39 = vld [vmem:[%s3 + $0x48] sm:$0xff]
  %v40 = vld [vmem:[%s3 + $0x50] sm:$0xff]
  %v41 = vld [vmem:[%s3 + $0x58] sm:$0xff]
  %v42 = vld [vmem:[%s3 + $0x60] sm:$0xff]
  %v43 = vld [vmem:[%s3 + $0x68] sm:$0xff]
  %v44 = vld [vmem:[%s3 + $0x70] sm:$0xff]
  %v45 = vld [vmem:[%s3 + $0x78] sm:$0xff]
  %v46 = vld [vmem:[%s3 + $0x80] sm:$0xff]
  %v47 = vld [vmem:[%s3 + $0x88] sm:$0xff]
  %v48 = vld [vmem:[%s3 + $0x90] sm:$0xff]
  %v49 = vld [vmem:[%s3 + $0x98] sm:$0xff]
  %v50 = vld [vmem:[%s3 + $0xa0] sm:$0xff]
  %v51 = vld [vmem:[%s3 + $0xa8] sm:$0xff]
  %v52 = vld [vmem:[%s3 + $0xb0] sm:$0xff]
  %v53 = vld [vmem:[%s3 + $0xb8] sm:$0xff]
  %v54 = vld [vmem:[%s3 + $0xc0] sm:$0xff]
  %v55 = vld [vmem:[%s3 + $0xc8] sm:$0xff]
  %v56 = vld [vmem:[%s3 + $0xd0] sm:$0xff]
  %v57 = vld [vmem:[%s3 + $0xd8] sm:$0xff]
  %v58 = vld [vmem:[%s3 + $0xe0] sm:$0xff]
  %v59 = vld [vmem:[%s3 + $0xe8] sm:$0xff]
  %v60 = vld [vmem:[%s3 + $0xf0] sm:$0xff]
  %v61 = vld [vmem:[%s3 + $0xf8] sm:$0xff]
  %v62 = vld [vmem:[%s3 + $0x100] sm:$0xff]
  %v63 = vld [vmem:[%s3 + $0x108] sm:$0xff]
  %v64 = vld [vmem:[%s3 + $0x110] sm:$0xff]
  %v65 = vld [vmem:[%s3 + $0x118] sm:$0xff]
  %v66 = vld [vmem:[%s3 + $0x120] sm:$0xff]
  %v67 = vld [vmem:[%s3 + $0x128] sm:$0xff]
  %v68 = vld [vmem:[%s3 + $0x130] sm:$0xff]
  %v69 = vld [vmem:[%s3 + $0x138] sm:$0xff]
  %v70 = vld [vmem:[%s3 + $0x140] sm:$0xff]
  %v71 = vld [vmem:[%s3 + $0x148] sm:$0xff]
  %v72 = vld [vmem:[%s3 + $0x150] sm:$0xff]
  %v73 = vld [vmem:[%s3 + $0x158] sm:$0xff]
  %v74 = vld [vmem:[%s3 + $0x160] sm:$0xff]
  %v75 = vld [vmem:[%s3 + $0x168] sm:$0xff]
  %v76 = vld [vmem:[%s3 + $0x170] sm:$0xff]
  %v77 = vld [vmem:[%s3 + $0x178] sm:$0xff]
  %v78 = vld [vmem:[%s3 + $0x180] sm:$0xff]
  %v79 = vld [vmem:[%s3 + $0x188] sm:$0xff]
  %v80 = vld [vmem:[%s4] sm:$0xff]
  %v81 = vld [vmem:[%s4 + $0x8] sm:$0xff]
  %v82 = vld [vmem:[%s4 + $0x10] sm:$0xff]
  %v83 = vld [vmem:[%s4 + $0x18] sm:$0xff]
  %v84 = vld [vmem:[%s4 + $0x20] sm:$0xff]
  %v85 = vld [vmem:[%s4 + $0x28] sm:$0xff]
  %v86 = vld [vmem:[%s4 + $0x30] sm:$0xff]
  %v87 = vld [vmem:[%s4 + $0x38] sm:$0xff]
  %v88 = vld [vmem:[%s4 + $0x40] sm:$0xff]
  %v89 = vld [vmem:[%s4 + $0x48] sm:$0xff]
  %v90 = vld [vmem:[%s4 + $0x50] sm:$0xff]
  %v91 = vld [vmem:[%s4 + $0x58] sm:$0xff]
  %v92 = vld [vmem:[%s4 + $0x60] sm:$0xff]
  %v93 = vld [vmem:[%s4 + $0x68] sm:$0xff]
  %v94 = vld [vmem:[%s4 + $0x70] sm:$0xff]
  %v95 = vld [vmem:[%s4 + $0x78] sm:$0xff]
  %v96 = vld [vmem:[%s4 + $0x80] sm:$0xff]
  %v97 = vld [vmem:[%s4 + $0x88] sm:$0xff]
  %v98 = vld [vmem:[%s4 + $0x90] sm:$0xff]
  %v99 = vld [vmem:[%s4 + $0x98] sm:$0xff]
  %v100 = vld [vmem:[%s4 + $0xa0] sm:$0xff]
  %v101 = vld [vmem:[%s4 + $0xa8] sm:$0xff]
  %v102 = vld [vmem:[%s4 + $0xb0] sm:$0xff]
  %v103 = vld [vmem:[%s4 + $0xb8] sm:$0xff]
  %v104 = vld [vmem:[%s4 + $0xc0] sm:$0xff]
  %v105 = vld [vmem:[%s4 + $0xc8] sm:$0xff]
  %v106 = vld [vmem:[%s4 + $0xd0] sm:$0xff]
  %v107 = vld [vmem:[%s4 + $0xd8] sm:$0xff]
  %v108 = vld [vmem:[%s4 + $0xe0] sm:$0xff]
  %v109 = vld [vmem:[%s4 + $0xe8] sm:$0xff]
  %v110 = vld [vmem:[%s4 + $0xf0] sm:$0xff]
  %v111 = vld [vmem:[%s4 + $0xf8] sm:$0xff]
  %v112 = vld [vmem:[%s4 + $0x100] sm:$0xff]
  %v113 = vld [vmem:[%s4 + $0x108] sm:$0xff]
  %v114 = vld [vmem:[%s4 + $0x110] sm:$0xff]
  %v115 = vld [vmem:[%s4 + $0x118] sm:$0xff]
  %v116 = vld [vmem:[%s4 + $0x120] sm:$0xff]
  %v117 = vld [vmem:[%s4 + $0x128] sm:$0xff]
  %v118 = vld [vmem:[%s4 + $0x130] sm:$0xff]
  %v119 = vld [vmem:[%s4 + $0x138] sm:$0xff]
  %v120 = vld [vmem:[%s4 + $0x140] sm:$0xff]
  %v121 = vld [vmem:[%s4 + $0x148] sm:$0xff]
  %v122 = vld [vmem:[%s4 + $0x150] sm:$0xff]
  %v123 = vld [vmem:[%s4 + $0x158] sm:$0xff]
  %v124 = vld [vmem:[%s4 + $0x160] sm:$0xff]
  %v125 = vld [vmem:[%s4 + $0x168] sm:$0xff]
  %v126 = vld [vmem:[%s4 + $0x170] sm:$0xff]
  %v127 = vld [vmem:[%s4 + $0x178] sm:$0xff]
  %v128 = vld [vmem:[%s4 + $0x180] sm:$0xff]
  %v129 = vld [vmem:[%s4 + $0x188] sm:$0xff]
  %v130 = vld [vmem:[%s0] sm:$0xf]
  %v131 = vld [vmem:[%s0 + $0x4] sm:$0xf]
  %v132 = vld [vmem:[%s0 + $0x8] sm:$0xf]
  %v133 = vld [vmem:[%s0 + $0xc] sm:$0xf]
  %v134 = vld [vmem:[%s0 + $0x10] sm:$0xf]
  %v135 = vld [vmem:[%s0 + $0x14] sm:$0xf]
  %v136 = vld [vmem:[%s0 + $0x18] sm:$0xf]
  %v137 = vld [vmem:[%s0 + $0x1c] sm:$0xf]
  %v138 = vld [vmem:[%s0 + $0x20] sm:$0xf]
  %v139 = vld [vmem:[%s0 + $0x24] sm:$0xf]
  %v140 = vld [vmem:[%s0 + $0x28] sm:$0xf]
  %v141 = vld [vmem:[%s0 + $0x2c] sm:$0xf]
  %v142 = vld [vmem:[%s0 + $0x30] sm:$0xf]
  %v143 = vld [vmem:[%s0 + $0x34] sm:$0xf]
  %v144 = vld [vmem:[%s0 + $0x38] sm:$0xf]
  %v145 = vld [vmem:[%s0 + $0x3c] sm:$0xf]
  %v146 = vld [vmem:[%s0 + $0x40] sm:$0xf]
  %v147 = vld [vmem:[%s0 + $0x44] sm:$0xf]
  %v148 = vld [vmem:[%s0 + $0x48] sm:$0xf]
  %v149 = vld [vmem:[%s0 + $0x4c] sm:$0xf]
  %v150 = vld [vmem:[%s0 + $0x50] sm:$0xf]
  %v151 = vld [vmem:[%s0 + $0x54] sm:$0xf]
  %v152 = vld [vmem:[%s0 + $0x58] sm:$0xf]
  %v153 = vld [vmem:[%s0 + $0x5c] sm:$0xf]
  %v154 = vld [vmem:[%s0 + $0x60] sm:$0xf]
  %v155 = vld [vmem:[%s0 + $0x64] sm:$0xf]
  %v156 = vld [vmem:[%s0 + $0x68] sm:$0xf]
  %v157 = vld [vmem:[%s0 + $0x6c] sm:$0xf]
  %v158 = vld [vmem:[%s0 + $0x70] sm:$0xf]
  %v159 = vld [vmem:[%s0 + $0x74] sm:$0xf]
  %v160 = vld [vmem:[%s0 + $0x78] sm:$0xf]
  %v161 = vld [vmem:[%s0 + $0x7c] sm:$0xf]
  %v162 = vld [vmem:[%s0 + $0x80] sm:$0xf]
  %v163 = vld [vmem:[%s0 + $0x84] sm:$0xf]
  %v164 = vld [vmem:[%s0 + $0x88] sm:$0xf]
  %v165 = vld [vmem:[%s0 + $0x8c] sm:$0xf]
  %v166 = vld [vmem:[%s0 + $0x90] sm:$0xf]
  %v167 = vld [vmem:[%s0 + $0x94] sm:$0xf]
  %v168 = vld [vmem:[%s0 + $0x98] sm:$0xf]
  %v169 = vld [vmem:[%s0 + $0x9c] sm:$0xf]
  %v170 = vld [vmem:[%s0 + $0xa0] sm:$0xf]
  %v171 = vld [vmem:[%s0 + $0xa4] sm:$0xf]
  %v172 = vld [vmem:[%s0 + $0xa8] sm:$0xf]
  %v173 = vld [vmem:[%s0 + $0xac] sm:$0xf]
  %v174 = vld [vmem:[%s0 + $0xb0] sm:$0xf]
  %v175 = vld [vmem:[%s0 + $0xb4] sm:$0xf]
  %v176 = vld [vmem:[%s0 + $0xb8] sm:$0xf]
  %v177 = vld [vmem:[%s0 + $0xbc] sm:$0xf]
  %v178 = vld [vmem:[%s0 + $0xc0] sm:$0xf]
  %v179 = vld [vmem:[%s0 + $0xc4] sm:$0xf]
  %v181 = vlaneseq
  %v182 = vshrl.u32 %v181, 7
  %v183 = vsub.s32 0, %v182
  %v184 = vrot.slane %v29, %v183
  %v236 = vunpack.c.l.b16 %v130
  %v237 = vunpack.c.l.b16 %v131
  %v238 = vunpack.c.l.b16 %v132
  %v239 = vunpack.c.l.b16 %v133
  %v240 = vunpack.c.l.b16 %v134
  %v241 = vunpack.c.l.b16 %v135
  %v242 = vunpack.c.l.b16 %v136
  %v243 = vunpack.c.l.b16 %v137
  %v244 = vunpack.c.l.b16 %v138
  %v245 = vunpack.c.l.b16 %v139
  %v246 = vunpack.c.l.b16 %v140
  %v247 = vunpack.c.l.b16 %v141
  %v248 = vunpack.c.l.b16 %v142
  %v249 = vunpack.c.l.b16 %v143
  %v250 = vunpack.c.l.b16 %v144
  %v251 = vunpack.c.l.b16 %v145
  %v252 = vunpack.c.l.b16 %v146
  %v253 = vunpack.c.l.b16 %v147
  %v254 = vunpack.c.l.b16 %v148
  %v255 = vunpack.c.l.b16 %v149
  %v256 = vunpack.c.l.b16 %v150
  %v257 = vunpack.c.l.b16 %v151
  %v258 = vunpack.c.l.b16 %v152
  %v259 = vunpack.c.l.b16 %v153
  %v260 = vunpack.c.l.b16 %v154
  %v261 = vunpack.c.l.b16 %v155
  %v262 = vunpack.c.l.b16 %v156
  %v263 = vunpack.c.l.b16 %v157
  %v264 = vunpack.c.l.b16 %v158
  %v265 = vunpack.c.l.b16 %v159
  %v266 = vunpack.c.l.b16 %v160
  %v267 = vunpack.c.l.b16 %v161
  %v268 = vunpack.c.l.b16 %v162
  %v269 = vunpack.c.l.b16 %v163
  %v270 = vunpack.c.l.b16 %v164
  %v271 = vunpack.c.l.b16 %v165
  %v272 = vunpack.c.l.b16 %v166
  %v273 = vunpack.c.l.b16 %v167
  %v274 = vunpack.c.l.b16 %v168
  %v275 = vunpack.c.l.b16 %v169
  %v276 = vunpack.c.l.b16 %v170
  %v277 = vunpack.c.l.b16 %v171
  %v278 = vunpack.c.l.b16 %v172
  %v279 = vunpack.c.l.b16 %v173
  %v280 = vunpack.c.l.b16 %v174
  %v281 = vunpack.c.l.b16 %v175
  %v282 = vunpack.c.l.b16 %v176
  %v283 = vunpack.c.l.b16 %v177
  %v284 = vunpack.c.l.b16 %v178
  %v285 = vunpack.c.l.b16 %v179
  %v286 = vpack.c.b16 %v237, %v236
  %v287 = vpack.c.b16 %v239, %v238
  %v288 = vpack.c.b16 %v241, %v240
  %v289 = vpack.c.b16 %v243, %v242
  %v290 = vpack.c.b16 %v245, %v244
  %v291 = vpack.c.b16 %v247, %v246
  %v292 = vpack.c.b16 %v249, %v248
  %v293 = vpack.c.b16 %v251, %v250
  %v294 = vpack.c.b16 %v253, %v252
  %v295 = vpack.c.b16 %v255, %v254
  %v296 = vpack.c.b16 %v257, %v256
  %v297 = vpack.c.b16 %v259, %v258
  %v298 = vpack.c.b16 %v261, %v260
  %v299 = vpack.c.b16 %v263, %v262
  %v300 = vpack.c.b16 %v265, %v264
  %v301 = vpack.c.b16 %v267, %v266
  %v302 = vpack.c.b16 %v269, %v268
  %v303 = vpack.c.b16 %v271, %v270
  %v304 = vpack.c.b16 %v273, %v272
  %v305 = vpack.c.b16 %v275, %v274
  %v306 = vpack.c.b16 %v277, %v276
  %v307 = vpack.c.b16 %v279, %v278
  %v308 = vpack.c.b16 %v281, %v280
  %v309 = vpack.c.b16 %v283, %v282
  %v310 = vpack.c.b16 %v285, %v284
  %v319 = vunpack.c.l.b16 %v21
  %v320 = vunpack.c.l.b16 %v22
  %v321 = vunpack.c.l.b16 %v23
  %v322 = vunpack.c.l.b16 %v24
  %v323 = vunpack.c.l.b16 %v25
  %v324 = vunpack.c.l.b16 %v26
  %v325 = vunpack.c.l.b16 %v27
  %v326 = vunpack.c.l.b16 %v28
  %v327 = vpack.c.b16 %v320, %v319
  %v328 = vpack.c.b16 %v322, %v321
  %v329 = vpack.c.b16 %v324, %v323
  %v330 = vpack.c.b16 %v326, %v325
  %vm335 = vcmask 523264
  %v337 = vsel %vm335, %v286, 0
  %v340 = vsel %vm335, %v287, 0
  %v343 = vsel %vm335, %v288, 0
  %v346 = vsel %vm335, %v289, 0
  %v349 = vsel %vm335, %v290, 0
  %v352 = vsel %vm335, %v291, 0
  %v355 = vsel %vm335, %v292, 0
  %v358 = vsel %vm335, %v293, 0
  %v361 = vsel %vm335, %v294, 0
  %v364 = vsel %vm335, %v295, 0
  %v367 = vsel %vm335, %v296, 0
  %v370 = vsel %vm335, %v297, 0
  %v373 = vsel %vm335, %v298, 0
  %v376 = vsel %vm335, %v299, 0
  %v379 = vsel %vm335, %v300, 0
  %v382 = vsel %vm335, %v301, 0
  %v385 = vsel %vm335, %v302, 0
  %v388 = vsel %vm335, %v303, 0
  %v391 = vsel %vm335, %v304, 0
  %v394 = vsel %vm335, %v305, 0
  %v397 = vsel %vm335, %v306, 0
  %v400 = vsel %vm335, %v307, 0
  %v403 = vsel %vm335, %v308, 0
  %v406 = vsel %vm335, %v309, 0
  %v409 = vsel %vm335, %v310, 0
  %411 = vmatprep.subr.bf16.mxu0 0
  %412 = vmatpush1.bf16.msra.mxu0 %v327
  %413 = vmatprep.subr.bf16.mxu0 0
  %414 = vmatpush1.bf16.msra.mxu0 %v328
  %415 = vmatprep.subr.bf16.mxu0 0
  %416 = vmatpush1.bf16.msra.mxu0 %v329
  %417 = vmatprep.subr.bf16.mxu0 0
  %418 = vmatpush1.bf16.msra.mxu0 %v330
  %419 = vmatprep.subr.bf16.mxu0 0
  %420 = vmatpush1.bf16.msra.mxu0 0
  %421 = vmatprep.subr.bf16.mxu0 0
  %422 = vmatpush1.bf16.msra.mxu0 0
  %423 = vmatprep.subr.bf16.mxu0 0
  %424 = vmatpush1.bf16.msra.mxu0 0
  %425 = vmatprep.subr.bf16.mxu0 0
  %426 = vmatpush1.bf16.msra.mxu0 0
  %427 = vmatprep.subr.bf16.mxu0 0
  %428 = vmatpush1.bf16.msra.mxu0 0
  %429 = vmatprep.subr.bf16.mxu0 0
  %430 = vmatpush1.bf16.msra.mxu0 0
  %431 = vmatprep.subr.bf16.mxu0 0
  %432 = vmatpush1.bf16.msra.mxu0 0
  %433 = vmatprep.subr.bf16.mxu0 0
  %434 = vmatpush1.bf16.msra.mxu0 0
  %435 = vmatprep.subr.bf16.mxu0 0
  %436 = vmatpush1.bf16.msra.mxu0 0
  %437 = vmatprep.subr.bf16.mxu0 0
  %438 = vmatpush1.bf16.msra.mxu0 0
  %439 = vmatprep.subr.bf16.mxu0 0
  %440 = vmatpush1.bf16.msra.mxu0 0
  %441 = vmatprep.subr.bf16.mxu0 0
  %442 = vmatpush1.bf16.msra.mxu0 0
  %443 = vmatprep.mubr.bf16.mxu0 0
  %444 = vmatmul.mubr.bf16.gmra.mrb[0].mxu0 %v337
  %v445 = vpop.f32.mrb[0].mxu0
  %v446 = vadd.f32 %v184, %v445
  %v447 = vpop.f32.mrb[0].mxu0
  %v448 = vpop.f32.mrb[0].mxu0
  %v449 = vadd.f32 %v184, %v448
  %v450 = vpop.f32.mrb[0].mxu0
  %451 = vmatprep.mubr.bf16.mxu0 0
  %452 = vmatmul.mubr.bf16.gmra.mrb[0].mxu0 %v340
  %v453 = vpop.f32.mrb[0].mxu0
  %v454 = vadd.f32 %v184, %v453
  %v455 = vpop.f32.mrb[0].mxu0
  %v456 = vpop.f32.mrb[0].mxu0
  %v457 = vadd.f32 %v184, %v456
  %v458 = vpop.f32.mrb[0].mxu0
  %459 = vmatprep.mubr.bf16.mxu0 0
  %460 = vmatmul.mubr.bf16.gmra.mrb[0].mxu0 %v343
  %v461 = vpop.f32.mrb[0].mxu0
  %v462 = vadd.f32 %v184, %v461
  %v463 = vpop.f32.mrb[0].mxu0
  %v464 = vpop.f32.mrb[0].mxu0
  %v465 = vadd.f32 %v184, %v464
  %v466 = vpop.f32.mrb[0].mxu0
  %467 = vmatprep.mubr.bf16.mxu0 0
  %468 = vmatmul.mubr.bf16.gmra.mrb[0].mxu0 %v346
  %v469 = vpop.f32.mrb[0].mxu0
  %v470 = vadd.f32 %v184, %v469
  %v471 = vpop.f32.mrb[0].mxu0
  %v472 = vpop.f32.mrb[0].mxu0
  %v473 = vadd.f32 %v184, %v472
  %v474 = vpop.f32.mrb[0].mxu0
  %475 = vmatprep.mubr.bf16.mxu0 0
  %476 = vmatmul.mubr.bf16.gmra.mrb[0].mxu0 %v349
  %v477 = vpop.f32.mrb[0].mxu0
  %v478 = vadd.f32 %v184, %v477
  %v479 = vpop.f32.mrb[0].mxu0
  %v480 = vpop.f32.mrb[0].mxu0
  %v481 = vadd.f32 %v184, %v480
  %v482 = vpop.f32.mrb[0].mxu0
  %483 = vmatprep.mubr.bf16.mxu0 0
  %484 = vmatmul.mubr.bf16.gmra.mrb[0].mxu0 %v352
  %v485 = vpop.f32.mrb[0].mxu0
  %v486 = vadd.f32 %v184, %v485
  %v487 = vpop.f32.mrb[0].mxu0
  %v488 = vpop.f32.mrb[0].mxu0
  %v489 = vadd.f32 %v184, %v488
  %v490 = vpop.f32.mrb[0].mxu0
  %491 = vmatprep.mubr.bf16.mxu0 0
  %492 = vmatmul.mubr.bf16.gmra.mrb[0].mxu0 %v355
  %v493 = vpop.f32.mrb[0].mxu0
  %v494 = vadd.f32 %v184, %v493
  %v495 = vpop.f32.mrb[0].mxu0
  %v496 = vpop.f32.mrb[0].mxu0
  %v497 = vadd.f32 %v184, %v496
  %v498 = vpop.f32.mrb[0].mxu0
  %499 = vmatprep.mubr.bf16.mxu0 0
  %500 = vmatmul.mubr.bf16.gmra.mrb[0].mxu0 %v358
  %v501 = vpop.f32.mrb[0].mxu0
  %v502 = vadd.f32 %v184, %v501
  %v503 = vpop.f32.mrb[0].mxu0
  %v504 = vpop.f32.mrb[0].mxu0
  %v505 = vadd.f32 %v184, %v504
  %v506 = vpop.f32.mrb[0].mxu0
  %507 = vmatprep.mubr.bf16.mxu0 0
  %508 = vmatmul.mubr.bf16.gmra.mrb[0].mxu0 %v361
  %v509 = vpop.f32.mrb[0].mxu0
  %v510 = vadd.f32 %v184, %v509
  %v511 = vpop.f32.mrb[0].mxu0
  %v512 = vpop.f32.mrb[0].mxu0
  %v513 = vadd.f32 %v184, %v512
  %v514 = vpop.f32.mrb[0].mxu0
  %515 = vmatprep.mubr.bf16.mxu0 0
  %516 = vmatmul.mubr.bf16.gmra.mrb[0].mxu0 %v364
  %v517 = vpop.f32.mrb[0].mxu0
  %v518 = vadd.f32 %v184, %v517
  %v519 = vpop.f32.mrb[0].mxu0
  %v520 = vpop.f32.mrb[0].mxu0
  %v521 = vadd.f32 %v184, %v520
  %v522 = vpop.f32.mrb[0].mxu0
  %523 = vmatprep.mubr.bf16.mxu0 0
  %524 = vmatmul.mubr.bf16.gmra.mrb[0].mxu0 %v367
  %v525 = vpop.f32.mrb[0].mxu0
  %v526 = vadd.f32 %v184, %v525
  %v527 = vpop.f32.mrb[0].mxu0
  %v528 = vpop.f32.mrb[0].mxu0
  %v529 = vadd.f32 %v184, %v528
  %v530 = vpop.f32.mrb[0].mxu0
  %531 = vmatprep.mubr.bf16.mxu0 0
  %532 = vmatmul.mubr.bf16.gmra.mrb[0].mxu0 %v370
  %v533 = vpop.f32.mrb[0].mxu0
  %v534 = vadd.f32 %v184, %v533
  %v535 = vpop.f32.mrb[0].mxu0
  %v536 = vpop.f32.mrb[0].mxu0
  %v537 = vadd.f32 %v184, %v536
  %v538 = vpop.f32.mrb[0].mxu0
  %539 = vmatprep.mubr.bf16.mxu0 0
  %540 = vmatmul.mubr.bf16.gmra.mrb[0].mxu0 %v373
  %v541 = vpop.f32.mrb[0].mxu0
  %v542 = vadd.f32 %v184, %v541
  %v543 = vpop.f32.mrb[0].mxu0
  %v544 = vpop.f32.mrb[0].mxu0
  %v545 = vadd.f32 %v184, %v544
  %v546 = vpop.f32.mrb[0].mxu0
  %547 = vmatprep.mubr.bf16.mxu0 0
  %548 = vmatmul.mubr.bf16.gmra.mrb[0].mxu0 %v376
  %v549 = vpop.f32.mrb[0].mxu0
  %v550 = vadd.f32 %v184, %v549
  %v551 = vpop.f32.mrb[0].mxu0
  %v552 = vpop.f32.mrb[0].mxu0
  %v553 = vadd.f32 %v184, %v552
  %v554 = vpop.f32.mrb[0].mxu0
  %555 = vmatprep.mubr.bf16.mxu0 0
  %556 = vmatmul.mubr.bf16.gmra.mrb[0].mxu0 %v379
  %v557 = vpop.f32.mrb[0].mxu0
  %v558 = vadd.f32 %v184, %v557
  %v559 = vpop.f32.mrb[0].mxu0
  %v560 = vpop.f32.mrb[0].mxu0
  %v561 = vadd.f32 %v184, %v560
  %v562 = vpop.f32.mrb[0].mxu0
  %563 = vmatprep.mubr.bf16.mxu0 0
  %564 = vmatmul.mubr.bf16.gmra.mrb[0].mxu0 %v382
  %v565 = vpop.f32.mrb[0].mxu0
  %v566 = vadd.f32 %v184, %v565
  %v567 = vpop.f32.mrb[0].mxu0
  %v568 = vpop.f32.mrb[0].mxu0
  %v569 = vadd.f32 %v184, %v568
  %v570 = vpop.f32.mrb[0].mxu0
  %571 = vmatprep.mubr.bf16.mxu0 0
  %572 = vmatmul.mubr.bf16.gmra.mrb[0].mxu0 %v385
  %v573 = vpop.f32.mrb[0].mxu0
  %v574 = vadd.f32 %v184, %v573
  %v575 = vpop.f32.mrb[0].mxu0
  %v576 = vpop.f32.mrb[0].mxu0
  %v577 = vadd.f32 %v184, %v576
  %v578 = vpop.f32.mrb[0].mxu0
  %579 = vmatprep.mubr.bf16.mxu0 0
  %580 = vmatmul.mubr.bf16.gmra.mrb[0].mxu0 %v388
  %v581 = vpop.f32.mrb[0].mxu0
  %v582 = vadd.f32 %v184, %v581
  %v583 = vpop.f32.mrb[0].mxu0
  %v584 = vpop.f32.mrb[0].mxu0
  %v585 = vadd.f32 %v184, %v584
  %v586 = vpop.f32.mrb[0].mxu0
  %587 = vmatprep.mubr.bf16.mxu0 0
  %588 = vmatmul.mubr.bf16.gmra.mrb[0].mxu0 %v391
  %v589 = vpop.f32.mrb[0].mxu0
  %v590 = vadd.f32 %v184, %v589
  %v591 = vpop.f32.mrb[0].mxu0
  %v592 = vpop.f32.mrb[0].mxu0
  %v593 = vadd.f32 %v184, %v592
  %v594 = vpop.f32.mrb[0].mxu0
  %595 = vmatprep.mubr.bf16.mxu0 0
  %596 = vmatmul.mubr.bf16.gmra.mrb[0].mxu0 %v394
  %v597 = vpop.f32.mrb[0].mxu0
  %v598 = vadd.f32 %v184, %v597
  %v599 = vpop.f32.mrb[0].mxu0
  %v600 = vpop.f32.mrb[0].mxu0
  %v601 = vadd.f32 %v184, %v600
  %v602 = vpop.f32.mrb[0].mxu0
  %603 = vmatprep.mubr.bf16.mxu0 0
  %604 = vmatmul.mubr.bf16.gmra.mrb[0].mxu0 %v397
  %v605 = vpop.f32.mrb[0].mxu0
  %v606 = vadd.f32 %v184, %v605
  %v607 = vpop.f32.mrb[0].mxu0
  %v608 = vpop.f32.mrb[0].mxu0
  %v609 = vadd.f32 %v184, %v608
  %v610 = vpop.f32.mrb[0].mxu0
  %611 = vmatprep.mubr.bf16.mxu0 0
  %612 = vmatmul.mubr.bf16.gmra.mrb[0].mxu0 %v400
  %v613 = vpop.f32.mrb[0].mxu0
  %v614 = vadd.f32 %v184, %v613
  %v615 = vpop.f32.mrb[0].mxu0
  %v616 = vpop.f32.mrb[0].mxu0
  %v617 = vadd.f32 %v184, %v616
  %v618 = vpop.f32.mrb[0].mxu0
  %619 = vmatprep.mubr.bf16.mxu0 0
  %620 = vmatmul.mubr.bf16.gmra.mrb[0].mxu0 %v403
  %v621 = vpop.f32.mrb[0].mxu0
  %v622 = vadd.f32 %v184, %v621
  %v623 = vpop.f32.mrb[0].mxu0
  %v624 = vpop.f32.mrb[0].mxu0
  %v625 = vadd.f32 %v184, %v624
  %v626 = vpop.f32.mrb[0].mxu0
  %627 = vmatprep.mubr.bf16.mxu0 0
  %628 = vmatmul.mubr.bf16.gmra.mrb[0].mxu0 %v406
  %v629 = vpop.f32.mrb[0].mxu0
  %v630 = vadd.f32 %v184, %v629
  %v631 = vpop.f32.mrb[0].mxu0
  %v632 = vpop.f32.mrb[0].mxu0
  %v633 = vadd.f32 %v184, %v632
  %v634 = vpop.f32.mrb[0].mxu0
  %635 = vmatprep.mubr.bf16.mxu0 0
  %636 = vmatmul.mubr.bf16.gmra.mrb[0].mxu0 %v409
  %v637 = vpop.f32.mrb[0].mxu0
  %v638 = vadd.f32 %v184, %v637
  %v639 = vpop.f32.mrb[0].mxu0
  %v640 = vpop.f32.mrb[0].mxu0
  %v641 = vadd.f32 %v184, %v640
  %v642 = vpop.f32.mrb[0].mxu0
  %643 = vdwg.mxu0
  %vm644 = vcmask 261120
  %v645 = vsel %vm644, %v446, 0.0
  %v646 = vsel %vm644, %v449, 0.0
  %v647 = vadd.f32 %v645, %v646
  %v648 = vsel %vm644, %v454, 0.0
  %v649 = vadd.f32 %v647, %v648
  %v650 = vsel %vm644, %v457, 0.0
  %v651 = vadd.f32 %v649, %v650
  %v652 = vsel %vm644, %v462, 0.0
  %v653 = vadd.f32 %v651, %v652
  %v654 = vsel %vm644, %v465, 0.0
  %v655 = vadd.f32 %v653, %v654
  %v656 = vsel %vm644, %v470, 0.0
  %v657 = vadd.f32 %v655, %v656
  %v658 = vsel %vm644, %v473, 0.0
  %v659 = vadd.f32 %v657, %v658
  %v660 = vsel %vm644, %v478, 0.0
  %v661 = vadd.f32 %v659, %v660
  %v662 = vsel %vm644, %v481, 0.0
  %v663 = vadd.f32 %v661, %v662
  %v664 = vsel %vm644, %v486, 0.0
  %v665 = vadd.f32 %v663, %v664
  %v666 = vsel %vm644, %v489, 0.0
  %v667 = vadd.f32 %v665, %v666
  %v668 = vsel %vm644, %v494, 0.0
  %v669 = vadd.f32 %v667, %v668
  %v670 = vsel %vm644, %v497, 0.0
  %v671 = vadd.f32 %v669, %v670
  %v672 = vsel %vm644, %v502, 0.0
  %v673 = vadd.f32 %v671, %v672
  %v674 = vsel %vm644, %v505, 0.0
  %v675 = vadd.f32 %v673, %v674
  %v676 = vsel %vm644, %v510, 0.0
  %v677 = vadd.f32 %v675, %v676
  %v678 = vsel %vm644, %v513, 0.0
  %v679 = vadd.f32 %v677, %v678
  %v680 = vsel %vm644, %v518, 0.0
  %v681 = vadd.f32 %v679, %v680
  %v682 = vsel %vm644, %v521, 0.0
  %v683 = vadd.f32 %v681, %v682
  %v684 = vsel %vm644, %v526, 0.0
  %v685 = vadd.f32 %v683, %v684
  %v686 = vsel %vm644, %v529, 0.0
  %v687 = vadd.f32 %v685, %v686
  %v688 = vsel %vm644, %v534, 0.0
  %v689 = vadd.f32 %v687, %v688
  %v690 = vsel %vm644, %v537, 0.0
  %v691 = vadd.f32 %v689, %v690
  %v692 = vsel %vm644, %v542, 0.0
  %v693 = vadd.f32 %v691, %v692
  %v694 = vsel %vm644, %v545, 0.0
  %v695 = vadd.f32 %v693, %v694
  %v696 = vsel %vm644, %v550, 0.0
  %v697 = vadd.f32 %v695, %v696
  %v698 = vsel %vm644, %v553, 0.0
  %v699 = vadd.f32 %v697, %v698
  %v700 = vsel %vm644, %v558, 0.0
  %v701 = vadd.f32 %v699, %v700
  %v702 = vsel %vm644, %v561, 0.0
  %v703 = vadd.f32 %v701, %v702
  %v704 = vsel %vm644, %v566, 0.0
  %v705 = vadd.f32 %v703, %v704
  %v706 = vsel %vm644, %v569, 0.0
  %v707 = vadd.f32 %v705, %v706
  %v708 = vsel %vm644, %v574, 0.0
  %v709 = vadd.f32 %v707, %v708
  %v710 = vsel %vm644, %v577, 0.0
  %v711 = vadd.f32 %v709, %v710
  %v712 = vsel %vm644, %v582, 0.0
  %v713 = vadd.f32 %v711, %v712
  %v714 = vsel %vm644, %v585, 0.0
  %v715 = vadd.f32 %v713, %v714
  %v716 = vsel %vm644, %v590, 0.0
  %v717 = vadd.f32 %v715, %v716
  %v718 = vsel %vm644, %v593, 0.0
  %v719 = vadd.f32 %v717, %v718
  %v720 = vsel %vm644, %v598, 0.0
  %v721 = vadd.f32 %v719, %v720
  %v722 = vsel %vm644, %v601, 0.0
  %v723 = vadd.f32 %v721, %v722
  %v724 = vsel %vm644, %v606, 0.0
  %v725 = vadd.f32 %v723, %v724
  %v726 = vsel %vm644, %v609, 0.0
  %v727 = vadd.f32 %v725, %v726
  %v728 = vsel %vm644, %v614, 0.0
  %v729 = vadd.f32 %v727, %v728
  %v730 = vsel %vm644, %v617, 0.0
  %v731 = vadd.f32 %v729, %v730
  %v732 = vsel %vm644, %v622, 0.0
  %v733 = vadd.f32 %v731, %v732
  %v734 = vsel %vm644, %v625, 0.0
  %v735 = vadd.f32 %v733, %v734
  %v736 = vsel %vm644, %v630, 0.0
  %v737 = vadd.f32 %v735, %v736
  %v738 = vsel %vm644, %v633, 0.0
  %v739 = vadd.f32 %v737, %v738
  %v740 = vsel %vm644, %v638, 0.0
  %v741 = vadd.f32 %v739, %v740
  %v742 = vsel %vm644, %v641, 0.0
  %v743 = vadd.f32 %v741, %v742
  %744 = vadd.xlane.f32.xlu0 %v743
  %v745 = vpop.xlane.xlu0 %744
  %v746 = vrot.slane %v745, 4
  %v747 = vadd.f32 %v745, %v746
  %v748 = vrot.slane %v747, 2
  %v749 = vadd.f32 %v747, %v748
  %v750 = vrot.slane %v749, 1
  %v751 = vadd.f32 %v749, %v750
  %s752 = vtos %v751
  %s753 = smul.f32 %s752, 7.8125e-05
  %v754 = vmul.f32 %v446, %v446
  %v755 = vmul.f32 %v449, %v449
  %v756 = vmul.f32 %v454, %v454
  %v757 = vmul.f32 %v457, %v457
  %v758 = vmul.f32 %v462, %v462
  %v759 = vmul.f32 %v465, %v465
  %v760 = vmul.f32 %v470, %v470
  %v761 = vmul.f32 %v473, %v473
  %v762 = vmul.f32 %v478, %v478
  %v763 = vmul.f32 %v481, %v481
  %v764 = vmul.f32 %v486, %v486
  %v765 = vmul.f32 %v489, %v489
  %v766 = vmul.f32 %v494, %v494
  %v767 = vmul.f32 %v497, %v497
  %v768 = vmul.f32 %v502, %v502
  %v769 = vmul.f32 %v505, %v505
  %v770 = vmul.f32 %v510, %v510
  %v771 = vmul.f32 %v513, %v513
  %v772 = vmul.f32 %v518, %v518
  %v773 = vmul.f32 %v521, %v521
  %v774 = vmul.f32 %v526, %v526
  %v775 = vmul.f32 %v529, %v529
  %v776 = vmul.f32 %v534, %v534
  %v777 = vmul.f32 %v537, %v537
  %v778 = vmul.f32 %v542, %v542
  %v779 = vmul.f32 %v545, %v545
  %v780 = vmul.f32 %v550, %v550
  %v781 = vmul.f32 %v553, %v553
  %v782 = vmul.f32 %v558, %v558
  %v783 = vmul.f32 %v561, %v561
  %v784 = vmul.f32 %v566, %v566
  %v785 = vmul.f32 %v569, %v569
  %v786 = vmul.f32 %v574, %v574
  %v787 = vmul.f32 %v577, %v577
  %v788 = vmul.f32 %v582, %v582
  %v789 = vmul.f32 %v585, %v585
  %v790 = vmul.f32 %v590, %v590
  %v791 = vmul.f32 %v593, %v593
  %v792 = vmul.f32 %v598, %v598
  %v793 = vmul.f32 %v601, %v601
  %v794 = vmul.f32 %v606, %v606
  %v795 = vmul.f32 %v609, %v609
  %v796 = vmul.f32 %v614, %v614
  %v797 = vmul.f32 %v617, %v617
  %v798 = vmul.f32 %v622, %v622
  %v799 = vmul.f32 %v625, %v625
  %v800 = vmul.f32 %v630, %v630
  %v801 = vmul.f32 %v633, %v633
  %v802 = vmul.f32 %v638, %v638
  %v803 = vmul.f32 %v641, %v641
  %v804 = vsel %vm644, %v754, 0.0
  %v805 = vsel %vm644, %v755, 0.0
  %v806 = vadd.f32 %v804, %v805
  %v807 = vsel %vm644, %v756, 0.0
  %v808 = vadd.f32 %v806, %v807
  %v809 = vsel %vm644, %v757, 0.0
  %v810 = vadd.f32 %v808, %v809
  %v811 = vsel %vm644, %v758, 0.0
  %v812 = vadd.f32 %v810, %v811
  %v813 = vsel %vm644, %v759, 0.0
  %v814 = vadd.f32 %v812, %v813
  %v815 = vsel %vm644, %v760, 0.0
  %v816 = vadd.f32 %v814, %v815
  %v817 = vsel %vm644, %v761, 0.0
  %v818 = vadd.f32 %v816, %v817
  %v819 = vsel %vm644, %v762, 0.0
  %v820 = vadd.f32 %v818, %v819
  %v821 = vsel %vm644, %v763, 0.0
  %v822 = vadd.f32 %v820, %v821
  %v823 = vsel %vm644, %v764, 0.0
  %v824 = vadd.f32 %v822, %v823
  %v825 = vsel %vm644, %v765, 0.0
  %v826 = vadd.f32 %v824, %v825
  %v827 = vsel %vm644, %v766, 0.0
  %v828 = vadd.f32 %v826, %v827
  %v829 = vsel %vm644, %v767, 0.0
  %v830 = vadd.f32 %v828, %v829
  %v831 = vsel %vm644, %v768, 0.0
  %v832 = vadd.f32 %v830, %v831
  %v833 = vsel %vm644, %v769, 0.0
  %v834 = vadd.f32 %v832, %v833
  %v835 = vsel %vm644, %v770, 0.0
  %v836 = vadd.f32 %v834, %v835
  %v837 = vsel %vm644, %v771, 0.0
  %v838 = vadd.f32 %v836, %v837
  %v839 = vsel %vm644, %v772, 0.0
  %v840 = vadd.f32 %v838, %v839
  %v841 = vsel %vm644, %v773, 0.0
  %v842 = vadd.f32 %v840, %v841
  %v843 = vsel %vm644, %v774, 0.0
  %v844 = vadd.f32 %v842, %v843
  %v845 = vsel %vm644, %v775, 0.0
  %v846 = vadd.f32 %v844, %v845
  %v847 = vsel %vm644, %v776, 0.0
  %v848 = vadd.f32 %v846, %v847
  %v849 = vsel %vm644, %v777, 0.0
  %v850 = vadd.f32 %v848, %v849
  %v851 = vsel %vm644, %v778, 0.0
  %v852 = vadd.f32 %v850, %v851
  %v853 = vsel %vm644, %v779, 0.0
  %v854 = vadd.f32 %v852, %v853
  %v855 = vsel %vm644, %v780, 0.0
  %v856 = vadd.f32 %v854, %v855
  %v857 = vsel %vm644, %v781, 0.0
  %v858 = vadd.f32 %v856, %v857
  %v859 = vsel %vm644, %v782, 0.0
  %v860 = vadd.f32 %v858, %v859
  %v861 = vsel %vm644, %v783, 0.0
  %v862 = vadd.f32 %v860, %v861
  %v863 = vsel %vm644, %v784, 0.0
  %v864 = vadd.f32 %v862, %v863
  %v865 = vsel %vm644, %v785, 0.0
  %v866 = vadd.f32 %v864, %v865
  %v867 = vsel %vm644, %v786, 0.0
  %v868 = vadd.f32 %v866, %v867
  %v869 = vsel %vm644, %v787, 0.0
  %v870 = vadd.f32 %v868, %v869
  %v871 = vsel %vm644, %v788, 0.0
  %v872 = vadd.f32 %v870, %v871
  %v873 = vsel %vm644, %v789, 0.0
  %v874 = vadd.f32 %v872, %v873
  %v875 = vsel %vm644, %v790, 0.0
  %v876 = vadd.f32 %v874, %v875
  %v877 = vsel %vm644, %v791, 0.0
  %v878 = vadd.f32 %v876, %v877
  %v879 = vsel %vm644, %v792, 0.0
  %v880 = vadd.f32 %v878, %v879
  %v881 = vsel %vm644, %v793, 0.0
  %v882 = vadd.f32 %v880, %v881
  %v883 = vsel %vm644, %v794, 0.0
  %v884 = vadd.f32 %v882, %v883
  %v885 = vsel %vm644, %v795, 0.0
  %v886 = vadd.f32 %v884, %v885
  %v887 = vsel %vm644, %v796, 0.0
  %v888 = vadd.f32 %v886, %v887
  %v889 = vsel %vm644, %v797, 0.0
  %v890 = vadd.f32 %v888, %v889
  %v891 = vsel %vm644, %v798, 0.0
  %v892 = vadd.f32 %v890, %v891
  %v893 = vsel %vm644, %v799, 0.0
  %v894 = vadd.f32 %v892, %v893
  %v895 = vsel %vm644, %v800, 0.0
  %v896 = vadd.f32 %v894, %v895
  %v897 = vsel %vm644, %v801, 0.0
  %v898 = vadd.f32 %v896, %v897
  %v899 = vsel %vm644, %v802, 0.0
  %v900 = vadd.f32 %v898, %v899
  %v901 = vsel %vm644, %v803, 0.0
  %v902 = vadd.f32 %v900, %v901
  %903 = vadd.xlane.f32.xlu0 %v902
  %v904 = vpop.xlane.xlu0 %903
  %v905 = vrot.slane %v904, 4
  %v906 = vadd.f32 %v904, %v905
  %v907 = vrot.slane %v906, 2
  %v908 = vadd.f32 %v906, %v907
  %v909 = vrot.slane %v908, 1
  %v910 = vadd.f32 %v908, %v909
  %s911 = vtos %v910
  %s912 = smul.f32 %s911, 7.8125e-05
  %s913 = smul.f32 %s753, %s753
  %s914 = ssub.f32 %s912, %s913
  %v915 = vstv %s753
  %v916 = vsub.f32 %v446, %v915
  %v917 = vsub.f32 %v449, %v915
  %v918 = vsub.f32 %v454, %v915
  %v919 = vsub.f32 %v457, %v915
  %v920 = vsub.f32 %v462, %v915
  %v921 = vsub.f32 %v465, %v915
  %v922 = vsub.f32 %v470, %v915
  %v923 = vsub.f32 %v473, %v915
  %v924 = vsub.f32 %v478, %v915
  %v925 = vsub.f32 %v481, %v915
  %v926 = vsub.f32 %v486, %v915
  %v927 = vsub.f32 %v489, %v915
  %v928 = vsub.f32 %v494, %v915
  %v929 = vsub.f32 %v497, %v915
  %v930 = vsub.f32 %v502, %v915
  %v931 = vsub.f32 %v505, %v915
  %v932 = vsub.f32 %v510, %v915
  %v933 = vsub.f32 %v513, %v915
  %v934 = vsub.f32 %v518, %v915
  %v935 = vsub.f32 %v521, %v915
  %v936 = vsub.f32 %v526, %v915
  %v937 = vsub.f32 %v529, %v915
  %v938 = vsub.f32 %v534, %v915
  %v939 = vsub.f32 %v537, %v915
  %v940 = vsub.f32 %v542, %v915
  %v941 = vsub.f32 %v545, %v915
  %v942 = vsub.f32 %v550, %v915
  %v943 = vsub.f32 %v553, %v915
  %v944 = vsub.f32 %v558, %v915
  %v945 = vsub.f32 %v561, %v915
  %v946 = vsub.f32 %v566, %v915
  %v947 = vsub.f32 %v569, %v915
  %v948 = vsub.f32 %v574, %v915
  %v949 = vsub.f32 %v577, %v915
  %v950 = vsub.f32 %v582, %v915
  %v951 = vsub.f32 %v585, %v915
  %v952 = vsub.f32 %v590, %v915
  %v953 = vsub.f32 %v593, %v915
  %v954 = vsub.f32 %v598, %v915
  %v955 = vsub.f32 %v601, %v915
  %v956 = vsub.f32 %v606, %v915
  %v957 = vsub.f32 %v609, %v915
  %v958 = vsub.f32 %v614, %v915
  %v959 = vsub.f32 %v617, %v915
  %v960 = vsub.f32 %v622, %v915
  %v961 = vsub.f32 %v625, %v915
  %v962 = vsub.f32 %v630, %v915
  %v963 = vsub.f32 %v633, %v915
  %v964 = vsub.f32 %v638, %v915
  %v965 = vsub.f32 %v641, %v915
  %s966 = sadd.f32 %s914, 1e-05
  %v967 = vstv %s966
  %v968 = vrsqrt.pop %v967
  %s969 = vtos %v968
  %v970 = vstv %s969
  %v971 = vmul.f32 %v916, %v970
  %v972 = vmul.f32 %v917, %v970
  %v973 = vmul.f32 %v918, %v970
  %v974 = vmul.f32 %v919, %v970
  %v975 = vmul.f32 %v920, %v970
  %v976 = vmul.f32 %v921, %v970
  %v977 = vmul.f32 %v922, %v970
  %v978 = vmul.f32 %v923, %v970
  %v979 = vmul.f32 %v924, %v970
  %v980 = vmul.f32 %v925, %v970
  %v981 = vmul.f32 %v926, %v970
  %v982 = vmul.f32 %v927, %v970
  %v983 = vmul.f32 %v928, %v970
  %v984 = vmul.f32 %v929, %v970
  %v985 = vmul.f32 %v930, %v970
  %v986 = vmul.f32 %v931, %v970
  %v987 = vmul.f32 %v932, %v970
  %v988 = vmul.f32 %v933, %v970
  %v989 = vmul.f32 %v934, %v970
  %v990 = vmul.f32 %v935, %v970
  %v991 = vmul.f32 %v936, %v970
  %v992 = vmul.f32 %v937, %v970
  %v993 = vmul.f32 %v938, %v970
  %v994 = vmul.f32 %v939, %v970
  %v995 = vmul.f32 %v940, %v970
  %v996 = vmul.f32 %v941, %v970
  %v997 = vmul.f32 %v942, %v970
  %v998 = vmul.f32 %v943, %v970
  %v999 = vmul.f32 %v944, %v970
  %v1000 = vmul.f32 %v945, %v970
  %v1001 = vmul.f32 %v946, %v970
  %v1002 = vmul.f32 %v947, %v970
  %v1003 = vmul.f32 %v948, %v970
  %v1004 = vmul.f32 %v949, %v970
  %v1005 = vmul.f32 %v950, %v970
  %v1006 = vmul.f32 %v951, %v970
  %v1007 = vmul.f32 %v952, %v970
  %v1008 = vmul.f32 %v953, %v970
  %v1009 = vmul.f32 %v954, %v970
  %v1010 = vmul.f32 %v955, %v970
  %v1011 = vmul.f32 %v956, %v970
  %v1012 = vmul.f32 %v957, %v970
  %v1013 = vmul.f32 %v958, %v970
  %v1014 = vmul.f32 %v959, %v970
  %v1015 = vmul.f32 %v960, %v970
  %v1016 = vmul.f32 %v961, %v970
  %v1017 = vmul.f32 %v962, %v970
  %v1018 = vmul.f32 %v963, %v970
  %v1019 = vmul.f32 %v964, %v970
  %v1020 = vmul.f32 %v965, %v970
  %v1021 = vmul.f32 %v971, %v30
  %v1022 = vmul.f32 %v972, %v31
  %v1023 = vmul.f32 %v973, %v32
  %v1024 = vmul.f32 %v974, %v33
  %v1025 = vmul.f32 %v975, %v34
  %v1026 = vmul.f32 %v976, %v35
  %v1027 = vmul.f32 %v977, %v36
  %v1028 = vmul.f32 %v978, %v37
  %v1029 = vmul.f32 %v979, %v38
  %v1030 = vmul.f32 %v980, %v39
  %v1031 = vmul.f32 %v981, %v40
  %v1032 = vmul.f32 %v982, %v41
  %v1033 = vmul.f32 %v983, %v42
  %v1034 = vmul.f32 %v984, %v43
  %v1035 = vmul.f32 %v985, %v44
  %v1036 = vmul.f32 %v986, %v45
  %v1037 = vmul.f32 %v987, %v46
  %v1038 = vmul.f32 %v988, %v47
  %v1039 = vmul.f32 %v989, %v48
  %v1040 = vmul.f32 %v990, %v49
  %v1041 = vmul.f32 %v991, %v50
  %v1042 = vmul.f32 %v992, %v51
  %v1043 = vmul.f32 %v993, %v52
  %v1044 = vmul.f32 %v994, %v53
  %v1045 = vmul.f32 %v995, %v54
  %v1046 = vmul.f32 %v996, %v55
  %v1047 = vmul.f32 %v997, %v56
  %v1048 = vmul.f32 %v998, %v57
  %v1049 = vmul.f32 %v999, %v58
  %v1050 = vmul.f32 %v1000, %v59
  %v1051 = vmul.f32 %v1001, %v60
  %v1052 = vmul.f32 %v1002, %v61
  %v1053 = vmul.f32 %v1003, %v62
  %v1054 = vmul.f32 %v1004, %v63
  %v1055 = vmul.f32 %v1005, %v64
  %v1056 = vmul.f32 %v1006, %v65
  %v1057 = vmul.f32 %v1007, %v66
  %v1058 = vmul.f32 %v1008, %v67
  %v1059 = vmul.f32 %v1009, %v68
  %v1060 = vmul.f32 %v1010, %v69
  %v1061 = vmul.f32 %v1011, %v70
  %v1062 = vmul.f32 %v1012, %v71
  %v1063 = vmul.f32 %v1013, %v72
  %v1064 = vmul.f32 %v1014, %v73
  %v1065 = vmul.f32 %v1015, %v74
  %v1066 = vmul.f32 %v1016, %v75
  %v1067 = vmul.f32 %v1017, %v76
  %v1068 = vmul.f32 %v1018, %v77
  %v1069 = vmul.f32 %v1019, %v78
  %v1070 = vmul.f32 %v1020, %v79
  %v1071 = vadd.f32 %v1021, %v80
  %v1072 = vadd.f32 %v1022, %v81
  %v1073 = vadd.f32 %v1023, %v82
  %v1074 = vadd.f32 %v1024, %v83
  %v1075 = vadd.f32 %v1025, %v84
  %v1076 = vadd.f32 %v1026, %v85
  %v1077 = vadd.f32 %v1027, %v86
  %v1078 = vadd.f32 %v1028, %v87
  %v1079 = vadd.f32 %v1029, %v88
  %v1080 = vadd.f32 %v1030, %v89
  %v1081 = vadd.f32 %v1031, %v90
  %v1082 = vadd.f32 %v1032, %v91
  %v1083 = vadd.f32 %v1033, %v92
  %v1084 = vadd.f32 %v1034, %v93
  %v1085 = vadd.f32 %v1035, %v94
  %v1086 = vadd.f32 %v1036, %v95
  %v1087 = vadd.f32 %v1037, %v96
  %v1088 = vadd.f32 %v1038, %v97
  %v1089 = vadd.f32 %v1039, %v98
  %v1090 = vadd.f32 %v1040, %v99
  %v1091 = vadd.f32 %v1041, %v100
  %v1092 = vadd.f32 %v1042, %v101
  %v1093 = vadd.f32 %v1043, %v102
  %v1094 = vadd.f32 %v1044, %v103
  %v1095 = vadd.f32 %v1045, %v104
  %v1096 = vadd.f32 %v1046, %v105
  %v1097 = vadd.f32 %v1047, %v106
  %v1098 = vadd.f32 %v1048, %v107
  %v1099 = vadd.f32 %v1049, %v108
  %v1100 = vadd.f32 %v1050, %v109
  %v1101 = vadd.f32 %v1051, %v110
  %v1102 = vadd.f32 %v1052, %v111
  %v1103 = vadd.f32 %v1053, %v112
  %v1104 = vadd.f32 %v1054, %v113
  %v1105 = vadd.f32 %v1055, %v114
  %v1106 = vadd.f32 %v1056, %v115
  %v1107 = vadd.f32 %v1057, %v116
  %v1108 = vadd.f32 %v1058, %v117
  %v1109 = vadd.f32 %v1059, %v118
  %v1110 = vadd.f32 %v1060, %v119
  %v1111 = vadd.f32 %v1061, %v120
  %v1112 = vadd.f32 %v1062, %v121
  %v1113 = vadd.f32 %v1063, %v122
  %v1114 = vadd.f32 %v1064, %v123
  %v1115 = vadd.f32 %v1065, %v124
  %v1116 = vadd.f32 %v1066, %v125
  %v1117 = vadd.f32 %v1067, %v126
  %v1118 = vadd.f32 %v1068, %v127
  %v1119 = vadd.f32 %v1069, %v128
  %v1120 = vadd.f32 %v1070, %v129
  %v1121 = vmax.f32 %v1071, 0.0
  %v1122 = vmax.f32 %v1072, 0.0
  %v1123 = vmax.f32 %v1073, 0.0
  %v1124 = vmax.f32 %v1074, 0.0
  %v1125 = vmax.f32 %v1075, 0.0
  %v1126 = vmax.f32 %v1076, 0.0
  %v1127 = vmax.f32 %v1077, 0.0
  %v1128 = vmax.f32 %v1078, 0.0
  %v1129 = vmax.f32 %v1079, 0.0
  %v1130 = vmax.f32 %v1080, 0.0
  %v1131 = vmax.f32 %v1081, 0.0
  %v1132 = vmax.f32 %v1082, 0.0
  %v1133 = vmax.f32 %v1083, 0.0
  %v1134 = vmax.f32 %v1084, 0.0
  %v1135 = vmax.f32 %v1085, 0.0
  %v1136 = vmax.f32 %v1086, 0.0
  %v1137 = vmax.f32 %v1087, 0.0
  %v1138 = vmax.f32 %v1088, 0.0
  %v1139 = vmax.f32 %v1089, 0.0
  %v1140 = vmax.f32 %v1090, 0.0
  %v1141 = vmax.f32 %v1091, 0.0
  %v1142 = vmax.f32 %v1092, 0.0
  %v1143 = vmax.f32 %v1093, 0.0
  %v1144 = vmax.f32 %v1094, 0.0
  %v1145 = vmax.f32 %v1095, 0.0
  %v1146 = vmax.f32 %v1096, 0.0
  %v1147 = vmax.f32 %v1097, 0.0
  %v1148 = vmax.f32 %v1098, 0.0
  %v1149 = vmax.f32 %v1099, 0.0
  %v1150 = vmax.f32 %v1100, 0.0
  %v1151 = vmax.f32 %v1101, 0.0
  %v1152 = vmax.f32 %v1102, 0.0
  %v1153 = vmax.f32 %v1103, 0.0
  %v1154 = vmax.f32 %v1104, 0.0
  %v1155 = vmax.f32 %v1105, 0.0
  %v1156 = vmax.f32 %v1106, 0.0
  %v1157 = vmax.f32 %v1107, 0.0
  %v1158 = vmax.f32 %v1108, 0.0
  %v1159 = vmax.f32 %v1109, 0.0
  %v1160 = vmax.f32 %v1110, 0.0
  %v1161 = vmax.f32 %v1111, 0.0
  %v1162 = vmax.f32 %v1112, 0.0
  %v1163 = vmax.f32 %v1113, 0.0
  %v1164 = vmax.f32 %v1114, 0.0
  %v1165 = vmax.f32 %v1115, 0.0
  %v1166 = vmax.f32 %v1116, 0.0
  %v1167 = vmax.f32 %v1117, 0.0
  %v1168 = vmax.f32 %v1118, 0.0
  %v1169 = vmax.f32 %v1119, 0.0
  %v1170 = vmax.f32 %v1120, 0.0
  %v1171 = vpack.c.bf16 %v1122, %v1121
  %v1172 = vpack.c.bf16 %v1124, %v1123
  %v1173 = vpack.c.bf16 %v1126, %v1125
  %v1174 = vpack.c.bf16 %v1128, %v1127
  %v1175 = vpack.c.bf16 %v1130, %v1129
  %v1176 = vpack.c.bf16 %v1132, %v1131
  %v1177 = vpack.c.bf16 %v1134, %v1133
  %v1178 = vpack.c.bf16 %v1136, %v1135
  %v1179 = vpack.c.bf16 %v1138, %v1137
  %v1180 = vpack.c.bf16 %v1140, %v1139
  %v1181 = vpack.c.bf16 %v1142, %v1141
  %v1182 = vpack.c.bf16 %v1144, %v1143
  %v1183 = vpack.c.bf16 %v1146, %v1145
  %v1184 = vpack.c.bf16 %v1148, %v1147
  %v1185 = vpack.c.bf16 %v1150, %v1149
  %v1186 = vpack.c.bf16 %v1152, %v1151
  %v1187 = vpack.c.bf16 %v1154, %v1153
  %v1188 = vpack.c.bf16 %v1156, %v1155
  %v1189 = vpack.c.bf16 %v1158, %v1157
  %v1190 = vpack.c.bf16 %v1160, %v1159
  %v1191 = vpack.c.bf16 %v1162, %v1161
  %v1192 = vpack.c.bf16 %v1164, %v1163
  %v1193 = vpack.c.bf16 %v1166, %v1165
  %v1194 = vpack.c.bf16 %v1168, %v1167
  %v1195 = vpack.c.bf16 %v1170, %v1169
  %v1221 = vunpack.c.l.b16 %v1171
  %v1222 = vunpack.c.h.b16 %v1171
  %v1223 = vunpack.c.l.b16 %v1172
  %v1224 = vunpack.c.h.b16 %v1172
  %v1225 = vunpack.c.l.b16 %v1173
  %v1226 = vunpack.c.h.b16 %v1173
  %v1227 = vunpack.c.l.b16 %v1174
  %v1228 = vunpack.c.h.b16 %v1174
  %v1229 = vunpack.c.l.b16 %v1175
  %v1230 = vunpack.c.h.b16 %v1175
  %v1231 = vunpack.c.l.b16 %v1176
  %v1232 = vunpack.c.h.b16 %v1176
  %v1233 = vunpack.c.l.b16 %v1177
  %v1234 = vunpack.c.h.b16 %v1177
  %v1235 = vunpack.c.l.b16 %v1178
  %v1236 = vunpack.c.h.b16 %v1178
  %v1237 = vunpack.c.l.b16 %v1179
  %v1238 = vunpack.c.h.b16 %v1179
  %v1239 = vunpack.c.l.b16 %v1180
  %v1240 = vunpack.c.h.b16 %v1180
  %v1241 = vunpack.c.l.b16 %v1181
  %v1242 = vunpack.c.h.b16 %v1181
  %v1243 = vunpack.c.l.b16 %v1182
  %v1244 = vunpack.c.h.b16 %v1182
  %v1245 = vunpack.c.l.b16 %v1183
  %v1246 = vunpack.c.h.b16 %v1183
  %v1247 = vunpack.c.l.b16 %v1184
  %v1248 = vunpack.c.h.b16 %v1184
  %v1249 = vunpack.c.l.b16 %v1185
  %v1250 = vunpack.c.h.b16 %v1185
  %v1251 = vunpack.c.l.b16 %v1186
  %v1252 = vunpack.c.h.b16 %v1186
  %v1253 = vunpack.c.l.b16 %v1187
  %v1254 = vunpack.c.h.b16 %v1187
  %v1255 = vunpack.c.l.b16 %v1188
  %v1256 = vunpack.c.h.b16 %v1188
  %v1257 = vunpack.c.l.b16 %v1189
  %v1258 = vunpack.c.h.b16 %v1189
  %v1259 = vunpack.c.l.b16 %v1190
  %v1260 = vunpack.c.h.b16 %v1190
  %v1261 = vunpack.c.l.b16 %v1191
  %v1262 = vunpack.c.h.b16 %v1191
  %v1263 = vunpack.c.l.b16 %v1192
  %v1264 = vunpack.c.h.b16 %v1192
  %v1265 = vunpack.c.l.b16 %v1193
  %v1266 = vunpack.c.h.b16 %v1193
  %v1267 = vunpack.c.l.b16 %v1194
  %v1268 = vunpack.c.h.b16 %v1194
  %v1269 = vunpack.c.l.b16 %v1195
  %v1270 = vunpack.c.h.b16 %v1195
  %v1271 = vpack.c.b16 %v1221, %v1221
  %v1272 = vpack.c.b16 %v1222, %v1222
  %v1273 = vpack.c.b16 %v1223, %v1223
  %v1274 = vpack.c.b16 %v1224, %v1224
  %v1275 = vpack.c.b16 %v1225, %v1225
  %v1276 = vpack.c.b16 %v1226, %v1226
  %v1277 = vpack.c.b16 %v1227, %v1227
  %v1278 = vpack.c.b16 %v1228, %v1228
  %v1279 = vpack.c.b16 %v1229, %v1229
  %v1280 = vpack.c.b16 %v1230, %v1230
  %v1281 = vpack.c.b16 %v1231, %v1231
  %v1282 = vpack.c.b16 %v1232, %v1232
  %v1283 = vpack.c.b16 %v1233, %v1233
  %v1284 = vpack.c.b16 %v1234, %v1234
  %v1285 = vpack.c.b16 %v1235, %v1235
  %v1286 = vpack.c.b16 %v1236, %v1236
  %v1287 = vpack.c.b16 %v1237, %v1237
  %v1288 = vpack.c.b16 %v1238, %v1238
  %v1289 = vpack.c.b16 %v1239, %v1239
  %v1290 = vpack.c.b16 %v1240, %v1240
  %v1291 = vpack.c.b16 %v1241, %v1241
  %v1292 = vpack.c.b16 %v1242, %v1242
  %v1293 = vpack.c.b16 %v1243, %v1243
  %v1294 = vpack.c.b16 %v1244, %v1244
  %v1295 = vpack.c.b16 %v1245, %v1245
  %v1296 = vpack.c.b16 %v1246, %v1246
  %v1297 = vpack.c.b16 %v1247, %v1247
  %v1298 = vpack.c.b16 %v1248, %v1248
  %v1299 = vpack.c.b16 %v1249, %v1249
  %v1300 = vpack.c.b16 %v1250, %v1250
  %v1301 = vpack.c.b16 %v1251, %v1251
  %v1302 = vpack.c.b16 %v1252, %v1252
  %v1303 = vpack.c.b16 %v1253, %v1253
  %v1304 = vpack.c.b16 %v1254, %v1254
  %v1305 = vpack.c.b16 %v1255, %v1255
  %v1306 = vpack.c.b16 %v1256, %v1256
  %v1307 = vpack.c.b16 %v1257, %v1257
  %v1308 = vpack.c.b16 %v1258, %v1258
  %v1309 = vpack.c.b16 %v1259, %v1259
  %v1310 = vpack.c.b16 %v1260, %v1260
  %v1311 = vpack.c.b16 %v1261, %v1261
  %v1312 = vpack.c.b16 %v1262, %v1262
  %v1313 = vpack.c.b16 %v1263, %v1263
  %v1314 = vpack.c.b16 %v1264, %v1264
  %v1315 = vpack.c.b16 %v1265, %v1265
  %v1316 = vpack.c.b16 %v1266, %v1266
  %v1317 = vpack.c.b16 %v1267, %v1267
  %v1318 = vpack.c.b16 %v1268, %v1268
  %v1319 = vpack.c.b16 %v1269, %v1269
  %v1320 = vpack.c.b16 %v1270, %v1270
  %vm1371 = vcmask 257024
  %1372 = vst.msk [vmem:[%s5] sm:$0xf] %vm1371, %v1271
  %1373 = vst.msk [vmem:[%s5 + $0x4] sm:$0xf] %vm1371, %v1272
  %1374 = vst.msk [vmem:[%s5 + $0x8] sm:$0xf] %vm1371, %v1273
  %1375 = vst.msk [vmem:[%s5 + $0xc] sm:$0xf] %vm1371, %v1274
  %1376 = vst.msk [vmem:[%s5 + $0x10] sm:$0xf] %vm1371, %v1275
  %1377 = vst.msk [vmem:[%s5 + $0x14] sm:$0xf] %vm1371, %v1276
  %1378 = vst.msk [vmem:[%s5 + $0x18] sm:$0xf] %vm1371, %v1277
  %1379 = vst.msk [vmem:[%s5 + $0x1c] sm:$0xf] %vm1371, %v1278
  %1380 = vst.msk [vmem:[%s5 + $0x20] sm:$0xf] %vm1371, %v1279
  %1381 = vst.msk [vmem:[%s5 + $0x24] sm:$0xf] %vm1371, %v1280
  %1382 = vst.msk [vmem:[%s5 + $0x28] sm:$0xf] %vm1371, %v1281
  %1383 = vst.msk [vmem:[%s5 + $0x2c] sm:$0xf] %vm1371, %v1282
  %1384 = vst.msk [vmem:[%s5 + $0x30] sm:$0xf] %vm1371, %v1283
  %1385 = vst.msk [vmem:[%s5 + $0x34] sm:$0xf] %vm1371, %v1284
  %1386 = vst.msk [vmem:[%s5 + $0x38] sm:$0xf] %vm1371, %v1285
  %1387 = vst.msk [vmem:[%s5 + $0x3c] sm:$0xf] %vm1371, %v1286
  %1388 = vst.msk [vmem:[%s5 + $0x40] sm:$0xf] %vm1371, %v1287
  %1389 = vst.msk [vmem:[%s5 + $0x44] sm:$0xf] %vm1371, %v1288
  %1390 = vst.msk [vmem:[%s5 + $0x48] sm:$0xf] %vm1371, %v1289
  %1391 = vst.msk [vmem:[%s5 + $0x4c] sm:$0xf] %vm1371, %v1290
  %1392 = vst.msk [vmem:[%s5 + $0x50] sm:$0xf] %vm1371, %v1291
  %1393 = vst.msk [vmem:[%s5 + $0x54] sm:$0xf] %vm1371, %v1292
  %1394 = vst.msk [vmem:[%s5 + $0x58] sm:$0xf] %vm1371, %v1293
  %1395 = vst.msk [vmem:[%s5 + $0x5c] sm:$0xf] %vm1371, %v1294
  %1396 = vst.msk [vmem:[%s5 + $0x60] sm:$0xf] %vm1371, %v1295
  %1397 = vst.msk [vmem:[%s5 + $0x64] sm:$0xf] %vm1371, %v1296
  %1398 = vst.msk [vmem:[%s5 + $0x68] sm:$0xf] %vm1371, %v1297
  %1399 = vst.msk [vmem:[%s5 + $0x6c] sm:$0xf] %vm1371, %v1298
  %1400 = vst.msk [vmem:[%s5 + $0x70] sm:$0xf] %vm1371, %v1299
  %1401 = vst.msk [vmem:[%s5 + $0x74] sm:$0xf] %vm1371, %v1300
  %1402 = vst.msk [vmem:[%s5 + $0x78] sm:$0xf] %vm1371, %v1301
  %1403 = vst.msk [vmem:[%s5 + $0x7c] sm:$0xf] %vm1371, %v1302
  %1404 = vst.msk [vmem:[%s5 + $0x80] sm:$0xf] %vm1371, %v1303
  %1405 = vst.msk [vmem:[%s5 + $0x84] sm:$0xf] %vm1371, %v1304
  %1406 = vst.msk [vmem:[%s5 + $0x88] sm:$0xf] %vm1371, %v1305
  %1407 = vst.msk [vmem:[%s5 + $0x8c] sm:$0xf] %vm1371, %v1306
  %1408 = vst.msk [vmem:[%s5 + $0x90] sm:$0xf] %vm1371, %v1307
  %1409 = vst.msk [vmem:[%s5 + $0x94] sm:$0xf] %vm1371, %v1308
  %1410 = vst.msk [vmem:[%s5 + $0x98] sm:$0xf] %vm1371, %v1309
  %1411 = vst.msk [vmem:[%s5 + $0x9c] sm:$0xf] %vm1371, %v1310
  %1412 = vst.msk [vmem:[%s5 + $0xa0] sm:$0xf] %vm1371, %v1311
  %1413 = vst.msk [vmem:[%s5 + $0xa4] sm:$0xf] %vm1371, %v1312
  %1414 = vst.msk [vmem:[%s5 + $0xa8] sm:$0xf] %vm1371, %v1313
  %1415 = vst.msk [vmem:[%s5 + $0xac] sm:$0xf] %vm1371, %v1314
  %1416 = vst.msk [vmem:[%s5 + $0xb0] sm:$0xf] %vm1371, %v1315
  %1417 = vst.msk [vmem:[%s5 + $0xb4] sm:$0xf] %vm1371, %v1316
  %1418 = vst.msk [vmem:[%s5 + $0xb8] sm:$0xf] %vm1371, %v1317
  %1419 = vst.msk [vmem:[%s5 + $0xbc] sm:$0xf] %vm1371, %v1318
  %1420 = vst.msk [vmem:[%s5 + $0xc0] sm:$0xf] %vm1371, %v1319
  %1421 = vst.msk [vmem:[%s5 + $0xc4] sm:$0xf] %vm1371, %v1320
  %s1422 = scalar_lea.vmem %s0, 200
  %v1423 = vld [vmem:[%s1422] sm:$0xf]
  %v1424 = vld [vmem:[%s1422 + $0x4] sm:$0xf]
  %v1425 = vld [vmem:[%s1422 + $0x8] sm:$0xf]
  %v1426 = vld [vmem:[%s1422 + $0xc] sm:$0xf]
  %v1427 = vld [vmem:[%s1422 + $0x10] sm:$0xf]
  %v1428 = vld [vmem:[%s1422 + $0x14] sm:$0xf]
  %v1429 = vld [vmem:[%s1422 + $0x18] sm:$0xf]
  %v1430 = vld [vmem:[%s1422 + $0x1c] sm:$0xf]
  %v1431 = vld [vmem:[%s1422 + $0x20] sm:$0xf]
  %v1432 = vld [vmem:[%s1422 + $0x24] sm:$0xf]
  %v1433 = vld [vmem:[%s1422 + $0x28] sm:$0xf]
  %v1434 = vld [vmem:[%s1422 + $0x2c] sm:$0xf]
  %v1435 = vld [vmem:[%s1422 + $0x30] sm:$0xf]
  %v1436 = vld [vmem:[%s1422 + $0x34] sm:$0xf]
  %v1437 = vld [vmem:[%s1422 + $0x38] sm:$0xf]
  %v1438 = vld [vmem:[%s1422 + $0x3c] sm:$0xf]
  %v1439 = vld [vmem:[%s1422 + $0x40] sm:$0xf]
  %v1440 = vld [vmem:[%s1422 + $0x44] sm:$0xf]
  %v1441 = vld [vmem:[%s1422 + $0x48] sm:$0xf]
  %v1442 = vld [vmem:[%s1422 + $0x4c] sm:$0xf]
  %v1443 = vld [vmem:[%s1422 + $0x50] sm:$0xf]
  %v1444 = vld [vmem:[%s1422 + $0x54] sm:$0xf]
  %v1445 = vld [vmem:[%s1422 + $0x58] sm:$0xf]
  %v1446 = vld [vmem:[%s1422 + $0x5c] sm:$0xf]
  %v1447 = vld [vmem:[%s1422 + $0x60] sm:$0xf]
  %v1448 = vld [vmem:[%s1422 + $0x64] sm:$0xf]
  %v1449 = vld [vmem:[%s1422 + $0x68] sm:$0xf]
  %v1450 = vld [vmem:[%s1422 + $0x6c] sm:$0xf]
  %v1451 = vld [vmem:[%s1422 + $0x70] sm:$0xf]
  %v1452 = vld [vmem:[%s1422 + $0x74] sm:$0xf]
  %v1453 = vld [vmem:[%s1422 + $0x78] sm:$0xf]
  %v1454 = vld [vmem:[%s1422 + $0x7c] sm:$0xf]
  %v1455 = vld [vmem:[%s1422 + $0x80] sm:$0xf]
  %v1456 = vld [vmem:[%s1422 + $0x84] sm:$0xf]
  %v1457 = vld [vmem:[%s1422 + $0x88] sm:$0xf]
  %v1458 = vld [vmem:[%s1422 + $0x8c] sm:$0xf]
  %v1459 = vld [vmem:[%s1422 + $0x90] sm:$0xf]
  %v1460 = vld [vmem:[%s1422 + $0x94] sm:$0xf]
  %v1461 = vld [vmem:[%s1422 + $0x98] sm:$0xf]
  %v1462 = vld [vmem:[%s1422 + $0x9c] sm:$0xf]
  %v1463 = vld [vmem:[%s1422 + $0xa0] sm:$0xf]
  %v1464 = vld [vmem:[%s1422 + $0xa4] sm:$0xf]
  %v1465 = vld [vmem:[%s1422 + $0xa8] sm:$0xf]
  %v1466 = vld [vmem:[%s1422 + $0xac] sm:$0xf]
  %v1467 = vld [vmem:[%s1422 + $0xb0] sm:$0xf]
  %v1468 = vld [vmem:[%s1422 + $0xb4] sm:$0xf]
  %v1469 = vld [vmem:[%s1422 + $0xb8] sm:$0xf]
  %v1470 = vld [vmem:[%s1422 + $0xbc] sm:$0xf]
  %v1471 = vld [vmem:[%s1422 + $0xc0] sm:$0xf]
  %v1472 = vld [vmem:[%s1422 + $0xc4] sm:$0xf]
  %v1523 = vunpack.c.l.b16 %v1423
  %v1524 = vunpack.c.l.b16 %v1424
  %v1525 = vunpack.c.l.b16 %v1425
  %v1526 = vunpack.c.l.b16 %v1426
  %v1527 = vunpack.c.l.b16 %v1427
  %v1528 = vunpack.c.l.b16 %v1428
  %v1529 = vunpack.c.l.b16 %v1429
  %v1530 = vunpack.c.l.b16 %v1430
  %v1531 = vunpack.c.l.b16 %v1431
  %v1532 = vunpack.c.l.b16 %v1432
  %v1533 = vunpack.c.l.b16 %v1433
  %v1534 = vunpack.c.l.b16 %v1434
  %v1535 = vunpack.c.l.b16 %v1435
  %v1536 = vunpack.c.l.b16 %v1436
  %v1537 = vunpack.c.l.b16 %v1437
  %v1538 = vunpack.c.l.b16 %v1438
  %v1539 = vunpack.c.l.b16 %v1439
  %v1540 = vunpack.c.l.b16 %v1440
  %v1541 = vunpack.c.l.b16 %v1441
  %v1542 = vunpack.c.l.b16 %v1442
  %v1543 = vunpack.c.l.b16 %v1443
  %v1544 = vunpack.c.l.b16 %v1444
  %v1545 = vunpack.c.l.b16 %v1445
  %v1546 = vunpack.c.l.b16 %v1446
  %v1547 = vunpack.c.l.b16 %v1447
  %v1548 = vunpack.c.l.b16 %v1448
  %v1549 = vunpack.c.l.b16 %v1449
  %v1550 = vunpack.c.l.b16 %v1450
  %v1551 = vunpack.c.l.b16 %v1451
  %v1552 = vunpack.c.l.b16 %v1452
  %v1553 = vunpack.c.l.b16 %v1453
  %v1554 = vunpack.c.l.b16 %v1454
  %v1555 = vunpack.c.l.b16 %v1455
  %v1556 = vunpack.c.l.b16 %v1456
  %v1557 = vunpack.c.l.b16 %v1457
  %v1558 = vunpack.c.l.b16 %v1458
  %v1559 = vunpack.c.l.b16 %v1459
  %v1560 = vunpack.c.l.b16 %v1460
  %v1561 = vunpack.c.l.b16 %v1461
  %v1562 = vunpack.c.l.b16 %v1462
  %v1563 = vunpack.c.l.b16 %v1463
  %v1564 = vunpack.c.l.b16 %v1464
  %v1565 = vunpack.c.l.b16 %v1465
  %v1566 = vunpack.c.l.b16 %v1466
  %v1567 = vunpack.c.l.b16 %v1467
  %v1568 = vunpack.c.l.b16 %v1468
  %v1569 = vunpack.c.l.b16 %v1469
  %v1570 = vunpack.c.l.b16 %v1470
  %v1571 = vunpack.c.l.b16 %v1471
  %v1572 = vunpack.c.l.b16 %v1472
  %v1573 = vpack.c.b16 %v1524, %v1523
  %v1574 = vpack.c.b16 %v1526, %v1525
  %v1575 = vpack.c.b16 %v1528, %v1527
  %v1576 = vpack.c.b16 %v1530, %v1529
  %v1577 = vpack.c.b16 %v1532, %v1531
  %v1578 = vpack.c.b16 %v1534, %v1533
  %v1579 = vpack.c.b16 %v1536, %v1535
  %v1580 = vpack.c.b16 %v1538, %v1537
  %v1581 = vpack.c.b16 %v1540, %v1539
  %v1582 = vpack.c.b16 %v1542, %v1541
  %v1583 = vpack.c.b16 %v1544, %v1543
  %v1584 = vpack.c.b16 %v1546, %v1545
  %v1585 = vpack.c.b16 %v1548, %v1547
  %v1586 = vpack.c.b16 %v1550, %v1549
  %v1587 = vpack.c.b16 %v1552, %v1551
  %v1588 = vpack.c.b16 %v1554, %v1553
  %v1589 = vpack.c.b16 %v1556, %v1555
  %v1590 = vpack.c.b16 %v1558, %v1557
  %v1591 = vpack.c.b16 %v1560, %v1559
  %v1592 = vpack.c.b16 %v1562, %v1561
  %v1593 = vpack.c.b16 %v1564, %v1563
  %v1594 = vpack.c.b16 %v1566, %v1565
  %v1595 = vpack.c.b16 %v1568, %v1567
  %v1596 = vpack.c.b16 %v1570, %v1569
  %v1597 = vpack.c.b16 %v1572, %v1571
  %v1599 = vsel %vm335, %v1573, 0
  %v1602 = vsel %vm335, %v1574, 0
  %v1605 = vsel %vm335, %v1575, 0
  %v1608 = vsel %vm335, %v1576, 0
  %v1611 = vsel %vm335, %v1577, 0
  %v1614 = vsel %vm335, %v1578, 0
  %v1617 = vsel %vm335, %v1579, 0
  %v1620 = vsel %vm335, %v1580, 0
  %v1623 = vsel %vm335, %v1581, 0
  %v1626 = vsel %vm335, %v1582, 0
  %v1629 = vsel %vm335, %v1583, 0
  %v1632 = vsel %vm335, %v1584, 0
  %v1635 = vsel %vm335, %v1585, 0
  %v1638 = vsel %vm335, %v1586, 0
  %v1641 = vsel %vm335, %v1587, 0
  %v1644 = vsel %vm335, %v1588, 0
  %v1647 = vsel %vm335, %v1589, 0
  %v1650 = vsel %vm335, %v1590, 0
  %v1653 = vsel %vm335, %v1591, 0
  %v1656 = vsel %vm335, %v1592, 0
  %v1659 = vsel %vm335, %v1593, 0
  %v1662 = vsel %vm335, %v1594, 0
  %v1665 = vsel %vm335, %v1595, 0
  %v1668 = vsel %vm335, %v1596, 0
  %v1671 = vsel %vm335, %v1597, 0
  %1673 = vmatprep.subr.bf16.mxu0 0
  %1674 = vmatpush1.bf16.msra.mxu0 %v327
  %1675 = vmatprep.subr.bf16.mxu0 0
  %1676 = vmatpush1.bf16.msra.mxu0 %v328
  %1677 = vmatprep.subr.bf16.mxu0 0
  %1678 = vmatpush1.bf16.msra.mxu0 %v329
  %1679 = vmatprep.subr.bf16.mxu0 0
  %1680 = vmatpush1.bf16.msra.mxu0 %v330
  %1681 = vmatprep.subr.bf16.mxu0 0
  %1682 = vmatpush1.bf16.msra.mxu0 0
  %1683 = vmatprep.subr.bf16.mxu0 0
  %1684 = vmatpush1.bf16.msra.mxu0 0
  %1685 = vmatprep.subr.bf16.mxu0 0
  %1686 = vmatpush1.bf16.msra.mxu0 0
  %1687 = vmatprep.subr.bf16.mxu0 0
  %1688 = vmatpush1.bf16.msra.mxu0 0
  %1689 = vmatprep.subr.bf16.mxu0 0
  %1690 = vmatpush1.bf16.msra.mxu0 0
  %1691 = vmatprep.subr.bf16.mxu0 0
  %1692 = vmatpush1.bf16.msra.mxu0 0
  %1693 = vmatprep.subr.bf16.mxu0 0
  %1694 = vmatpush1.bf16.msra.mxu0 0
  %1695 = vmatprep.subr.bf16.mxu0 0
  %1696 = vmatpush1.bf16.msra.mxu0 0
  %1697 = vmatprep.subr.bf16.mxu0 0
  %1698 = vmatpush1.bf16.msra.mxu0 0
  %1699 = vmatprep.subr.bf16.mxu0 0
  %1700 = vmatpush1.bf16.msra.mxu0 0
  %1701 = vmatprep.subr.bf16.mxu0 0
  %1702 = vmatpush1.bf16.msra.mxu0 0
  %1703 = vmatprep.subr.bf16.mxu0 0
  %1704 = vmatpush1.bf16.msra.mxu0 0
  %1705 = vmatprep.mubr.bf16.mxu0 0
  %1706 = vmatmul.mubr.bf16.gmra.mrb[0].mxu0 %v1599
  %v1707 = vpop.f32.mrb[0].mxu0
  %v1708 = vadd.f32 %v184, %v1707
  %v1709 = vpop.f32.mrb[0].mxu0
  %v1710 = vpop.f32.mrb[0].mxu0
  %v1711 = vadd.f32 %v184, %v1710
  %v1712 = vpop.f32.mrb[0].mxu0
  %1713 = vmatprep.mubr.bf16.mxu0 0
  %1714 = vmatmul.mubr.bf16.gmra.mrb[0].mxu0 %v1602
  %v1715 = vpop.f32.mrb[0].mxu0
  %v1716 = vadd.f32 %v184, %v1715
  %v1717 = vpop.f32.mrb[0].mxu0
  %v1718 = vpop.f32.mrb[0].mxu0
  %v1719 = vadd.f32 %v184, %v1718
  %v1720 = vpop.f32.mrb[0].mxu0
  %1721 = vmatprep.mubr.bf16.mxu0 0
  %1722 = vmatmul.mubr.bf16.gmra.mrb[0].mxu0 %v1605
  %v1723 = vpop.f32.mrb[0].mxu0
  %v1724 = vadd.f32 %v184, %v1723
  %v1725 = vpop.f32.mrb[0].mxu0
  %v1726 = vpop.f32.mrb[0].mxu0
  %v1727 = vadd.f32 %v184, %v1726
  %v1728 = vpop.f32.mrb[0].mxu0
  %1729 = vmatprep.mubr.bf16.mxu0 0
  %1730 = vmatmul.mubr.bf16.gmra.mrb[0].mxu0 %v1608
  %v1731 = vpop.f32.mrb[0].mxu0
  %v1732 = vadd.f32 %v184, %v1731
  %v1733 = vpop.f32.mrb[0].mxu0
  %v1734 = vpop.f32.mrb[0].mxu0
  %v1735 = vadd.f32 %v184, %v1734
  %v1736 = vpop.f32.mrb[0].mxu0
  %1737 = vmatprep.mubr.bf16.mxu0 0
  %1738 = vmatmul.mubr.bf16.gmra.mrb[0].mxu0 %v1611
  %v1739 = vpop.f32.mrb[0].mxu0
  %v1740 = vadd.f32 %v184, %v1739
  %v1741 = vpop.f32.mrb[0].mxu0
  %v1742 = vpop.f32.mrb[0].mxu0
  %v1743 = vadd.f32 %v184, %v1742
  %v1744 = vpop.f32.mrb[0].mxu0
  %1745 = vmatprep.mubr.bf16.mxu0 0
  %1746 = vmatmul.mubr.bf16.gmra.mrb[0].mxu0 %v1614
  %v1747 = vpop.f32.mrb[0].mxu0
  %v1748 = vadd.f32 %v184, %v1747
  %v1749 = vpop.f32.mrb[0].mxu0
  %v1750 = vpop.f32.mrb[0].mxu0
  %v1751 = vadd.f32 %v184, %v1750
  %v1752 = vpop.f32.mrb[0].mxu0
  %1753 = vmatprep.mubr.bf16.mxu0 0
  %1754 = vmatmul.mubr.bf16.gmra.mrb[0].mxu0 %v1617
  %v1755 = vpop.f32.mrb[0].mxu0
  %v1756 = vadd.f32 %v184, %v1755
  %v1757 = vpop.f32.mrb[0].mxu0
  %v1758 = vpop.f32.mrb[0].mxu0
  %v1759 = vadd.f32 %v184, %v1758
  %v1760 = vpop.f32.mrb[0].mxu0
  %1761 = vmatprep.mubr.bf16.mxu0 0
  %1762 = vmatmul.mubr.bf16.gmra.mrb[0].mxu0 %v1620
  %v1763 = vpop.f32.mrb[0].mxu0
  %v1764 = vadd.f32 %v184, %v1763
  %v1765 = vpop.f32.mrb[0].mxu0
  %v1766 = vpop.f32.mrb[0].mxu0
  %v1767 = vadd.f32 %v184, %v1766
  %v1768 = vpop.f32.mrb[0].mxu0
  %1769 = vmatprep.mubr.bf16.mxu0 0
  %1770 = vmatmul.mubr.bf16.gmra.mrb[0].mxu0 %v1623
  %v1771 = vpop.f32.mrb[0].mxu0
  %v1772 = vadd.f32 %v184, %v1771
  %v1773 = vpop.f32.mrb[0].mxu0
  %v1774 = vpop.f32.mrb[0].mxu0
  %v1775 = vadd.f32 %v184, %v1774
  %v1776 = vpop.f32.mrb[0].mxu0
  %1777 = vmatprep.mubr.bf16.mxu0 0
  %1778 = vmatmul.mubr.bf16.gmra.mrb[0].mxu0 %v1626
  %v1779 = vpop.f32.mrb[0].mxu0
  %v1780 = vadd.f32 %v184, %v1779
  %v1781 = vpop.f32.mrb[0].mxu0
  %v1782 = vpop.f32.mrb[0].mxu0
  %v1783 = vadd.f32 %v184, %v1782
  %v1784 = vpop.f32.mrb[0].mxu0
  %1785 = vmatprep.mubr.bf16.mxu0 0
  %1786 = vmatmul.mubr.bf16.gmra.mrb[0].mxu0 %v1629
  %v1787 = vpop.f32.mrb[0].mxu0
  %v1788 = vadd.f32 %v184, %v1787
  %v1789 = vpop.f32.mrb[0].mxu0
  %v1790 = vpop.f32.mrb[0].mxu0
  %v1791 = vadd.f32 %v184, %v1790
  %v1792 = vpop.f32.mrb[0].mxu0
  %1793 = vmatprep.mubr.bf16.mxu0 0
  %1794 = vmatmul.mubr.bf16.gmra.mrb[0].mxu0 %v1632
  %v1795 = vpop.f32.mrb[0].mxu0
  %v1796 = vadd.f32 %v184, %v1795
  %v1797 = vpop.f32.mrb[0].mxu0
  %v1798 = vpop.f32.mrb[0].mxu0
  %v1799 = vadd.f32 %v184, %v1798
  %v1800 = vpop.f32.mrb[0].mxu0
  %1801 = vmatprep.mubr.bf16.mxu0 0
  %1802 = vmatmul.mubr.bf16.gmra.mrb[0].mxu0 %v1635
  %v1803 = vpop.f32.mrb[0].mxu0
  %v1804 = vadd.f32 %v184, %v1803
  %v1805 = vpop.f32.mrb[0].mxu0
  %v1806 = vpop.f32.mrb[0].mxu0
  %v1807 = vadd.f32 %v184, %v1806
  %v1808 = vpop.f32.mrb[0].mxu0
  %1809 = vmatprep.mubr.bf16.mxu0 0
  %1810 = vmatmul.mubr.bf16.gmra.mrb[0].mxu0 %v1638
  %v1811 = vpop.f32.mrb[0].mxu0
  %v1812 = vadd.f32 %v184, %v1811
  %v1813 = vpop.f32.mrb[0].mxu0
  %v1814 = vpop.f32.mrb[0].mxu0
  %v1815 = vadd.f32 %v184, %v1814
  %v1816 = vpop.f32.mrb[0].mxu0
  %1817 = vmatprep.mubr.bf16.mxu0 0
  %1818 = vmatmul.mubr.bf16.gmra.mrb[0].mxu0 %v1641
  %v1819 = vpop.f32.mrb[0].mxu0
  %v1820 = vadd.f32 %v184, %v1819
  %v1821 = vpop.f32.mrb[0].mxu0
  %v1822 = vpop.f32.mrb[0].mxu0
  %v1823 = vadd.f32 %v184, %v1822
  %v1824 = vpop.f32.mrb[0].mxu0
  %1825 = vmatprep.mubr.bf16.mxu0 0
  %1826 = vmatmul.mubr.bf16.gmra.mrb[0].mxu0 %v1644
  %v1827 = vpop.f32.mrb[0].mxu0
  %v1828 = vadd.f32 %v184, %v1827
  %v1829 = vpop.f32.mrb[0].mxu0
  %v1830 = vpop.f32.mrb[0].mxu0
  %v1831 = vadd.f32 %v184, %v1830
  %v1832 = vpop.f32.mrb[0].mxu0
  %1833 = vmatprep.mubr.bf16.mxu0 0
  %1834 = vmatmul.mubr.bf16.gmra.mrb[0].mxu0 %v1647
  %v1835 = vpop.f32.mrb[0].mxu0
  %v1836 = vadd.f32 %v184, %v1835
  %v1837 = vpop.f32.mrb[0].mxu0
  %v1838 = vpop.f32.mrb[0].mxu0
  %v1839 = vadd.f32 %v184, %v1838
  %v1840 = vpop.f32.mrb[0].mxu0
  %1841 = vmatprep.mubr.bf16.mxu0 0
  %1842 = vmatmul.mubr.bf16.gmra.mrb[0].mxu0 %v1650
  %v1843 = vpop.f32.mrb[0].mxu0
  %v1844 = vadd.f32 %v184, %v1843
  %v1845 = vpop.f32.mrb[0].mxu0
  %v1846 = vpop.f32.mrb[0].mxu0
  %v1847 = vadd.f32 %v184, %v1846
  %v1848 = vpop.f32.mrb[0].mxu0
  %1849 = vmatprep.mubr.bf16.mxu0 0
  %1850 = vmatmul.mubr.bf16.gmra.mrb[0].mxu0 %v1653
  %v1851 = vpop.f32.mrb[0].mxu0
  %v1852 = vadd.f32 %v184, %v1851
  %v1853 = vpop.f32.mrb[0].mxu0
  %v1854 = vpop.f32.mrb[0].mxu0
  %v1855 = vadd.f32 %v184, %v1854
  %v1856 = vpop.f32.mrb[0].mxu0
  %1857 = vmatprep.mubr.bf16.mxu0 0
  %1858 = vmatmul.mubr.bf16.gmra.mrb[0].mxu0 %v1656
  %v1859 = vpop.f32.mrb[0].mxu0
  %v1860 = vadd.f32 %v184, %v1859
  %v1861 = vpop.f32.mrb[0].mxu0
  %v1862 = vpop.f32.mrb[0].mxu0
  %v1863 = vadd.f32 %v184, %v1862
  %v1864 = vpop.f32.mrb[0].mxu0
  %1865 = vmatprep.mubr.bf16.mxu0 0
  %1866 = vmatmul.mubr.bf16.gmra.mrb[0].mxu0 %v1659
  %v1867 = vpop.f32.mrb[0].mxu0
  %v1868 = vadd.f32 %v184, %v1867
  %v1869 = vpop.f32.mrb[0].mxu0
  %v1870 = vpop.f32.mrb[0].mxu0
  %v1871 = vadd.f32 %v184, %v1870
  %v1872 = vpop.f32.mrb[0].mxu0
  %1873 = vmatprep.mubr.bf16.mxu0 0
  %1874 = vmatmul.mubr.bf16.gmra.mrb[0].mxu0 %v1662
  %v1875 = vpop.f32.mrb[0].mxu0
  %v1876 = vadd.f32 %v184, %v1875
  %v1877 = vpop.f32.mrb[0].mxu0
  %v1878 = vpop.f32.mrb[0].mxu0
  %v1879 = vadd.f32 %v184, %v1878
  %v1880 = vpop.f32.mrb[0].mxu0
  %1881 = vmatprep.mubr.bf16.mxu0 0
  %1882 = vmatmul.mubr.bf16.gmra.mrb[0].mxu0 %v1665
  %v1883 = vpop.f32.mrb[0].mxu0
  %v1884 = vadd.f32 %v184, %v1883
  %v1885 = vpop.f32.mrb[0].mxu0
  %v1886 = vpop.f32.mrb[0].mxu0
  %v1887 = vadd.f32 %v184, %v1886
  %v1888 = vpop.f32.mrb[0].mxu0
  %1889 = vmatprep.mubr.bf16.mxu0 0
  %1890 = vmatmul.mubr.bf16.gmra.mrb[0].mxu0 %v1668
  %v1891 = vpop.f32.mrb[0].mxu0
  %v1892 = vadd.f32 %v184, %v1891
  %v1893 = vpop.f32.mrb[0].mxu0
  %v1894 = vpop.f32.mrb[0].mxu0
  %v1895 = vadd.f32 %v184, %v1894
  %v1896 = vpop.f32.mrb[0].mxu0
  %1897 = vmatprep.mubr.bf16.mxu0 0
  %1898 = vmatmul.mubr.bf16.gmra.mrb[0].mxu0 %v1671
  %v1899 = vpop.f32.mrb[0].mxu0
  %v1900 = vadd.f32 %v184, %v1899
  %v1901 = vpop.f32.mrb[0].mxu0
  %v1902 = vpop.f32.mrb[0].mxu0
  %v1903 = vadd.f32 %v184, %v1902
  %v1904 = vpop.f32.mrb[0].mxu0
  %1905 = vdwg.mxu0
  %v1906 = vsel %vm644, %v1708, 0.0
  %v1907 = vsel %vm644, %v1711, 0.0
  %v1908 = vadd.f32 %v1906, %v1907
  %v1909 = vsel %vm644, %v1716, 0.0
  %v1910 = vadd.f32 %v1908, %v1909
  %v1911 = vsel %vm644, %v1719, 0.0
  %v1912 = vadd.f32 %v1910, %v1911
  %v1913 = vsel %vm644, %v1724, 0.0
  %v1914 = vadd.f32 %v1912, %v1913
  %v1915 = vsel %vm644, %v1727, 0.0
  %v1916 = vadd.f32 %v1914, %v1915
  %v1917 = vsel %vm644, %v1732, 0.0
  %v1918 = vadd.f32 %v1916, %v1917
  %v1919 = vsel %vm644, %v1735, 0.0
  %v1920 = vadd.f32 %v1918, %v1919
  %v1921 = vsel %vm644, %v1740, 0.0
  %v1922 = vadd.f32 %v1920, %v1921
  %v1923 = vsel %vm644, %v1743, 0.0
  %v1924 = vadd.f32 %v1922, %v1923
  %v1925 = vsel %vm644, %v1748, 0.0
  %v1926 = vadd.f32 %v1924, %v1925
  %v1927 = vsel %vm644, %v1751, 0.0
  %v1928 = vadd.f32 %v1926, %v1927
  %v1929 = vsel %vm644, %v1756, 0.0
  %v1930 = vadd.f32 %v1928, %v1929
  %v1931 = vsel %vm644, %v1759, 0.0
  %v1932 = vadd.f32 %v1930, %v1931
  %v1933 = vsel %vm644, %v1764, 0.0
  %v1934 = vadd.f32 %v1932, %v1933
  %v1935 = vsel %vm644, %v1767, 0.0
  %v1936 = vadd.f32 %v1934, %v1935
  %v1937 = vsel %vm644, %v1772, 0.0
  %v1938 = vadd.f32 %v1936, %v1937
  %v1939 = vsel %vm644, %v1775, 0.0
  %v1940 = vadd.f32 %v1938, %v1939
  %v1941 = vsel %vm644, %v1780, 0.0
  %v1942 = vadd.f32 %v1940, %v1941
  %v1943 = vsel %vm644, %v1783, 0.0
  %v1944 = vadd.f32 %v1942, %v1943
  %v1945 = vsel %vm644, %v1788, 0.0
  %v1946 = vadd.f32 %v1944, %v1945
  %v1947 = vsel %vm644, %v1791, 0.0
  %v1948 = vadd.f32 %v1946, %v1947
  %v1949 = vsel %vm644, %v1796, 0.0
  %v1950 = vadd.f32 %v1948, %v1949
  %v1951 = vsel %vm644, %v1799, 0.0
  %v1952 = vadd.f32 %v1950, %v1951
  %v1953 = vsel %vm644, %v1804, 0.0
  %v1954 = vadd.f32 %v1952, %v1953
  %v1955 = vsel %vm644, %v1807, 0.0
  %v1956 = vadd.f32 %v1954, %v1955
  %v1957 = vsel %vm644, %v1812, 0.0
  %v1958 = vadd.f32 %v1956, %v1957
  %v1959 = vsel %vm644, %v1815, 0.0
  %v1960 = vadd.f32 %v1958, %v1959
  %v1961 = vsel %vm644, %v1820, 0.0
  %v1962 = vadd.f32 %v1960, %v1961
  %v1963 = vsel %vm644, %v1823, 0.0
  %v1964 = vadd.f32 %v1962, %v1963
  %v1965 = vsel %vm644, %v1828, 0.0
  %v1966 = vadd.f32 %v1964, %v1965
  %v1967 = vsel %vm644, %v1831, 0.0
  %v1968 = vadd.f32 %v1966, %v1967
  %v1969 = vsel %vm644, %v1836, 0.0
  %v1970 = vadd.f32 %v1968, %v1969
  %v1971 = vsel %vm644, %v1839, 0.0
  %v1972 = vadd.f32 %v1970, %v1971
  %v1973 = vsel %vm644, %v1844, 0.0
  %v1974 = vadd.f32 %v1972, %v1973
  %v1975 = vsel %vm644, %v1847, 0.0
  %v1976 = vadd.f32 %v1974, %v1975
  %v1977 = vsel %vm644, %v1852, 0.0
  %v1978 = vadd.f32 %v1976, %v1977
  %v1979 = vsel %vm644, %v1855, 0.0
  %v1980 = vadd.f32 %v1978, %v1979
  %v1981 = vsel %vm644, %v1860, 0.0
  %v1982 = vadd.f32 %v1980, %v1981
  %v1983 = vsel %vm644, %v1863, 0.0
  %v1984 = vadd.f32 %v1982, %v1983
  %v1985 = vsel %vm644, %v1868, 0.0
  %v1986 = vadd.f32 %v1984, %v1985
  %v1987 = vsel %vm644, %v1871, 0.0
  %v1988 = vadd.f32 %v1986, %v1987
  %v1989 = vsel %vm644, %v1876, 0.0
  %v1990 = vadd.f32 %v1988, %v1989
  %v1991 = vsel %vm644, %v1879, 0.0
  %v1992 = vadd.f32 %v1990, %v1991
  %v1993 = vsel %vm644, %v1884, 0.0
  %v1994 = vadd.f32 %v1992, %v1993
  %v1995 = vsel %vm644, %v1887, 0.0
  %v1996 = vadd.f32 %v1994, %v1995
  %v1997 = vsel %vm644, %v1892, 0.0
  %v1998 = vadd.f32 %v1996, %v1997
  %v1999 = vsel %vm644, %v1895, 0.0
  %v2000 = vadd.f32 %v1998, %v1999
  %v2001 = vsel %vm644, %v1900, 0.0
  %v2002 = vadd.f32 %v2000, %v2001
  %v2003 = vsel %vm644, %v1903, 0.0
  %v2004 = vadd.f32 %v2002, %v2003
  %2005 = vadd.xlane.f32.xlu0 %v2004
  %v2006 = vpop.xlane.xlu0 %2005
  %v2007 = vrot.slane %v2006, 4
  %v2008 = vadd.f32 %v2006, %v2007
  %v2009 = vrot.slane %v2008, 2
  %v2010 = vadd.f32 %v2008, %v2009
  %v2011 = vrot.slane %v2010, 1
  %v2012 = vadd.f32 %v2010, %v2011
  %s2013 = vtos %v2012
  %s2014 = smul.f32 %s2013, 7.8125e-05
  %v2015 = vmul.f32 %v1708, %v1708
  %v2016 = vmul.f32 %v1711, %v1711
  %v2017 = vmul.f32 %v1716, %v1716
  %v2018 = vmul.f32 %v1719, %v1719
  %v2019 = vmul.f32 %v1724, %v1724
  %v2020 = vmul.f32 %v1727, %v1727
  %v2021 = vmul.f32 %v1732, %v1732
  %v2022 = vmul.f32 %v1735, %v1735
  %v2023 = vmul.f32 %v1740, %v1740
  %v2024 = vmul.f32 %v1743, %v1743
  %v2025 = vmul.f32 %v1748, %v1748
  %v2026 = vmul.f32 %v1751, %v1751
  %v2027 = vmul.f32 %v1756, %v1756
  %v2028 = vmul.f32 %v1759, %v1759
  %v2029 = vmul.f32 %v1764, %v1764
  %v2030 = vmul.f32 %v1767, %v1767
  %v2031 = vmul.f32 %v1772, %v1772
  %v2032 = vmul.f32 %v1775, %v1775
  %v2033 = vmul.f32 %v1780, %v1780
  %v2034 = vmul.f32 %v1783, %v1783
  %v2035 = vmul.f32 %v1788, %v1788
  %v2036 = vmul.f32 %v1791, %v1791
  %v2037 = vmul.f32 %v1796, %v1796
  %v2038 = vmul.f32 %v1799, %v1799
  %v2039 = vmul.f32 %v1804, %v1804
  %v2040 = vmul.f32 %v1807, %v1807
  %v2041 = vmul.f32 %v1812, %v1812
  %v2042 = vmul.f32 %v1815, %v1815
  %v2043 = vmul.f32 %v1820, %v1820
  %v2044 = vmul.f32 %v1823, %v1823
  %v2045 = vmul.f32 %v1828, %v1828
  %v2046 = vmul.f32 %v1831, %v1831
  %v2047 = vmul.f32 %v1836, %v1836
  %v2048 = vmul.f32 %v1839, %v1839
  %v2049 = vmul.f32 %v1844, %v1844
  %v2050 = vmul.f32 %v1847, %v1847
  %v2051 = vmul.f32 %v1852, %v1852
  %v2052 = vmul.f32 %v1855, %v1855
  %v2053 = vmul.f32 %v1860, %v1860
  %v2054 = vmul.f32 %v1863, %v1863
  %v2055 = vmul.f32 %v1868, %v1868
  %v2056 = vmul.f32 %v1871, %v1871
  %v2057 = vmul.f32 %v1876, %v1876
  %v2058 = vmul.f32 %v1879, %v1879
  %v2059 = vmul.f32 %v1884, %v1884
  %v2060 = vmul.f32 %v1887, %v1887
  %v2061 = vmul.f32 %v1892, %v1892
  %v2062 = vmul.f32 %v1895, %v1895
  %v2063 = vmul.f32 %v1900, %v1900
  %v2064 = vmul.f32 %v1903, %v1903
  %v2065 = vsel %vm644, %v2015, 0.0
  %v2066 = vsel %vm644, %v2016, 0.0
  %v2067 = vadd.f32 %v2065, %v2066
  %v2068 = vsel %vm644, %v2017, 0.0
  %v2069 = vadd.f32 %v2067, %v2068
  %v2070 = vsel %vm644, %v2018, 0.0
  %v2071 = vadd.f32 %v2069, %v2070
  %v2072 = vsel %vm644, %v2019, 0.0
  %v2073 = vadd.f32 %v2071, %v2072
  %v2074 = vsel %vm644, %v2020, 0.0
  %v2075 = vadd.f32 %v2073, %v2074
  %v2076 = vsel %vm644, %v2021, 0.0
  %v2077 = vadd.f32 %v2075, %v2076
  %v2078 = vsel %vm644, %v2022, 0.0
  %v2079 = vadd.f32 %v2077, %v2078
  %v2080 = vsel %vm644, %v2023, 0.0
  %v2081 = vadd.f32 %v2079, %v2080
  %v2082 = vsel %vm644, %v2024, 0.0
  %v2083 = vadd.f32 %v2081, %v2082
  %v2084 = vsel %vm644, %v2025, 0.0
  %v2085 = vadd.f32 %v2083, %v2084
  %v2086 = vsel %vm644, %v2026, 0.0
  %v2087 = vadd.f32 %v2085, %v2086
  %v2088 = vsel %vm644, %v2027, 0.0
  %v2089 = vadd.f32 %v2087, %v2088
  %v2090 = vsel %vm644, %v2028, 0.0
  %v2091 = vadd.f32 %v2089, %v2090
  %v2092 = vsel %vm644, %v2029, 0.0
  %v2093 = vadd.f32 %v2091, %v2092
  %v2094 = vsel %vm644, %v2030, 0.0
  %v2095 = vadd.f32 %v2093, %v2094
  %v2096 = vsel %vm644, %v2031, 0.0
  %v2097 = vadd.f32 %v2095, %v2096
  %v2098 = vsel %vm644, %v2032, 0.0
  %v2099 = vadd.f32 %v2097, %v2098
  %v2100 = vsel %vm644, %v2033, 0.0
  %v2101 = vadd.f32 %v2099, %v2100
  %v2102 = vsel %vm644, %v2034, 0.0
  %v2103 = vadd.f32 %v2101, %v2102
  %v2104 = vsel %vm644, %v2035, 0.0
  %v2105 = vadd.f32 %v2103, %v2104
  %v2106 = vsel %vm644, %v2036, 0.0
  %v2107 = vadd.f32 %v2105, %v2106
  %v2108 = vsel %vm644, %v2037, 0.0
  %v2109 = vadd.f32 %v2107, %v2108
  %v2110 = vsel %vm644, %v2038, 0.0
  %v2111 = vadd.f32 %v2109, %v2110
  %v2112 = vsel %vm644, %v2039, 0.0
  %v2113 = vadd.f32 %v2111, %v2112
  %v2114 = vsel %vm644, %v2040, 0.0
  %v2115 = vadd.f32 %v2113, %v2114
  %v2116 = vsel %vm644, %v2041, 0.0
  %v2117 = vadd.f32 %v2115, %v2116
  %v2118 = vsel %vm644, %v2042, 0.0
  %v2119 = vadd.f32 %v2117, %v2118
  %v2120 = vsel %vm644, %v2043, 0.0
  %v2121 = vadd.f32 %v2119, %v2120
  %v2122 = vsel %vm644, %v2044, 0.0
  %v2123 = vadd.f32 %v2121, %v2122
  %v2124 = vsel %vm644, %v2045, 0.0
  %v2125 = vadd.f32 %v2123, %v2124
  %v2126 = vsel %vm644, %v2046, 0.0
  %v2127 = vadd.f32 %v2125, %v2126
  %v2128 = vsel %vm644, %v2047, 0.0
  %v2129 = vadd.f32 %v2127, %v2128
  %v2130 = vsel %vm644, %v2048, 0.0
  %v2131 = vadd.f32 %v2129, %v2130
  %v2132 = vsel %vm644, %v2049, 0.0
  %v2133 = vadd.f32 %v2131, %v2132
  %v2134 = vsel %vm644, %v2050, 0.0
  %v2135 = vadd.f32 %v2133, %v2134
  %v2136 = vsel %vm644, %v2051, 0.0
  %v2137 = vadd.f32 %v2135, %v2136
  %v2138 = vsel %vm644, %v2052, 0.0
  %v2139 = vadd.f32 %v2137, %v2138
  %v2140 = vsel %vm644, %v2053, 0.0
  %v2141 = vadd.f32 %v2139, %v2140
  %v2142 = vsel %vm644, %v2054, 0.0
  %v2143 = vadd.f32 %v2141, %v2142
  %v2144 = vsel %vm644, %v2055, 0.0
  %v2145 = vadd.f32 %v2143, %v2144
  %v2146 = vsel %vm644, %v2056, 0.0
  %v2147 = vadd.f32 %v2145, %v2146
  %v2148 = vsel %vm644, %v2057, 0.0
  %v2149 = vadd.f32 %v2147, %v2148
  %v2150 = vsel %vm644, %v2058, 0.0
  %v2151 = vadd.f32 %v2149, %v2150
  %v2152 = vsel %vm644, %v2059, 0.0
  %v2153 = vadd.f32 %v2151, %v2152
  %v2154 = vsel %vm644, %v2060, 0.0
  %v2155 = vadd.f32 %v2153, %v2154
  %v2156 = vsel %vm644, %v2061, 0.0
  %v2157 = vadd.f32 %v2155, %v2156
  %v2158 = vsel %vm644, %v2062, 0.0
  %v2159 = vadd.f32 %v2157, %v2158
  %v2160 = vsel %vm644, %v2063, 0.0
  %v2161 = vadd.f32 %v2159, %v2160
  %v2162 = vsel %vm644, %v2064, 0.0
  %v2163 = vadd.f32 %v2161, %v2162
  %2164 = vadd.xlane.f32.xlu0 %v2163
  %v2165 = vpop.xlane.xlu0 %2164
  %v2166 = vrot.slane %v2165, 4
  %v2167 = vadd.f32 %v2165, %v2166
  %v2168 = vrot.slane %v2167, 2
  %v2169 = vadd.f32 %v2167, %v2168
  %v2170 = vrot.slane %v2169, 1
  %v2171 = vadd.f32 %v2169, %v2170
  %s2172 = vtos %v2171
  %s2173 = smul.f32 %s2172, 7.8125e-05
  %s2174 = smul.f32 %s2014, %s2014
  %s2175 = ssub.f32 %s2173, %s2174
  %v2176 = vstv %s2014
  %v2177 = vsub.f32 %v1708, %v2176
  %v2178 = vsub.f32 %v1711, %v2176
  %v2179 = vsub.f32 %v1716, %v2176
  %v2180 = vsub.f32 %v1719, %v2176
  %v2181 = vsub.f32 %v1724, %v2176
  %v2182 = vsub.f32 %v1727, %v2176
  %v2183 = vsub.f32 %v1732, %v2176
  %v2184 = vsub.f32 %v1735, %v2176
  %v2185 = vsub.f32 %v1740, %v2176
  %v2186 = vsub.f32 %v1743, %v2176
  %v2187 = vsub.f32 %v1748, %v2176
  %v2188 = vsub.f32 %v1751, %v2176
  %v2189 = vsub.f32 %v1756, %v2176
  %v2190 = vsub.f32 %v1759, %v2176
  %v2191 = vsub.f32 %v1764, %v2176
  %v2192 = vsub.f32 %v1767, %v2176
  %v2193 = vsub.f32 %v1772, %v2176
  %v2194 = vsub.f32 %v1775, %v2176
  %v2195 = vsub.f32 %v1780, %v2176
  %v2196 = vsub.f32 %v1783, %v2176
  %v2197 = vsub.f32 %v1788, %v2176
  %v2198 = vsub.f32 %v1791, %v2176
  %v2199 = vsub.f32 %v1796, %v2176
  %v2200 = vsub.f32 %v1799, %v2176
  %v2201 = vsub.f32 %v1804, %v2176
  %v2202 = vsub.f32 %v1807, %v2176
  %v2203 = vsub.f32 %v1812, %v2176
  %v2204 = vsub.f32 %v1815, %v2176
  %v2205 = vsub.f32 %v1820, %v2176
  %v2206 = vsub.f32 %v1823, %v2176
  %v2207 = vsub.f32 %v1828, %v2176
  %v2208 = vsub.f32 %v1831, %v2176
  %v2209 = vsub.f32 %v1836, %v2176
  %v2210 = vsub.f32 %v1839, %v2176
  %v2211 = vsub.f32 %v1844, %v2176
  %v2212 = vsub.f32 %v1847, %v2176
  %v2213 = vsub.f32 %v1852, %v2176
  %v2214 = vsub.f32 %v1855, %v2176
  %v2215 = vsub.f32 %v1860, %v2176
  %v2216 = vsub.f32 %v1863, %v2176
  %v2217 = vsub.f32 %v1868, %v2176
  %v2218 = vsub.f32 %v1871, %v2176
  %v2219 = vsub.f32 %v1876, %v2176
  %v2220 = vsub.f32 %v1879, %v2176
  %v2221 = vsub.f32 %v1884, %v2176
  %v2222 = vsub.f32 %v1887, %v2176
  %v2223 = vsub.f32 %v1892, %v2176
  %v2224 = vsub.f32 %v1895, %v2176
  %v2225 = vsub.f32 %v1900, %v2176
  %v2226 = vsub.f32 %v1903, %v2176
  %s2227 = sadd.f32 %s2175, 1e-05
  %v2228 = vstv %s2227
  %v2229 = vrsqrt.pop %v2228
  %s2230 = vtos %v2229
  %v2231 = vstv %s2230
  %v2232 = vmul.f32 %v2177, %v2231
  %v2233 = vmul.f32 %v2178, %v2231
  %v2234 = vmul.f32 %v2179, %v2231
  %v2235 = vmul.f32 %v2180, %v2231
  %v2236 = vmul.f32 %v2181, %v2231
  %v2237 = vmul.f32 %v2182, %v2231
  %v2238 = vmul.f32 %v2183, %v2231
  %v2239 = vmul.f32 %v2184, %v2231
  %v2240 = vmul.f32 %v2185, %v2231
  %v2241 = vmul.f32 %v2186, %v2231
  %v2242 = vmul.f32 %v2187, %v2231
  %v2243 = vmul.f32 %v2188, %v2231
  %v2244 = vmul.f32 %v2189, %v2231
  %v2245 = vmul.f32 %v2190, %v2231
  %v2246 = vmul.f32 %v2191, %v2231
  %v2247 = vmul.f32 %v2192, %v2231
  %v2248 = vmul.f32 %v2193, %v2231
  %v2249 = vmul.f32 %v2194, %v2231
  %v2250 = vmul.f32 %v2195, %v2231
  %v2251 = vmul.f32 %v2196, %v2231
  %v2252 = vmul.f32 %v2197, %v2231
  %v2253 = vmul.f32 %v2198, %v2231
  %v2254 = vmul.f32 %v2199, %v2231
  %v2255 = vmul.f32 %v2200, %v2231
  %v2256 = vmul.f32 %v2201, %v2231
  %v2257 = vmul.f32 %v2202, %v2231
  %v2258 = vmul.f32 %v2203, %v2231
  %v2259 = vmul.f32 %v2204, %v2231
  %v2260 = vmul.f32 %v2205, %v2231
  %v2261 = vmul.f32 %v2206, %v2231
  %v2262 = vmul.f32 %v2207, %v2231
  %v2263 = vmul.f32 %v2208, %v2231
  %v2264 = vmul.f32 %v2209, %v2231
  %v2265 = vmul.f32 %v2210, %v2231
  %v2266 = vmul.f32 %v2211, %v2231
  %v2267 = vmul.f32 %v2212, %v2231
  %v2268 = vmul.f32 %v2213, %v2231
  %v2269 = vmul.f32 %v2214, %v2231
  %v2270 = vmul.f32 %v2215, %v2231
  %v2271 = vmul.f32 %v2216, %v2231
  %v2272 = vmul.f32 %v2217, %v2231
  %v2273 = vmul.f32 %v2218, %v2231
  %v2274 = vmul.f32 %v2219, %v2231
  %v2275 = vmul.f32 %v2220, %v2231
  %v2276 = vmul.f32 %v2221, %v2231
  %v2277 = vmul.f32 %v2222, %v2231
  %v2278 = vmul.f32 %v2223, %v2231
  %v2279 = vmul.f32 %v2224, %v2231
  %v2280 = vmul.f32 %v2225, %v2231
  %v2281 = vmul.f32 %v2226, %v2231
  %v2282 = vmul.f32 %v2232, %v30
  %v2283 = vmul.f32 %v2233, %v31
  %v2284 = vmul.f32 %v2234, %v32
  %v2285 = vmul.f32 %v2235, %v33
  %v2286 = vmul.f32 %v2236, %v34
  %v2287 = vmul.f32 %v2237, %v35
  %v2288 = vmul.f32 %v2238, %v36
  %v2289 = vmul.f32 %v2239, %v37
  %v2290 = vmul.f32 %v2240, %v38
  %v2291 = vmul.f32 %v2241, %v39
  %v2292 = vmul.f32 %v2242, %v40
  %v2293 = vmul.f32 %v2243, %v41
  %v2294 = vmul.f32 %v2244, %v42
  %v2295 = vmul.f32 %v2245, %v43
  %v2296 = vmul.f32 %v2246, %v44
  %v2297 = vmul.f32 %v2247, %v45
  %v2298 = vmul.f32 %v2248, %v46
  %v2299 = vmul.f32 %v2249, %v47
  %v2300 = vmul.f32 %v2250, %v48
  %v2301 = vmul.f32 %v2251, %v49
  %v2302 = vmul.f32 %v2252, %v50
  %v2303 = vmul.f32 %v2253, %v51
  %v2304 = vmul.f32 %v2254, %v52
  %v2305 = vmul.f32 %v2255, %v53
  %v2306 = vmul.f32 %v2256, %v54
  %v2307 = vmul.f32 %v2257, %v55
  %v2308 = vmul.f32 %v2258, %v56
  %v2309 = vmul.f32 %v2259, %v57
  %v2310 = vmul.f32 %v2260, %v58
  %v2311 = vmul.f32 %v2261, %v59
  %v2312 = vmul.f32 %v2262, %v60
  %v2313 = vmul.f32 %v2263, %v61
  %v2314 = vmul.f32 %v2264, %v62
  %v2315 = vmul.f32 %v2265, %v63
  %v2316 = vmul.f32 %v2266, %v64
  %v2317 = vmul.f32 %v2267, %v65
  %v2318 = vmul.f32 %v2268, %v66
  %v2319 = vmul.f32 %v2269, %v67
  %v2320 = vmul.f32 %v2270, %v68
  %v2321 = vmul.f32 %v2271, %v69
  %v2322 = vmul.f32 %v2272, %v70
  %v2323 = vmul.f32 %v2273, %v71
  %v2324 = vmul.f32 %v2274, %v72
  %v2325 = vmul.f32 %v2275, %v73
  %v2326 = vmul.f32 %v2276, %v74
  %v2327 = vmul.f32 %v2277, %v75
  %v2328 = vmul.f32 %v2278, %v76
  %v2329 = vmul.f32 %v2279, %v77
  %v2330 = vmul.f32 %v2280, %v78
  %v2331 = vmul.f32 %v2281, %v79
  %v2332 = vadd.f32 %v2282, %v80
  %v2333 = vadd.f32 %v2283, %v81
  %v2334 = vadd.f32 %v2284, %v82
  %v2335 = vadd.f32 %v2285, %v83
  %v2336 = vadd.f32 %v2286, %v84
  %v2337 = vadd.f32 %v2287, %v85
  %v2338 = vadd.f32 %v2288, %v86
  %v2339 = vadd.f32 %v2289, %v87
  %v2340 = vadd.f32 %v2290, %v88
  %v2341 = vadd.f32 %v2291, %v89
  %v2342 = vadd.f32 %v2292, %v90
  %v2343 = vadd.f32 %v2293, %v91
  %v2344 = vadd.f32 %v2294, %v92
  %v2345 = vadd.f32 %v2295, %v93
  %v2346 = vadd.f32 %v2296, %v94
  %v2347 = vadd.f32 %v2297, %v95
  %v2348 = vadd.f32 %v2298, %v96
  %v2349 = vadd.f32 %v2299, %v97
  %v2350 = vadd.f32 %v2300, %v98
  %v2351 = vadd.f32 %v2301, %v99
  %v2352 = vadd.f32 %v2302, %v100
  %v2353 = vadd.f32 %v2303, %v101
  %v2354 = vadd.f32 %v2304, %v102
  %v2355 = vadd.f32 %v2305, %v103
  %v2356 = vadd.f32 %v2306, %v104
  %v2357 = vadd.f32 %v2307, %v105
  %v2358 = vadd.f32 %v2308, %v106
  %v2359 = vadd.f32 %v2309, %v107
  %v2360 = vadd.f32 %v2310, %v108
  %v2361 = vadd.f32 %v2311, %v109
  %v2362 = vadd.f32 %v2312, %v110
  %v2363 = vadd.f32 %v2313, %v111
  %v2364 = vadd.f32 %v2314, %v112
  %v2365 = vadd.f32 %v2315, %v113
  %v2366 = vadd.f32 %v2316, %v114
  %v2367 = vadd.f32 %v2317, %v115
  %v2368 = vadd.f32 %v2318, %v116
  %v2369 = vadd.f32 %v2319, %v117
  %v2370 = vadd.f32 %v2320, %v118
  %v2371 = vadd.f32 %v2321, %v119
  %v2372 = vadd.f32 %v2322, %v120
  %v2373 = vadd.f32 %v2323, %v121
  %v2374 = vadd.f32 %v2324, %v122
  %v2375 = vadd.f32 %v2325, %v123
  %v2376 = vadd.f32 %v2326, %v124
  %v2377 = vadd.f32 %v2327, %v125
  %v2378 = vadd.f32 %v2328, %v126
  %v2379 = vadd.f32 %v2329, %v127
  %v2380 = vadd.f32 %v2330, %v128
  %v2381 = vadd.f32 %v2331, %v129
  %v2382 = vmax.f32 %v2332, 0.0
  %v2383 = vmax.f32 %v2333, 0.0
  %v2384 = vmax.f32 %v2334, 0.0
  %v2385 = vmax.f32 %v2335, 0.0
  %v2386 = vmax.f32 %v2336, 0.0
  %v2387 = vmax.f32 %v2337, 0.0
  %v2388 = vmax.f32 %v2338, 0.0
  %v2389 = vmax.f32 %v2339, 0.0
  %v2390 = vmax.f32 %v2340, 0.0
  %v2391 = vmax.f32 %v2341, 0.0
  %v2392 = vmax.f32 %v2342, 0.0
  %v2393 = vmax.f32 %v2343, 0.0
  %v2394 = vmax.f32 %v2344, 0.0
  %v2395 = vmax.f32 %v2345, 0.0
  %v2396 = vmax.f32 %v2346, 0.0
  %v2397 = vmax.f32 %v2347, 0.0
  %v2398 = vmax.f32 %v2348, 0.0
  %v2399 = vmax.f32 %v2349, 0.0
  %v2400 = vmax.f32 %v2350, 0.0
  %v2401 = vmax.f32 %v2351, 0.0
  %v2402 = vmax.f32 %v2352, 0.0
  %v2403 = vmax.f32 %v2353, 0.0
  %v2404 = vmax.f32 %v2354, 0.0
  %v2405 = vmax.f32 %v2355, 0.0
  %v2406 = vmax.f32 %v2356, 0.0
  %v2407 = vmax.f32 %v2357, 0.0
  %v2408 = vmax.f32 %v2358, 0.0
  %v2409 = vmax.f32 %v2359, 0.0
  %v2410 = vmax.f32 %v2360, 0.0
  %v2411 = vmax.f32 %v2361, 0.0
  %v2412 = vmax.f32 %v2362, 0.0
  %v2413 = vmax.f32 %v2363, 0.0
  %v2414 = vmax.f32 %v2364, 0.0
  %v2415 = vmax.f32 %v2365, 0.0
  %v2416 = vmax.f32 %v2366, 0.0
  %v2417 = vmax.f32 %v2367, 0.0
  %v2418 = vmax.f32 %v2368, 0.0
  %v2419 = vmax.f32 %v2369, 0.0
  %v2420 = vmax.f32 %v2370, 0.0
  %v2421 = vmax.f32 %v2371, 0.0
  %v2422 = vmax.f32 %v2372, 0.0
  %v2423 = vmax.f32 %v2373, 0.0
  %v2424 = vmax.f32 %v2374, 0.0
  %v2425 = vmax.f32 %v2375, 0.0
  %v2426 = vmax.f32 %v2376, 0.0
  %v2427 = vmax.f32 %v2377, 0.0
  %v2428 = vmax.f32 %v2378, 0.0
  %v2429 = vmax.f32 %v2379, 0.0
  %v2430 = vmax.f32 %v2380, 0.0
  %v2431 = vmax.f32 %v2381, 0.0
  %v2432 = vpack.c.bf16 %v2383, %v2382
  %v2433 = vpack.c.bf16 %v2385, %v2384
  %v2434 = vpack.c.bf16 %v2387, %v2386
  %v2435 = vpack.c.bf16 %v2389, %v2388
  %v2436 = vpack.c.bf16 %v2391, %v2390
  %v2437 = vpack.c.bf16 %v2393, %v2392
  %v2438 = vpack.c.bf16 %v2395, %v2394
  %v2439 = vpack.c.bf16 %v2397, %v2396
  %v2440 = vpack.c.bf16 %v2399, %v2398
  %v2441 = vpack.c.bf16 %v2401, %v2400
  %v2442 = vpack.c.bf16 %v2403, %v2402
  %v2443 = vpack.c.bf16 %v2405, %v2404
  %v2444 = vpack.c.bf16 %v2407, %v2406
  %v2445 = vpack.c.bf16 %v2409, %v2408
  %v2446 = vpack.c.bf16 %v2411, %v2410
  %v2447 = vpack.c.bf16 %v2413, %v2412
  %v2448 = vpack.c.bf16 %v2415, %v2414
  %v2449 = vpack.c.bf16 %v2417, %v2416
  %v2450 = vpack.c.bf16 %v2419, %v2418
  %v2451 = vpack.c.bf16 %v2421, %v2420
  %v2452 = vpack.c.bf16 %v2423, %v2422
  %v2453 = vpack.c.bf16 %v2425, %v2424
  %v2454 = vpack.c.bf16 %v2427, %v2426
  %v2455 = vpack.c.bf16 %v2429, %v2428
  %v2456 = vpack.c.bf16 %v2431, %v2430
  %v2482 = vunpack.c.l.b16 %v2432
  %v2483 = vunpack.c.h.b16 %v2432
  %v2484 = vunpack.c.l.b16 %v2433
  %v2485 = vunpack.c.h.b16 %v2433
  %v2486 = vunpack.c.l.b16 %v2434
  %v2487 = vunpack.c.h.b16 %v2434
  %v2488 = vunpack.c.l.b16 %v2435
  %v2489 = vunpack.c.h.b16 %v2435
  %v2490 = vunpack.c.l.b16 %v2436
  %v2491 = vunpack.c.h.b16 %v2436
  %v2492 = vunpack.c.l.b16 %v2437
  %v2493 = vunpack.c.h.b16 %v2437
  %v2494 = vunpack.c.l.b16 %v2438
  %v2495 = vunpack.c.h.b16 %v2438
  %v2496 = vunpack.c.l.b16 %v2439
  %v2497 = vunpack.c.h.b16 %v2439
  %v2498 = vunpack.c.l.b16 %v2440
  %v2499 = vunpack.c.h.b16 %v2440
  %v2500 = vunpack.c.l.b16 %v2441
  %v2501 = vunpack.c.h.b16 %v2441
  %v2502 = vunpack.c.l.b16 %v2442
  %v2503 = vunpack.c.h.b16 %v2442
  %v2504 = vunpack.c.l.b16 %v2443
  %v2505 = vunpack.c.h.b16 %v2443
  %v2506 = vunpack.c.l.b16 %v2444
  %v2507 = vunpack.c.h.b16 %v2444
  %v2508 = vunpack.c.l.b16 %v2445
  %v2509 = vunpack.c.h.b16 %v2445
  %v2510 = vunpack.c.l.b16 %v2446
  %v2511 = vunpack.c.h.b16 %v2446
  %v2512 = vunpack.c.l.b16 %v2447
  %v2513 = vunpack.c.h.b16 %v2447
  %v2514 = vunpack.c.l.b16 %v2448
  %v2515 = vunpack.c.h.b16 %v2448
  %v2516 = vunpack.c.l.b16 %v2449
  %v2517 = vunpack.c.h.b16 %v2449
  %v2518 = vunpack.c.l.b16 %v2450
  %v2519 = vunpack.c.h.b16 %v2450
  %v2520 = vunpack.c.l.b16 %v2451
  %v2521 = vunpack.c.h.b16 %v2451
  %v2522 = vunpack.c.l.b16 %v2452
  %v2523 = vunpack.c.h.b16 %v2452
  %v2524 = vunpack.c.l.b16 %v2453
  %v2525 = vunpack.c.h.b16 %v2453
  %v2526 = vunpack.c.l.b16 %v2454
  %v2527 = vunpack.c.h.b16 %v2454
  %v2528 = vunpack.c.l.b16 %v2455
  %v2529 = vunpack.c.h.b16 %v2455
  %v2530 = vunpack.c.l.b16 %v2456
  %v2531 = vunpack.c.h.b16 %v2456
  %v2532 = vpack.c.b16 %v2482, %v2482
  %v2533 = vpack.c.b16 %v2483, %v2483
  %v2534 = vpack.c.b16 %v2484, %v2484
  %v2535 = vpack.c.b16 %v2485, %v2485
  %v2536 = vpack.c.b16 %v2486, %v2486
  %v2537 = vpack.c.b16 %v2487, %v2487
  %v2538 = vpack.c.b16 %v2488, %v2488
  %v2539 = vpack.c.b16 %v2489, %v2489
  %v2540 = vpack.c.b16 %v2490, %v2490
  %v2541 = vpack.c.b16 %v2491, %v2491
  %v2542 = vpack.c.b16 %v2492, %v2492
  %v2543 = vpack.c.b16 %v2493, %v2493
  %v2544 = vpack.c.b16 %v2494, %v2494
  %v2545 = vpack.c.b16 %v2495, %v2495
  %v2546 = vpack.c.b16 %v2496, %v2496
  %v2547 = vpack.c.b16 %v2497, %v2497
  %v2548 = vpack.c.b16 %v2498, %v2498
  %v2549 = vpack.c.b16 %v2499, %v2499
  %v2550 = vpack.c.b16 %v2500, %v2500
  %v2551 = vpack.c.b16 %v2501, %v2501
  %v2552 = vpack.c.b16 %v2502, %v2502
  %v2553 = vpack.c.b16 %v2503, %v2503
  %v2554 = vpack.c.b16 %v2504, %v2504
  %v2555 = vpack.c.b16 %v2505, %v2505
  %v2556 = vpack.c.b16 %v2506, %v2506
  %v2557 = vpack.c.b16 %v2507, %v2507
  %v2558 = vpack.c.b16 %v2508, %v2508
  %v2559 = vpack.c.b16 %v2509, %v2509
  %v2560 = vpack.c.b16 %v2510, %v2510
  %v2561 = vpack.c.b16 %v2511, %v2511
  %v2562 = vpack.c.b16 %v2512, %v2512
  %v2563 = vpack.c.b16 %v2513, %v2513
  %v2564 = vpack.c.b16 %v2514, %v2514
  %v2565 = vpack.c.b16 %v2515, %v2515
  %v2566 = vpack.c.b16 %v2516, %v2516
  %v2567 = vpack.c.b16 %v2517, %v2517
  %v2568 = vpack.c.b16 %v2518, %v2518
  %v2569 = vpack.c.b16 %v2519, %v2519
  %v2570 = vpack.c.b16 %v2520, %v2520
  %v2571 = vpack.c.b16 %v2521, %v2521
  %v2572 = vpack.c.b16 %v2522, %v2522
  %v2573 = vpack.c.b16 %v2523, %v2523
  %v2574 = vpack.c.b16 %v2524, %v2524
  %v2575 = vpack.c.b16 %v2525, %v2525
  %v2576 = vpack.c.b16 %v2526, %v2526
  %v2577 = vpack.c.b16 %v2527, %v2527
  %v2578 = vpack.c.b16 %v2528, %v2528
  %v2579 = vpack.c.b16 %v2529, %v2529
  %v2580 = vpack.c.b16 %v2530, %v2530
  %v2581 = vpack.c.b16 %v2531, %v2531
  %s2632 = scalar_lea.vmem %s5, 200
  %2633 = vst.msk [vmem:[%s2632] sm:$0xf] %vm1371, %v2532
  %2634 = vst.msk [vmem:[%s2632 + $0x4] sm:$0xf] %vm1371, %v2533
  %2635 = vst.msk [vmem:[%s2632 + $0x8] sm:$0xf] %vm1371, %v2534
  %2636 = vst.msk [vmem:[%s2632 + $0xc] sm:$0xf] %vm1371, %v2535
  %2637 = vst.msk [vmem:[%s2632 + $0x10] sm:$0xf] %vm1371, %v2536
  %2638 = vst.msk [vmem:[%s2632 + $0x14] sm:$0xf] %vm1371, %v2537
  %2639 = vst.msk [vmem:[%s2632 + $0x18] sm:$0xf] %vm1371, %v2538
  %2640 = vst.msk [vmem:[%s2632 + $0x1c] sm:$0xf] %vm1371, %v2539
  %2641 = vst.msk [vmem:[%s2632 + $0x20] sm:$0xf] %vm1371, %v2540
  %2642 = vst.msk [vmem:[%s2632 + $0x24] sm:$0xf] %vm1371, %v2541
  %2643 = vst.msk [vmem:[%s2632 + $0x28] sm:$0xf] %vm1371, %v2542
  %2644 = vst.msk [vmem:[%s2632 + $0x2c] sm:$0xf] %vm1371, %v2543
  %2645 = vst.msk [vmem:[%s2632 + $0x30] sm:$0xf] %vm1371, %v2544
  %2646 = vst.msk [vmem:[%s2632 + $0x34] sm:$0xf] %vm1371, %v2545
  %2647 = vst.msk [vmem:[%s2632 + $0x38] sm:$0xf] %vm1371, %v2546
  %2648 = vst.msk [vmem:[%s2632 + $0x3c] sm:$0xf] %vm1371, %v2547
  %2649 = vst.msk [vmem:[%s2632 + $0x40] sm:$0xf] %vm1371, %v2548
  %2650 = vst.msk [vmem:[%s2632 + $0x44] sm:$0xf] %vm1371, %v2549
  %2651 = vst.msk [vmem:[%s2632 + $0x48] sm:$0xf] %vm1371, %v2550
  %2652 = vst.msk [vmem:[%s2632 + $0x4c] sm:$0xf] %vm1371, %v2551
  %2653 = vst.msk [vmem:[%s2632 + $0x50] sm:$0xf] %vm1371, %v2552
  %2654 = vst.msk [vmem:[%s2632 + $0x54] sm:$0xf] %vm1371, %v2553
  %2655 = vst.msk [vmem:[%s2632 + $0x58] sm:$0xf] %vm1371, %v2554
  %2656 = vst.msk [vmem:[%s2632 + $0x5c] sm:$0xf] %vm1371, %v2555
  %2657 = vst.msk [vmem:[%s2632 + $0x60] sm:$0xf] %vm1371, %v2556
  %2658 = vst.msk [vmem:[%s2632 + $0x64] sm:$0xf] %vm1371, %v2557
  %2659 = vst.msk [vmem:[%s2632 + $0x68] sm:$0xf] %vm1371, %v2558
  %2660 = vst.msk [vmem:[%s2632 + $0x6c] sm:$0xf] %vm1371, %v2559
  %2661 = vst.msk [vmem:[%s2632 + $0x70] sm:$0xf] %vm1371, %v2560
  %2662 = vst.msk [vmem:[%s2632 + $0x74] sm:$0xf] %vm1371, %v2561
  %2663 = vst.msk [vmem:[%s2632 + $0x78] sm:$0xf] %vm1371, %v2562
  %2664 = vst.msk [vmem:[%s2632 + $0x7c] sm:$0xf] %vm1371, %v2563
  %2665 = vst.msk [vmem:[%s2632 + $0x80] sm:$0xf] %vm1371, %v2564
  %2666 = vst.msk [vmem:[%s2632 + $0x84] sm:$0xf] %vm1371, %v2565
  %2667 = vst.msk [vmem:[%s2632 + $0x88] sm:$0xf] %vm1371, %v2566
  %2668 = vst.msk [vmem:[%s2632 + $0x8c] sm:$0xf] %vm1371, %v2567
  %2669 = vst.msk [vmem:[%s2632 + $0x90] sm:$0xf] %vm1371, %v2568
  %2670 = vst.msk [vmem:[%s2632 + $0x94] sm:$0xf] %vm1371, %v2569
  %2671 = vst.msk [vmem:[%s2632 + $0x98] sm:$0xf] %vm1371, %v2570
  %2672 = vst.msk [vmem:[%s2632 + $0x9c] sm:$0xf] %vm1371, %v2571
  %2673 = vst.msk [vmem:[%s2632 + $0xa0] sm:$0xf] %vm1371, %v2572
  %2674 = vst.msk [vmem:[%s2632 + $0xa4] sm:$0xf] %vm1371, %v2573
  %2675 = vst.msk [vmem:[%s2632 + $0xa8] sm:$0xf] %vm1371, %v2574
  %2676 = vst.msk [vmem:[%s2632 + $0xac] sm:$0xf] %vm1371, %v2575
  %2677 = vst.msk [vmem:[%s2632 + $0xb0] sm:$0xf] %vm1371, %v2576
  %2678 = vst.msk [vmem:[%s2632 + $0xb4] sm:$0xf] %vm1371, %v2577
  %2679 = vst.msk [vmem:[%s2632 + $0xb8] sm:$0xf] %vm1371, %v2578
  %2680 = vst.msk [vmem:[%s2632 + $0xbc] sm:$0xf] %vm1371, %v2579
  %2681 = vst.msk [vmem:[%s2632 + $0xc0] sm:$0xf] %vm1371, %v2580
  %2682 = vst.msk [vmem:[%s2632 + $0xc4] sm:$0xf] %vm1371, %v2581
  %s2683 = scalar_lea.vmem %s0, 400
  %v2684 = vld [vmem:[%s2683] sm:$0xf]
  %v2685 = vld [vmem:[%s2683 + $0x4] sm:$0xf]
  %v2686 = vld [vmem:[%s2683 + $0x8] sm:$0xf]
  %v2687 = vld [vmem:[%s2683 + $0xc] sm:$0xf]
  %v2688 = vld [vmem:[%s2683 + $0x10] sm:$0xf]
  %v2689 = vld [vmem:[%s2683 + $0x14] sm:$0xf]
  %v2690 = vld [vmem:[%s2683 + $0x18] sm:$0xf]
  %v2691 = vld [vmem:[%s2683 + $0x1c] sm:$0xf]
  %v2692 = vld [vmem:[%s2683 + $0x20] sm:$0xf]
  %v2693 = vld [vmem:[%s2683 + $0x24] sm:$0xf]
  %v2694 = vld [vmem:[%s2683 + $0x28] sm:$0xf]
  %v2695 = vld [vmem:[%s2683 + $0x2c] sm:$0xf]
  %v2696 = vld [vmem:[%s2683 + $0x30] sm:$0xf]
  %v2697 = vld [vmem:[%s2683 + $0x34] sm:$0xf]
  %v2698 = vld [vmem:[%s2683 + $0x38] sm:$0xf]
  %v2699 = vld [vmem:[%s2683 + $0x3c] sm:$0xf]
  %v2700 = vld [vmem:[%s2683 + $0x40] sm:$0xf]
  %v2701 = vld [vmem:[%s2683 + $0x44] sm:$0xf]
  %v2702 = vld [vmem:[%s2683 + $0x48] sm:$0xf]
  %v2703 = vld [vmem:[%s2683 + $0x4c] sm:$0xf]
  %v2704 = vld [vmem:[%s2683 + $0x50] sm:$0xf]
  %v2705 = vld [vmem:[%s2683 + $0x54] sm:$0xf]
  %v2706 = vld [vmem:[%s2683 + $0x58] sm:$0xf]
  %v2707 = vld [vmem:[%s2683 + $0x5c] sm:$0xf]
  %v2708 = vld [vmem:[%s2683 + $0x60] sm:$0xf]
  %v2709 = vld [vmem:[%s2683 + $0x64] sm:$0xf]
  %v2710 = vld [vmem:[%s2683 + $0x68] sm:$0xf]
  %v2711 = vld [vmem:[%s2683 + $0x6c] sm:$0xf]
  %v2712 = vld [vmem:[%s2683 + $0x70] sm:$0xf]
  %v2713 = vld [vmem:[%s2683 + $0x74] sm:$0xf]
  %v2714 = vld [vmem:[%s2683 + $0x78] sm:$0xf]
  %v2715 = vld [vmem:[%s2683 + $0x7c] sm:$0xf]
  %v2716 = vld [vmem:[%s2683 + $0x80] sm:$0xf]
  %v2717 = vld [vmem:[%s2683 + $0x84] sm:$0xf]
  %v2718 = vld [vmem:[%s2683 + $0x88] sm:$0xf]
  %v2719 = vld [vmem:[%s2683 + $0x8c] sm:$0xf]
  %v2720 = vld [vmem:[%s2683 + $0x90] sm:$0xf]
  %v2721 = vld [vmem:[%s2683 + $0x94] sm:$0xf]
  %v2722 = vld [vmem:[%s2683 + $0x98] sm:$0xf]
  %v2723 = vld [vmem:[%s2683 + $0x9c] sm:$0xf]
  %v2724 = vld [vmem:[%s2683 + $0xa0] sm:$0xf]
  %v2725 = vld [vmem:[%s2683 + $0xa4] sm:$0xf]
  %v2726 = vld [vmem:[%s2683 + $0xa8] sm:$0xf]
  %v2727 = vld [vmem:[%s2683 + $0xac] sm:$0xf]
  %v2728 = vld [vmem:[%s2683 + $0xb0] sm:$0xf]
  %v2729 = vld [vmem:[%s2683 + $0xb4] sm:$0xf]
  %v2730 = vld [vmem:[%s2683 + $0xb8] sm:$0xf]
  %v2731 = vld [vmem:[%s2683 + $0xbc] sm:$0xf]
  %v2732 = vld [vmem:[%s2683 + $0xc0] sm:$0xf]
  %v2733 = vld [vmem:[%s2683 + $0xc4] sm:$0xf]
  %v2784 = vunpack.c.l.b16 %v2684
  %v2785 = vunpack.c.l.b16 %v2685
  %v2786 = vunpack.c.l.b16 %v2686
  %v2787 = vunpack.c.l.b16 %v2687
  %v2788 = vunpack.c.l.b16 %v2688
  %v2789 = vunpack.c.l.b16 %v2689
  %v2790 = vunpack.c.l.b16 %v2690
  %v2791 = vunpack.c.l.b16 %v2691
  %v2792 = vunpack.c.l.b16 %v2692
  %v2793 = vunpack.c.l.b16 %v2693
  %v2794 = vunpack.c.l.b16 %v2694
  %v2795 = vunpack.c.l.b16 %v2695
  %v2796 = vunpack.c.l.b16 %v2696
  %v2797 = vunpack.c.l.b16 %v2697
  %v2798 = vunpack.c.l.b16 %v2698
  %v2799 = vunpack.c.l.b16 %v2699
  %v2800 = vunpack.c.l.b16 %v2700
  %v2801 = vunpack.c.l.b16 %v2701
  %v2802 = vunpack.c.l.b16 %v2702
  %v2803 = vunpack.c.l.b16 %v2703
  %v2804 = vunpack.c.l.b16 %v2704
  %v2805 = vunpack.c.l.b16 %v2705
  %v2806 = vunpack.c.l.b16 %v2706
  %v2807 = vunpack.c.l.b16 %v2707
  %v2808 = vunpack.c.l.b16 %v2708
  %v2809 = vunpack.c.l.b16 %v2709
  %v2810 = vunpack.c.l.b16 %v2710
  %v2811 = vunpack.c.l.b16 %v2711
  %v2812 = vunpack.c.l.b16 %v2712
  %v2813 = vunpack.c.l.b16 %v2713
  %v2814 = vunpack.c.l.b16 %v2714
  %v2815 = vunpack.c.l.b16 %v2715
  %v2816 = vunpack.c.l.b16 %v2716
  %v2817 = vunpack.c.l.b16 %v2717
  %v2818 = vunpack.c.l.b16 %v2718
  %v2819 = vunpack.c.l.b16 %v2719
  %v2820 = vunpack.c.l.b16 %v2720
  %v2821 = vunpack.c.l.b16 %v2721
  %v2822 = vunpack.c.l.b16 %v2722
  %v2823 = vunpack.c.l.b16 %v2723
  %v2824 = vunpack.c.l.b16 %v2724
  %v2825 = vunpack.c.l.b16 %v2725
  %v2826 = vunpack.c.l.b16 %v2726
  %v2827 = vunpack.c.l.b16 %v2727
  %v2828 = vunpack.c.l.b16 %v2728
  %v2829 = vunpack.c.l.b16 %v2729
  %v2830 = vunpack.c.l.b16 %v2730
  %v2831 = vunpack.c.l.b16 %v2731
  %v2832 = vunpack.c.l.b16 %v2732
  %v2833 = vunpack.c.l.b16 %v2733
  %v2834 = vpack.c.b16 %v2785, %v2784
  %v2835 = vpack.c.b16 %v2787, %v2786
  %v2836 = vpack.c.b16 %v2789, %v2788
  %v2837 = vpack.c.b16 %v2791, %v2790
  %v2838 = vpack.c.b16 %v2793, %v2792
  %v2839 = vpack.c.b16 %v2795, %v2794
  %v2840 = vpack.c.b16 %v2797, %v2796
  %v2841 = vpack.c.b16 %v2799, %v2798
  %v2842 = vpack.c.b16 %v2801, %v2800
  %v2843 = vpack.c.b16 %v2803, %v2802
  %v2844 = vpack.c.b16 %v2805, %v2804
  %v2845 = vpack.c.b16 %v2807, %v2806
  %v2846 = vpack.c.b16 %v2809, %v2808
  %v2847 = vpack.c.b16 %v2811, %v2810
  %v2848 = vpack.c.b16 %v2813, %v2812
  %v2849 = vpack.c.b16 %v2815, %v2814
  %v2850 = vpack.c.b16 %v2817, %v2816
  %v2851 = vpack.c.b16 %v2819, %v2818
  %v2852 = vpack.c.b16 %v2821, %v2820
  %v2853 = vpack.c.b16 %v2823, %v2822
  %v2854 = vpack.c.b16 %v2825, %v2824
  %v2855 = vpack.c.b16 %v2827, %v2826
  %v2856 = vpack.c.b16 %v2829, %v2828
  %v2857 = vpack.c.b16 %v2831, %v2830
  %v2858 = vpack.c.b16 %v2833, %v2832
  %v2860 = vsel %vm335, %v2834, 0
  %v2863 = vsel %vm335, %v2835, 0
  %v2866 = vsel %vm335, %v2836, 0
  %v2869 = vsel %vm335, %v2837, 0
  %v2872 = vsel %vm335, %v2838, 0
  %v2875 = vsel %vm335, %v2839, 0
  %v2878 = vsel %vm335, %v2840, 0
  %v2881 = vsel %vm335, %v2841, 0
  %v2884 = vsel %vm335, %v2842, 0
  %v2887 = vsel %vm335, %v2843, 0
  %v2890 = vsel %vm335, %v2844, 0
  %v2893 = vsel %vm335, %v2845, 0
  %v2896 = vsel %vm335, %v2846, 0
  %v2899 = vsel %vm335, %v2847, 0
  %v2902 = vsel %vm335, %v2848, 0
  %v2905 = vsel %vm335, %v2849, 0
  %v2908 = vsel %vm335, %v2850, 0
  %v2911 = vsel %vm335, %v2851, 0
  %v2914 = vsel %vm335, %v2852, 0
  %v2917 = vsel %vm335, %v2853, 0
  %v2920 = vsel %vm335, %v2854, 0
  %v2923 = vsel %vm335, %v2855, 0
  %v2926 = vsel %vm335, %v2856, 0
  %v2929 = vsel %vm335, %v2857, 0
  %v2932 = vsel %vm335, %v2858, 0
  %2934 = vmatprep.subr.bf16.mxu0 0
  %2935 = vmatpush1.bf16.msra.mxu0 %v327
  %2936 = vmatprep.subr.bf16.mxu0 0
  %2937 = vmatpush1.bf16.msra.mxu0 %v328
  %2938 = vmatprep.subr.bf16.mxu0 0
  %2939 = vmatpush1.bf16.msra.mxu0 %v329
  %2940 = vmatprep.subr.bf16.mxu0 0
  %2941 = vmatpush1.bf16.msra.mxu0 %v330
  %2942 = vmatprep.subr.bf16.mxu0 0
  %2943 = vmatpush1.bf16.msra.mxu0 0
  %2944 = vmatprep.subr.bf16.mxu0 0
  %2945 = vmatpush1.bf16.msra.mxu0 0
  %2946 = vmatprep.subr.bf16.mxu0 0
  %2947 = vmatpush1.bf16.msra.mxu0 0
  %2948 = vmatprep.subr.bf16.mxu0 0
  %2949 = vmatpush1.bf16.msra.mxu0 0
  %2950 = vmatprep.subr.bf16.mxu0 0
  %2951 = vmatpush1.bf16.msra.mxu0 0
  %2952 = vmatprep.subr.bf16.mxu0 0
  %2953 = vmatpush1.bf16.msra.mxu0 0
  %2954 = vmatprep.subr.bf16.mxu0 0
  %2955 = vmatpush1.bf16.msra.mxu0 0
  %2956 = vmatprep.subr.bf16.mxu0 0
  %2957 = vmatpush1.bf16.msra.mxu0 0
  %2958 = vmatprep.subr.bf16.mxu0 0
  %2959 = vmatpush1.bf16.msra.mxu0 0
  %2960 = vmatprep.subr.bf16.mxu0 0
  %2961 = vmatpush1.bf16.msra.mxu0 0
  %2962 = vmatprep.subr.bf16.mxu0 0
  %2963 = vmatpush1.bf16.msra.mxu0 0
  %2964 = vmatprep.subr.bf16.mxu0 0
  %2965 = vmatpush1.bf16.msra.mxu0 0
  %2966 = vmatprep.mubr.bf16.mxu0 0
  %2967 = vmatmul.mubr.bf16.gmra.mrb[0].mxu0 %v2860
  %v2968 = vpop.f32.mrb[0].mxu0
  %v2969 = vadd.f32 %v184, %v2968
  %v2970 = vpop.f32.mrb[0].mxu0
  %v2971 = vpop.f32.mrb[0].mxu0
  %v2972 = vadd.f32 %v184, %v2971
  %v2973 = vpop.f32.mrb[0].mxu0
  %2974 = vmatprep.mubr.bf16.mxu0 0
  %2975 = vmatmul.mubr.bf16.gmra.mrb[0].mxu0 %v2863
  %v2976 = vpop.f32.mrb[0].mxu0
  %v2977 = vadd.f32 %v184, %v2976
  %v2978 = vpop.f32.mrb[0].mxu0
  %v2979 = vpop.f32.mrb[0].mxu0
  %v2980 = vadd.f32 %v184, %v2979
  %v2981 = vpop.f32.mrb[0].mxu0
  %2982 = vmatprep.mubr.bf16.mxu0 0
  %2983 = vmatmul.mubr.bf16.gmra.mrb[0].mxu0 %v2866
  %v2984 = vpop.f32.mrb[0].mxu0
  %v2985 = vadd.f32 %v184, %v2984
  %v2986 = vpop.f32.mrb[0].mxu0
  %v2987 = vpop.f32.mrb[0].mxu0
  %v2988 = vadd.f32 %v184, %v2987
  %v2989 = vpop.f32.mrb[0].mxu0
  %2990 = vmatprep.mubr.bf16.mxu0 0
  %2991 = vmatmul.mubr.bf16.gmra.mrb[0].mxu0 %v2869
  %v2992 = vpop.f32.mrb[0].mxu0
  %v2993 = vadd.f32 %v184, %v2992
  %v2994 = vpop.f32.mrb[0].mxu0
  %v2995 = vpop.f32.mrb[0].mxu0
  %v2996 = vadd.f32 %v184, %v2995
  %v2997 = vpop.f32.mrb[0].mxu0
  %2998 = vmatprep.mubr.bf16.mxu0 0
  %2999 = vmatmul.mubr.bf16.gmra.mrb[0].mxu0 %v2872
  %v3000 = vpop.f32.mrb[0].mxu0
  %v3001 = vadd.f32 %v184, %v3000
  %v3002 = vpop.f32.mrb[0].mxu0
  %v3003 = vpop.f32.mrb[0].mxu0
  %v3004 = vadd.f32 %v184, %v3003
  %v3005 = vpop.f32.mrb[0].mxu0
  %3006 = vmatprep.mubr.bf16.mxu0 0
  %3007 = vmatmul.mubr.bf16.gmra.mrb[0].mxu0 %v2875
  %v3008 = vpop.f32.mrb[0].mxu0
  %v3009 = vadd.f32 %v184, %v3008
  %v3010 = vpop.f32.mrb[0].mxu0
  %v3011 = vpop.f32.mrb[0].mxu0
  %v3012 = vadd.f32 %v184, %v3011
  %v3013 = vpop.f32.mrb[0].mxu0
  %3014 = vmatprep.mubr.bf16.mxu0 0
  %3015 = vmatmul.mubr.bf16.gmra.mrb[0].mxu0 %v2878
  %v3016 = vpop.f32.mrb[0].mxu0
  %v3017 = vadd.f32 %v184, %v3016
  %v3018 = vpop.f32.mrb[0].mxu0
  %v3019 = vpop.f32.mrb[0].mxu0
  %v3020 = vadd.f32 %v184, %v3019
  %v3021 = vpop.f32.mrb[0].mxu0
  %3022 = vmatprep.mubr.bf16.mxu0 0
  %3023 = vmatmul.mubr.bf16.gmra.mrb[0].mxu0 %v2881
  %v3024 = vpop.f32.mrb[0].mxu0
  %v3025 = vadd.f32 %v184, %v3024
  %v3026 = vpop.f32.mrb[0].mxu0
  %v3027 = vpop.f32.mrb[0].mxu0
  %v3028 = vadd.f32 %v184, %v3027
  %v3029 = vpop.f32.mrb[0].mxu0
  %3030 = vmatprep.mubr.bf16.mxu0 0
  %3031 = vmatmul.mubr.bf16.gmra.mrb[0].mxu0 %v2884
  %v3032 = vpop.f32.mrb[0].mxu0
  %v3033 = vadd.f32 %v184, %v3032
  %v3034 = vpop.f32.mrb[0].mxu0
  %v3035 = vpop.f32.mrb[0].mxu0
  %v3036 = vadd.f32 %v184, %v3035
  %v3037 = vpop.f32.mrb[0].mxu0
  %3038 = vmatprep.mubr.bf16.mxu0 0
  %3039 = vmatmul.mubr.bf16.gmra.mrb[0].mxu0 %v2887
  %v3040 = vpop.f32.mrb[0].mxu0
  %v3041 = vadd.f32 %v184, %v3040
  %v3042 = vpop.f32.mrb[0].mxu0
  %v3043 = vpop.f32.mrb[0].mxu0
  %v3044 = vadd.f32 %v184, %v3043
  %v3045 = vpop.f32.mrb[0].mxu0
  %3046 = vmatprep.mubr.bf16.mxu0 0
  %3047 = vmatmul.mubr.bf16.gmra.mrb[0].mxu0 %v2890
  %v3048 = vpop.f32.mrb[0].mxu0
  %v3049 = vadd.f32 %v184, %v3048
  %v3050 = vpop.f32.mrb[0].mxu0
  %v3051 = vpop.f32.mrb[0].mxu0
  %v3052 = vadd.f32 %v184, %v3051
  %v3053 = vpop.f32.mrb[0].mxu0
  %3054 = vmatprep.mubr.bf16.mxu0 0
  %3055 = vmatmul.mubr.bf16.gmra.mrb[0].mxu0 %v2893
  %v3056 = vpop.f32.mrb[0].mxu0
  %v3057 = vadd.f32 %v184, %v3056
  %v3058 = vpop.f32.mrb[0].mxu0
  %v3059 = vpop.f32.mrb[0].mxu0
  %v3060 = vadd.f32 %v184, %v3059
  %v3061 = vpop.f32.mrb[0].mxu0
  %3062 = vmatprep.mubr.bf16.mxu0 0
  %3063 = vmatmul.mubr.bf16.gmra.mrb[0].mxu0 %v2896
  %v3064 = vpop.f32.mrb[0].mxu0
  %v3065 = vadd.f32 %v184, %v3064
  %v3066 = vpop.f32.mrb[0].mxu0
  %v3067 = vpop.f32.mrb[0].mxu0
  %v3068 = vadd.f32 %v184, %v3067
  %v3069 = vpop.f32.mrb[0].mxu0
  %3070 = vmatprep.mubr.bf16.mxu0 0
  %3071 = vmatmul.mubr.bf16.gmra.mrb[0].mxu0 %v2899
  %v3072 = vpop.f32.mrb[0].mxu0
  %v3073 = vadd.f32 %v184, %v3072
  %v3074 = vpop.f32.mrb[0].mxu0
  %v3075 = vpop.f32.mrb[0].mxu0
  %v3076 = vadd.f32 %v184, %v3075
  %v3077 = vpop.f32.mrb[0].mxu0
  %3078 = vmatprep.mubr.bf16.mxu0 0
  %3079 = vmatmul.mubr.bf16.gmra.mrb[0].mxu0 %v2902
  %v3080 = vpop.f32.mrb[0].mxu0
  %v3081 = vadd.f32 %v184, %v3080
  %v3082 = vpop.f32.mrb[0].mxu0
  %v3083 = vpop.f32.mrb[0].mxu0
  %v3084 = vadd.f32 %v184, %v3083
  %v3085 = vpop.f32.mrb[0].mxu0
  %3086 = vmatprep.mubr.bf16.mxu0 0
  %3087 = vmatmul.mubr.bf16.gmra.mrb[0].mxu0 %v2905
  %v3088 = vpop.f32.mrb[0].mxu0
  %v3089 = vadd.f32 %v184, %v3088
  %v3090 = vpop.f32.mrb[0].mxu0
  %v3091 = vpop.f32.mrb[0].mxu0
  %v3092 = vadd.f32 %v184, %v3091
  %v3093 = vpop.f32.mrb[0].mxu0
  %3094 = vmatprep.mubr.bf16.mxu0 0
  %3095 = vmatmul.mubr.bf16.gmra.mrb[0].mxu0 %v2908
  %v3096 = vpop.f32.mrb[0].mxu0
  %v3097 = vadd.f32 %v184, %v3096
  %v3098 = vpop.f32.mrb[0].mxu0
  %v3099 = vpop.f32.mrb[0].mxu0
  %v3100 = vadd.f32 %v184, %v3099
  %v3101 = vpop.f32.mrb[0].mxu0
  %3102 = vmatprep.mubr.bf16.mxu0 0
  %3103 = vmatmul.mubr.bf16.gmra.mrb[0].mxu0 %v2911
  %v3104 = vpop.f32.mrb[0].mxu0
  %v3105 = vadd.f32 %v184, %v3104
  %v3106 = vpop.f32.mrb[0].mxu0
  %v3107 = vpop.f32.mrb[0].mxu0
  %v3108 = vadd.f32 %v184, %v3107
  %v3109 = vpop.f32.mrb[0].mxu0
  %3110 = vmatprep.mubr.bf16.mxu0 0
  %3111 = vmatmul.mubr.bf16.gmra.mrb[0].mxu0 %v2914
  %v3112 = vpop.f32.mrb[0].mxu0
  %v3113 = vadd.f32 %v184, %v3112
  %v3114 = vpop.f32.mrb[0].mxu0
  %v3115 = vpop.f32.mrb[0].mxu0
  %v3116 = vadd.f32 %v184, %v3115
  %v3117 = vpop.f32.mrb[0].mxu0
  %3118 = vmatprep.mubr.bf16.mxu0 0
  %3119 = vmatmul.mubr.bf16.gmra.mrb[0].mxu0 %v2917
  %v3120 = vpop.f32.mrb[0].mxu0
  %v3121 = vadd.f32 %v184, %v3120
  %v3122 = vpop.f32.mrb[0].mxu0
  %v3123 = vpop.f32.mrb[0].mxu0
  %v3124 = vadd.f32 %v184, %v3123
  %v3125 = vpop.f32.mrb[0].mxu0
  %3126 = vmatprep.mubr.bf16.mxu0 0
  %3127 = vmatmul.mubr.bf16.gmra.mrb[0].mxu0 %v2920
  %v3128 = vpop.f32.mrb[0].mxu0
  %v3129 = vadd.f32 %v184, %v3128
  %v3130 = vpop.f32.mrb[0].mxu0
  %v3131 = vpop.f32.mrb[0].mxu0
  %v3132 = vadd.f32 %v184, %v3131
  %v3133 = vpop.f32.mrb[0].mxu0
  %3134 = vmatprep.mubr.bf16.mxu0 0
  %3135 = vmatmul.mubr.bf16.gmra.mrb[0].mxu0 %v2923
  %v3136 = vpop.f32.mrb[0].mxu0
  %v3137 = vadd.f32 %v184, %v3136
  %v3138 = vpop.f32.mrb[0].mxu0
  %v3139 = vpop.f32.mrb[0].mxu0
  %v3140 = vadd.f32 %v184, %v3139
  %v3141 = vpop.f32.mrb[0].mxu0
  %3142 = vmatprep.mubr.bf16.mxu0 0
  %3143 = vmatmul.mubr.bf16.gmra.mrb[0].mxu0 %v2926
  %v3144 = vpop.f32.mrb[0].mxu0
  %v3145 = vadd.f32 %v184, %v3144
  %v3146 = vpop.f32.mrb[0].mxu0
  %v3147 = vpop.f32.mrb[0].mxu0
  %v3148 = vadd.f32 %v184, %v3147
  %v3149 = vpop.f32.mrb[0].mxu0
  %3150 = vmatprep.mubr.bf16.mxu0 0
  %3151 = vmatmul.mubr.bf16.gmra.mrb[0].mxu0 %v2929
  %v3152 = vpop.f32.mrb[0].mxu0
  %v3153 = vadd.f32 %v184, %v3152
  %v3154 = vpop.f32.mrb[0].mxu0
  %v3155 = vpop.f32.mrb[0].mxu0
  %v3156 = vadd.f32 %v184, %v3155
  %v3157 = vpop.f32.mrb[0].mxu0
  %3158 = vmatprep.mubr.bf16.mxu0 0
  %3159 = vmatmul.mubr.bf16.gmra.mrb[0].mxu0 %v2932
  %v3160 = vpop.f32.mrb[0].mxu0
  %v3161 = vadd.f32 %v184, %v3160
  %v3162 = vpop.f32.mrb[0].mxu0
  %v3163 = vpop.f32.mrb[0].mxu0
  %v3164 = vadd.f32 %v184, %v3163
  %v3165 = vpop.f32.mrb[0].mxu0
  %3166 = vdwg.mxu0
  %v3167 = vsel %vm644, %v2969, 0.0
  %v3168 = vsel %vm644, %v2972, 0.0
  %v3169 = vadd.f32 %v3167, %v3168
  %v3170 = vsel %vm644, %v2977, 0.0
  %v3171 = vadd.f32 %v3169, %v3170
  %v3172 = vsel %vm644, %v2980, 0.0
  %v3173 = vadd.f32 %v3171, %v3172
  %v3174 = vsel %vm644, %v2985, 0.0
  %v3175 = vadd.f32 %v3173, %v3174
  %v3176 = vsel %vm644, %v2988, 0.0
  %v3177 = vadd.f32 %v3175, %v3176
  %v3178 = vsel %vm644, %v2993, 0.0
  %v3179 = vadd.f32 %v3177, %v3178
  %v3180 = vsel %vm644, %v2996, 0.0
  %v3181 = vadd.f32 %v3179, %v3180
  %v3182 = vsel %vm644, %v3001, 0.0
  %v3183 = vadd.f32 %v3181, %v3182
  %v3184 = vsel %vm644, %v3004, 0.0
  %v3185 = vadd.f32 %v3183, %v3184
  %v3186 = vsel %vm644, %v3009, 0.0
  %v3187 = vadd.f32 %v3185, %v3186
  %v3188 = vsel %vm644, %v3012, 0.0
  %v3189 = vadd.f32 %v3187, %v3188
  %v3190 = vsel %vm644, %v3017, 0.0
  %v3191 = vadd.f32 %v3189, %v3190
  %v3192 = vsel %vm644, %v3020, 0.0
  %v3193 = vadd.f32 %v3191, %v3192
  %v3194 = vsel %vm644, %v3025, 0.0
  %v3195 = vadd.f32 %v3193, %v3194
  %v3196 = vsel %vm644, %v3028, 0.0
  %v3197 = vadd.f32 %v3195, %v3196
  %v3198 = vsel %vm644, %v3033, 0.0
  %v3199 = vadd.f32 %v3197, %v3198
  %v3200 = vsel %vm644, %v3036, 0.0
  %v3201 = vadd.f32 %v3199, %v3200
  %v3202 = vsel %vm644, %v3041, 0.0
  %v3203 = vadd.f32 %v3201, %v3202
  %v3204 = vsel %vm644, %v3044, 0.0
  %v3205 = vadd.f32 %v3203, %v3204
  %v3206 = vsel %vm644, %v3049, 0.0
  %v3207 = vadd.f32 %v3205, %v3206
  %v3208 = vsel %vm644, %v3052, 0.0
  %v3209 = vadd.f32 %v3207, %v3208
  %v3210 = vsel %vm644, %v3057, 0.0
  %v3211 = vadd.f32 %v3209, %v3210
  %v3212 = vsel %vm644, %v3060, 0.0
  %v3213 = vadd.f32 %v3211, %v3212
  %v3214 = vsel %vm644, %v3065, 0.0
  %v3215 = vadd.f32 %v3213, %v3214
  %v3216 = vsel %vm644, %v3068, 0.0
  %v3217 = vadd.f32 %v3215, %v3216
  %v3218 = vsel %vm644, %v3073, 0.0
  %v3219 = vadd.f32 %v3217, %v3218
  %v3220 = vsel %vm644, %v3076, 0.0
  %v3221 = vadd.f32 %v3219, %v3220
  %v3222 = vsel %vm644, %v3081, 0.0
  %v3223 = vadd.f32 %v3221, %v3222
  %v3224 = vsel %vm644, %v3084, 0.0
  %v3225 = vadd.f32 %v3223, %v3224
  %v3226 = vsel %vm644, %v3089, 0.0
  %v3227 = vadd.f32 %v3225, %v3226
  %v3228 = vsel %vm644, %v3092, 0.0
  %v3229 = vadd.f32 %v3227, %v3228
  %v3230 = vsel %vm644, %v3097, 0.0
  %v3231 = vadd.f32 %v3229, %v3230
  %v3232 = vsel %vm644, %v3100, 0.0
  %v3233 = vadd.f32 %v3231, %v3232
  %v3234 = vsel %vm644, %v3105, 0.0
  %v3235 = vadd.f32 %v3233, %v3234
  %v3236 = vsel %vm644, %v3108, 0.0
  %v3237 = vadd.f32 %v3235, %v3236
  %v3238 = vsel %vm644, %v3113, 0.0
  %v3239 = vadd.f32 %v3237, %v3238
  %v3240 = vsel %vm644, %v3116, 0.0
  %v3241 = vadd.f32 %v3239, %v3240
  %v3242 = vsel %vm644, %v3121, 0.0
  %v3243 = vadd.f32 %v3241, %v3242
  %v3244 = vsel %vm644, %v3124, 0.0
  %v3245 = vadd.f32 %v3243, %v3244
  %v3246 = vsel %vm644, %v3129, 0.0
  %v3247 = vadd.f32 %v3245, %v3246
  %v3248 = vsel %vm644, %v3132, 0.0
  %v3249 = vadd.f32 %v3247, %v3248
  %v3250 = vsel %vm644, %v3137, 0.0
  %v3251 = vadd.f32 %v3249, %v3250
  %v3252 = vsel %vm644, %v3140, 0.0
  %v3253 = vadd.f32 %v3251, %v3252
  %v3254 = vsel %vm644, %v3145, 0.0
  %v3255 = vadd.f32 %v3253, %v3254
  %v3256 = vsel %vm644, %v3148, 0.0
  %v3257 = vadd.f32 %v3255, %v3256
  %v3258 = vsel %vm644, %v3153, 0.0
  %v3259 = vadd.f32 %v3257, %v3258
  %v3260 = vsel %vm644, %v3156, 0.0
  %v3261 = vadd.f32 %v3259, %v3260
  %v3262 = vsel %vm644, %v3161, 0.0
  %v3263 = vadd.f32 %v3261, %v3262
  %v3264 = vsel %vm644, %v3164, 0.0
  %v3265 = vadd.f32 %v3263, %v3264
  %3266 = vadd.xlane.f32.xlu0 %v3265
  %v3267 = vpop.xlane.xlu0 %3266
  %v3268 = vrot.slane %v3267, 4
  %v3269 = vadd.f32 %v3267, %v3268
  %v3270 = vrot.slane %v3269, 2
  %v3271 = vadd.f32 %v3269, %v3270
  %v3272 = vrot.slane %v3271, 1
  %v3273 = vadd.f32 %v3271, %v3272
  %s3274 = vtos %v3273
  %s3275 = smul.f32 %s3274, 7.8125e-05
  %v3276 = vmul.f32 %v2969, %v2969
  %v3277 = vmul.f32 %v2972, %v2972
  %v3278 = vmul.f32 %v2977, %v2977
  %v3279 = vmul.f32 %v2980, %v2980
  %v3280 = vmul.f32 %v2985, %v2985
  %v3281 = vmul.f32 %v2988, %v2988
  %v3282 = vmul.f32 %v2993, %v2993
  %v3283 = vmul.f32 %v2996, %v2996
  %v3284 = vmul.f32 %v3001, %v3001
  %v3285 = vmul.f32 %v3004, %v3004
  %v3286 = vmul.f32 %v3009, %v3009
  %v3287 = vmul.f32 %v3012, %v3012
  %v3288 = vmul.f32 %v3017, %v3017
  %v3289 = vmul.f32 %v3020, %v3020
  %v3290 = vmul.f32 %v3025, %v3025
  %v3291 = vmul.f32 %v3028, %v3028
  %v3292 = vmul.f32 %v3033, %v3033
  %v3293 = vmul.f32 %v3036, %v3036
  %v3294 = vmul.f32 %v3041, %v3041
  %v3295 = vmul.f32 %v3044, %v3044
  %v3296 = vmul.f32 %v3049, %v3049
  %v3297 = vmul.f32 %v3052, %v3052
  %v3298 = vmul.f32 %v3057, %v3057
  %v3299 = vmul.f32 %v3060, %v3060
  %v3300 = vmul.f32 %v3065, %v3065
  %v3301 = vmul.f32 %v3068, %v3068
  %v3302 = vmul.f32 %v3073, %v3073
  %v3303 = vmul.f32 %v3076, %v3076
  %v3304 = vmul.f32 %v3081, %v3081
  %v3305 = vmul.f32 %v3084, %v3084
  %v3306 = vmul.f32 %v3089, %v3089
  %v3307 = vmul.f32 %v3092, %v3092
  %v3308 = vmul.f32 %v3097, %v3097
  %v3309 = vmul.f32 %v3100, %v3100
  %v3310 = vmul.f32 %v3105, %v3105
  %v3311 = vmul.f32 %v3108, %v3108
  %v3312 = vmul.f32 %v3113, %v3113
  %v3313 = vmul.f32 %v3116, %v3116
  %v3314 = vmul.f32 %v3121, %v3121
  %v3315 = vmul.f32 %v3124, %v3124
  %v3316 = vmul.f32 %v3129, %v3129
  %v3317 = vmul.f32 %v3132, %v3132
  %v3318 = vmul.f32 %v3137, %v3137
  %v3319 = vmul.f32 %v3140, %v3140
  %v3320 = vmul.f32 %v3145, %v3145
  %v3321 = vmul.f32 %v3148, %v3148
  %v3322 = vmul.f32 %v3153, %v3153
  %v3323 = vmul.f32 %v3156, %v3156
  %v3324 = vmul.f32 %v3161, %v3161
  %v3325 = vmul.f32 %v3164, %v3164
  %v3326 = vsel %vm644, %v3276, 0.0
  %v3327 = vsel %vm644, %v3277, 0.0
  %v3328 = vadd.f32 %v3326, %v3327
  %v3329 = vsel %vm644, %v3278, 0.0
  %v3330 = vadd.f32 %v3328, %v3329
  %v3331 = vsel %vm644, %v3279, 0.0
  %v3332 = vadd.f32 %v3330, %v3331
  %v3333 = vsel %vm644, %v3280, 0.0
  %v3334 = vadd.f32 %v3332, %v3333
  %v3335 = vsel %vm644, %v3281, 0.0
  %v3336 = vadd.f32 %v3334, %v3335
  %v3337 = vsel %vm644, %v3282, 0.0
  %v3338 = vadd.f32 %v3336, %v3337
  %v3339 = vsel %vm644, %v3283, 0.0
  %v3340 = vadd.f32 %v3338, %v3339
  %v3341 = vsel %vm644, %v3284, 0.0
  %v3342 = vadd.f32 %v3340, %v3341
  %v3343 = vsel %vm644, %v3285, 0.0
  %v3344 = vadd.f32 %v3342, %v3343
  %v3345 = vsel %vm644, %v3286, 0.0
  %v3346 = vadd.f32 %v3344, %v3345
  %v3347 = vsel %vm644, %v3287, 0.0
  %v3348 = vadd.f32 %v3346, %v3347
  %v3349 = vsel %vm644, %v3288, 0.0
  %v3350 = vadd.f32 %v3348, %v3349
  %v3351 = vsel %vm644, %v3289, 0.0
  %v3352 = vadd.f32 %v3350, %v3351
  %v3353 = vsel %vm644, %v3290, 0.0
  %v3354 = vadd.f32 %v3352, %v3353
  %v3355 = vsel %vm644, %v3291, 0.0
  %v3356 = vadd.f32 %v3354, %v3355
  %v3357 = vsel %vm644, %v3292, 0.0
  %v3358 = vadd.f32 %v3356, %v3357
  %v3359 = vsel %vm644, %v3293, 0.0
  %v3360 = vadd.f32 %v3358, %v3359
  %v3361 = vsel %vm644, %v3294, 0.0
  %v3362 = vadd.f32 %v3360, %v3361
  %v3363 = vsel %vm644, %v3295, 0.0
  %v3364 = vadd.f32 %v3362, %v3363
  %v3365 = vsel %vm644, %v3296, 0.0
  %v3366 = vadd.f32 %v3364, %v3365
  %v3367 = vsel %vm644, %v3297, 0.0
  %v3368 = vadd.f32 %v3366, %v3367
  %v3369 = vsel %vm644, %v3298, 0.0
  %v3370 = vadd.f32 %v3368, %v3369
  %v3371 = vsel %vm644, %v3299, 0.0
  %v3372 = vadd.f32 %v3370, %v3371
  %v3373 = vsel %vm644, %v3300, 0.0
  %v3374 = vadd.f32 %v3372, %v3373
  %v3375 = vsel %vm644, %v3301, 0.0
  %v3376 = vadd.f32 %v3374, %v3375
  %v3377 = vsel %vm644, %v3302, 0.0
  %v3378 = vadd.f32 %v3376, %v3377
  %v3379 = vsel %vm644, %v3303, 0.0
  %v3380 = vadd.f32 %v3378, %v3379
  %v3381 = vsel %vm644, %v3304, 0.0
  %v3382 = vadd.f32 %v3380, %v3381
  %v3383 = vsel %vm644, %v3305, 0.0
  %v3384 = vadd.f32 %v3382, %v3383
  %v3385 = vsel %vm644, %v3306, 0.0
  %v3386 = vadd.f32 %v3384, %v3385
  %v3387 = vsel %vm644, %v3307, 0.0
  %v3388 = vadd.f32 %v3386, %v3387
  %v3389 = vsel %vm644, %v3308, 0.0
  %v3390 = vadd.f32 %v3388, %v3389
  %v3391 = vsel %vm644, %v3309, 0.0
  %v3392 = vadd.f32 %v3390, %v3391
  %v3393 = vsel %vm644, %v3310, 0.0
  %v3394 = vadd.f32 %v3392, %v3393
  %v3395 = vsel %vm644, %v3311, 0.0
  %v3396 = vadd.f32 %v3394, %v3395
  %v3397 = vsel %vm644, %v3312, 0.0
  %v3398 = vadd.f32 %v3396, %v3397
  %v3399 = vsel %vm644, %v3313, 0.0
  %v3400 = vadd.f32 %v3398, %v3399
  %v3401 = vsel %vm644, %v3314, 0.0
  %v3402 = vadd.f32 %v3400, %v3401
  %v3403 = vsel %vm644, %v3315, 0.0
  %v3404 = vadd.f32 %v3402, %v3403
  %v3405 = vsel %vm644, %v3316, 0.0
  %v3406 = vadd.f32 %v3404, %v3405
  %v3407 = vsel %vm644, %v3317, 0.0
  %v3408 = vadd.f32 %v3406, %v3407
  %v3409 = vsel %vm644, %v3318, 0.0
  %v3410 = vadd.f32 %v3408, %v3409
  %v3411 = vsel %vm644, %v3319, 0.0
  %v3412 = vadd.f32 %v3410, %v3411
  %v3413 = vsel %vm644, %v3320, 0.0
  %v3414 = vadd.f32 %v3412, %v3413
  %v3415 = vsel %vm644, %v3321, 0.0
  %v3416 = vadd.f32 %v3414, %v3415
  %v3417 = vsel %vm644, %v3322, 0.0
  %v3418 = vadd.f32 %v3416, %v3417
  %v3419 = vsel %vm644, %v3323, 0.0
  %v3420 = vadd.f32 %v3418, %v3419
  %v3421 = vsel %vm644, %v3324, 0.0
  %v3422 = vadd.f32 %v3420, %v3421
  %v3423 = vsel %vm644, %v3325, 0.0
  %v3424 = vadd.f32 %v3422, %v3423
  %3425 = vadd.xlane.f32.xlu0 %v3424
  %v3426 = vpop.xlane.xlu0 %3425
  %v3427 = vrot.slane %v3426, 4
  %v3428 = vadd.f32 %v3426, %v3427
  %v3429 = vrot.slane %v3428, 2
  %v3430 = vadd.f32 %v3428, %v3429
  %v3431 = vrot.slane %v3430, 1
  %v3432 = vadd.f32 %v3430, %v3431
  %s3433 = vtos %v3432
  %s3434 = smul.f32 %s3433, 7.8125e-05
  %s3435 = smul.f32 %s3275, %s3275
  %s3436 = ssub.f32 %s3434, %s3435
  %v3437 = vstv %s3275
  %v3438 = vsub.f32 %v2969, %v3437
  %v3439 = vsub.f32 %v2972, %v3437
  %v3440 = vsub.f32 %v2977, %v3437
  %v3441 = vsub.f32 %v2980, %v3437
  %v3442 = vsub.f32 %v2985, %v3437
  %v3443 = vsub.f32 %v2988, %v3437
  %v3444 = vsub.f32 %v2993, %v3437
  %v3445 = vsub.f32 %v2996, %v3437
  %v3446 = vsub.f32 %v3001, %v3437
  %v3447 = vsub.f32 %v3004, %v3437
  %v3448 = vsub.f32 %v3009, %v3437
  %v3449 = vsub.f32 %v3012, %v3437
  %v3450 = vsub.f32 %v3017, %v3437
  %v3451 = vsub.f32 %v3020, %v3437
  %v3452 = vsub.f32 %v3025, %v3437
  %v3453 = vsub.f32 %v3028, %v3437
  %v3454 = vsub.f32 %v3033, %v3437
  %v3455 = vsub.f32 %v3036, %v3437
  %v3456 = vsub.f32 %v3041, %v3437
  %v3457 = vsub.f32 %v3044, %v3437
  %v3458 = vsub.f32 %v3049, %v3437
  %v3459 = vsub.f32 %v3052, %v3437
  %v3460 = vsub.f32 %v3057, %v3437
  %v3461 = vsub.f32 %v3060, %v3437
  %v3462 = vsub.f32 %v3065, %v3437
  %v3463 = vsub.f32 %v3068, %v3437
  %v3464 = vsub.f32 %v3073, %v3437
  %v3465 = vsub.f32 %v3076, %v3437
  %v3466 = vsub.f32 %v3081, %v3437
  %v3467 = vsub.f32 %v3084, %v3437
  %v3468 = vsub.f32 %v3089, %v3437
  %v3469 = vsub.f32 %v3092, %v3437
  %v3470 = vsub.f32 %v3097, %v3437
  %v3471 = vsub.f32 %v3100, %v3437
  %v3472 = vsub.f32 %v3105, %v3437
  %v3473 = vsub.f32 %v3108, %v3437
  %v3474 = vsub.f32 %v3113, %v3437
  %v3475 = vsub.f32 %v3116, %v3437
  %v3476 = vsub.f32 %v3121, %v3437
  %v3477 = vsub.f32 %v3124, %v3437
  %v3478 = vsub.f32 %v3129, %v3437
  %v3479 = vsub.f32 %v3132, %v3437
  %v3480 = vsub.f32 %v3137, %v3437
  %v3481 = vsub.f32 %v3140, %v3437
  %v3482 = vsub.f32 %v3145, %v3437
  %v3483 = vsub.f32 %v3148, %v3437
  %v3484 = vsub.f32 %v3153, %v3437
  %v3485 = vsub.f32 %v3156, %v3437
  %v3486 = vsub.f32 %v3161, %v3437
  %v3487 = vsub.f32 %v3164, %v3437
  %s3488 = sadd.f32 %s3436, 1e-05
  %v3489 = vstv %s3488
  %v3490 = vrsqrt.pop %v3489
  %s3491 = vtos %v3490
  %v3492 = vstv %s3491
  %v3493 = vmul.f32 %v3438, %v3492
  %v3494 = vmul.f32 %v3439, %v3492
  %v3495 = vmul.f32 %v3440, %v3492
  %v3496 = vmul.f32 %v3441, %v3492
  %v3497 = vmul.f32 %v3442, %v3492
  %v3498 = vmul.f32 %v3443, %v3492
  %v3499 = vmul.f32 %v3444, %v3492
  %v3500 = vmul.f32 %v3445, %v3492
  %v3501 = vmul.f32 %v3446, %v3492
  %v3502 = vmul.f32 %v3447, %v3492
  %v3503 = vmul.f32 %v3448, %v3492
  %v3504 = vmul.f32 %v3449, %v3492
  %v3505 = vmul.f32 %v3450, %v3492
  %v3506 = vmul.f32 %v3451, %v3492
  %v3507 = vmul.f32 %v3452, %v3492
  %v3508 = vmul.f32 %v3453, %v3492
  %v3509 = vmul.f32 %v3454, %v3492
  %v3510 = vmul.f32 %v3455, %v3492
  %v3511 = vmul.f32 %v3456, %v3492
  %v3512 = vmul.f32 %v3457, %v3492
  %v3513 = vmul.f32 %v3458, %v3492
  %v3514 = vmul.f32 %v3459, %v3492
  %v3515 = vmul.f32 %v3460, %v3492
  %v3516 = vmul.f32 %v3461, %v3492
  %v3517 = vmul.f32 %v3462, %v3492
  %v3518 = vmul.f32 %v3463, %v3492
  %v3519 = vmul.f32 %v3464, %v3492
  %v3520 = vmul.f32 %v3465, %v3492
  %v3521 = vmul.f32 %v3466, %v3492
  %v3522 = vmul.f32 %v3467, %v3492
  %v3523 = vmul.f32 %v3468, %v3492
  %v3524 = vmul.f32 %v3469, %v3492
  %v3525 = vmul.f32 %v3470, %v3492
  %v3526 = vmul.f32 %v3471, %v3492
  %v3527 = vmul.f32 %v3472, %v3492
  %v3528 = vmul.f32 %v3473, %v3492
  %v3529 = vmul.f32 %v3474, %v3492
  %v3530 = vmul.f32 %v3475, %v3492
  %v3531 = vmul.f32 %v3476, %v3492
  %v3532 = vmul.f32 %v3477, %v3492
  %v3533 = vmul.f32 %v3478, %v3492
  %v3534 = vmul.f32 %v3479, %v3492
  %v3535 = vmul.f32 %v3480, %v3492
  %v3536 = vmul.f32 %v3481, %v3492
  %v3537 = vmul.f32 %v3482, %v3492
  %v3538 = vmul.f32 %v3483, %v3492
  %v3539 = vmul.f32 %v3484, %v3492
  %v3540 = vmul.f32 %v3485, %v3492
  %v3541 = vmul.f32 %v3486, %v3492
  %v3542 = vmul.f32 %v3487, %v3492
  %v3543 = vmul.f32 %v3493, %v30
  %v3544 = vmul.f32 %v3494, %v31
  %v3545 = vmul.f32 %v3495, %v32
  %v3546 = vmul.f32 %v3496, %v33
  %v3547 = vmul.f32 %v3497, %v34
  %v3548 = vmul.f32 %v3498, %v35
  %v3549 = vmul.f32 %v3499, %v36
  %v3550 = vmul.f32 %v3500, %v37
  %v3551 = vmul.f32 %v3501, %v38
  %v3552 = vmul.f32 %v3502, %v39
  %v3553 = vmul.f32 %v3503, %v40
  %v3554 = vmul.f32 %v3504, %v41
  %v3555 = vmul.f32 %v3505, %v42
  %v3556 = vmul.f32 %v3506, %v43
  %v3557 = vmul.f32 %v3507, %v44
  %v3558 = vmul.f32 %v3508, %v45
  %v3559 = vmul.f32 %v3509, %v46
  %v3560 = vmul.f32 %v3510, %v47
  %v3561 = vmul.f32 %v3511, %v48
  %v3562 = vmul.f32 %v3512, %v49
  %v3563 = vmul.f32 %v3513, %v50
  %v3564 = vmul.f32 %v3514, %v51
  %v3565 = vmul.f32 %v3515, %v52
  %v3566 = vmul.f32 %v3516, %v53
  %v3567 = vmul.f32 %v3517, %v54
  %v3568 = vmul.f32 %v3518, %v55
  %v3569 = vmul.f32 %v3519, %v56
  %v3570 = vmul.f32 %v3520, %v57
  %v3571 = vmul.f32 %v3521, %v58
  %v3572 = vmul.f32 %v3522, %v59
  %v3573 = vmul.f32 %v3523, %v60
  %v3574 = vmul.f32 %v3524, %v61
  %v3575 = vmul.f32 %v3525, %v62
  %v3576 = vmul.f32 %v3526, %v63
  %v3577 = vmul.f32 %v3527, %v64
  %v3578 = vmul.f32 %v3528, %v65
  %v3579 = vmul.f32 %v3529, %v66
  %v3580 = vmul.f32 %v3530, %v67
  %v3581 = vmul.f32 %v3531, %v68
  %v3582 = vmul.f32 %v3532, %v69
  %v3583 = vmul.f32 %v3533, %v70
  %v3584 = vmul.f32 %v3534, %v71
  %v3585 = vmul.f32 %v3535, %v72
  %v3586 = vmul.f32 %v3536, %v73
  %v3587 = vmul.f32 %v3537, %v74
  %v3588 = vmul.f32 %v3538, %v75
  %v3589 = vmul.f32 %v3539, %v76
  %v3590 = vmul.f32 %v3540, %v77
  %v3591 = vmul.f32 %v3541, %v78
  %v3592 = vmul.f32 %v3542, %v79
  %v3593 = vadd.f32 %v3543, %v80
  %v3594 = vadd.f32 %v3544, %v81
  %v3595 = vadd.f32 %v3545, %v82
  %v3596 = vadd.f32 %v3546, %v83
  %v3597 = vadd.f32 %v3547, %v84
  %v3598 = vadd.f32 %v3548, %v85
  %v3599 = vadd.f32 %v3549, %v86
  %v3600 = vadd.f32 %v3550, %v87
  %v3601 = vadd.f32 %v3551, %v88
  %v3602 = vadd.f32 %v3552, %v89
  %v3603 = vadd.f32 %v3553, %v90
  %v3604 = vadd.f32 %v3554, %v91
  %v3605 = vadd.f32 %v3555, %v92
  %v3606 = vadd.f32 %v3556, %v93
  %v3607 = vadd.f32 %v3557, %v94
  %v3608 = vadd.f32 %v3558, %v95
  %v3609 = vadd.f32 %v3559, %v96
  %v3610 = vadd.f32 %v3560, %v97
  %v3611 = vadd.f32 %v3561, %v98
  %v3612 = vadd.f32 %v3562, %v99
  %v3613 = vadd.f32 %v3563, %v100
  %v3614 = vadd.f32 %v3564, %v101
  %v3615 = vadd.f32 %v3565, %v102
  %v3616 = vadd.f32 %v3566, %v103
  %v3617 = vadd.f32 %v3567, %v104
  %v3618 = vadd.f32 %v3568, %v105
  %v3619 = vadd.f32 %v3569, %v106
  %v3620 = vadd.f32 %v3570, %v107
  %v3621 = vadd.f32 %v3571, %v108
  %v3622 = vadd.f32 %v3572, %v109
  %v3623 = vadd.f32 %v3573, %v110
  %v3624 = vadd.f32 %v3574, %v111
  %v3625 = vadd.f32 %v3575, %v112
  %v3626 = vadd.f32 %v3576, %v113
  %v3627 = vadd.f32 %v3577, %v114
  %v3628 = vadd.f32 %v3578, %v115
  %v3629 = vadd.f32 %v3579, %v116
  %v3630 = vadd.f32 %v3580, %v117
  %v3631 = vadd.f32 %v3581, %v118
  %v3632 = vadd.f32 %v3582, %v119
  %v3633 = vadd.f32 %v3583, %v120
  %v3634 = vadd.f32 %v3584, %v121
  %v3635 = vadd.f32 %v3585, %v122
  %v3636 = vadd.f32 %v3586, %v123
  %v3637 = vadd.f32 %v3587, %v124
  %v3638 = vadd.f32 %v3588, %v125
  %v3639 = vadd.f32 %v3589, %v126
  %v3640 = vadd.f32 %v3590, %v127
  %v3641 = vadd.f32 %v3591, %v128
  %v3642 = vadd.f32 %v3592, %v129
  %v3643 = vmax.f32 %v3593, 0.0
  %v3644 = vmax.f32 %v3594, 0.0
  %v3645 = vmax.f32 %v3595, 0.0
  %v3646 = vmax.f32 %v3596, 0.0
  %v3647 = vmax.f32 %v3597, 0.0
  %v3648 = vmax.f32 %v3598, 0.0
  %v3649 = vmax.f32 %v3599, 0.0
  %v3650 = vmax.f32 %v3600, 0.0
  %v3651 = vmax.f32 %v3601, 0.0
  %v3652 = vmax.f32 %v3602, 0.0
  %v3653 = vmax.f32 %v3603, 0.0
  %v3654 = vmax.f32 %v3604, 0.0
  %v3655 = vmax.f32 %v3605, 0.0
  %v3656 = vmax.f32 %v3606, 0.0
  %v3657 = vmax.f32 %v3607, 0.0
  %v3658 = vmax.f32 %v3608, 0.0
  %v3659 = vmax.f32 %v3609, 0.0
  %v3660 = vmax.f32 %v3610, 0.0
  %v3661 = vmax.f32 %v3611, 0.0
  %v3662 = vmax.f32 %v3612, 0.0
  %v3663 = vmax.f32 %v3613, 0.0
  %v3664 = vmax.f32 %v3614, 0.0
  %v3665 = vmax.f32 %v3615, 0.0
  %v3666 = vmax.f32 %v3616, 0.0
  %v3667 = vmax.f32 %v3617, 0.0
  %v3668 = vmax.f32 %v3618, 0.0
  %v3669 = vmax.f32 %v3619, 0.0
  %v3670 = vmax.f32 %v3620, 0.0
  %v3671 = vmax.f32 %v3621, 0.0
  %v3672 = vmax.f32 %v3622, 0.0
  %v3673 = vmax.f32 %v3623, 0.0
  %v3674 = vmax.f32 %v3624, 0.0
  %v3675 = vmax.f32 %v3625, 0.0
  %v3676 = vmax.f32 %v3626, 0.0
  %v3677 = vmax.f32 %v3627, 0.0
  %v3678 = vmax.f32 %v3628, 0.0
  %v3679 = vmax.f32 %v3629, 0.0
  %v3680 = vmax.f32 %v3630, 0.0
  %v3681 = vmax.f32 %v3631, 0.0
  %v3682 = vmax.f32 %v3632, 0.0
  %v3683 = vmax.f32 %v3633, 0.0
  %v3684 = vmax.f32 %v3634, 0.0
  %v3685 = vmax.f32 %v3635, 0.0
  %v3686 = vmax.f32 %v3636, 0.0
  %v3687 = vmax.f32 %v3637, 0.0
  %v3688 = vmax.f32 %v3638, 0.0
  %v3689 = vmax.f32 %v3639, 0.0
  %v3690 = vmax.f32 %v3640, 0.0
  %v3691 = vmax.f32 %v3641, 0.0
  %v3692 = vmax.f32 %v3642, 0.0
  %v3693 = vpack.c.bf16 %v3644, %v3643
  %v3694 = vpack.c.bf16 %v3646, %v3645
  %v3695 = vpack.c.bf16 %v3648, %v3647
  %v3696 = vpack.c.bf16 %v3650, %v3649
  %v3697 = vpack.c.bf16 %v3652, %v3651
  %v3698 = vpack.c.bf16 %v3654, %v3653
  %v3699 = vpack.c.bf16 %v3656, %v3655
  %v3700 = vpack.c.bf16 %v3658, %v3657
  %v3701 = vpack.c.bf16 %v3660, %v3659
  %v3702 = vpack.c.bf16 %v3662, %v3661
  %v3703 = vpack.c.bf16 %v3664, %v3663
  %v3704 = vpack.c.bf16 %v3666, %v3665
  %v3705 = vpack.c.bf16 %v3668, %v3667
  %v3706 = vpack.c.bf16 %v3670, %v3669
  %v3707 = vpack.c.bf16 %v3672, %v3671
  %v3708 = vpack.c.bf16 %v3674, %v3673
  %v3709 = vpack.c.bf16 %v3676, %v3675
  %v3710 = vpack.c.bf16 %v3678, %v3677
  %v3711 = vpack.c.bf16 %v3680, %v3679
  %v3712 = vpack.c.bf16 %v3682, %v3681
  %v3713 = vpack.c.bf16 %v3684, %v3683
  %v3714 = vpack.c.bf16 %v3686, %v3685
  %v3715 = vpack.c.bf16 %v3688, %v3687
  %v3716 = vpack.c.bf16 %v3690, %v3689
  %v3717 = vpack.c.bf16 %v3692, %v3691
  %v3743 = vunpack.c.l.b16 %v3693
  %v3744 = vunpack.c.h.b16 %v3693
  %v3745 = vunpack.c.l.b16 %v3694
  %v3746 = vunpack.c.h.b16 %v3694
  %v3747 = vunpack.c.l.b16 %v3695
  %v3748 = vunpack.c.h.b16 %v3695
  %v3749 = vunpack.c.l.b16 %v3696
  %v3750 = vunpack.c.h.b16 %v3696
  %v3751 = vunpack.c.l.b16 %v3697
  %v3752 = vunpack.c.h.b16 %v3697
  %v3753 = vunpack.c.l.b16 %v3698
  %v3754 = vunpack.c.h.b16 %v3698
  %v3755 = vunpack.c.l.b16 %v3699
  %v3756 = vunpack.c.h.b16 %v3699
  %v3757 = vunpack.c.l.b16 %v3700
  %v3758 = vunpack.c.h.b16 %v3700
  %v3759 = vunpack.c.l.b16 %v3701
  %v3760 = vunpack.c.h.b16 %v3701
  %v3761 = vunpack.c.l.b16 %v3702
  %v3762 = vunpack.c.h.b16 %v3702
  %v3763 = vunpack.c.l.b16 %v3703
  %v3764 = vunpack.c.h.b16 %v3703
  %v3765 = vunpack.c.l.b16 %v3704
  %v3766 = vunpack.c.h.b16 %v3704
  %v3767 = vunpack.c.l.b16 %v3705
  %v3768 = vunpack.c.h.b16 %v3705
  %v3769 = vunpack.c.l.b16 %v3706
  %v3770 = vunpack.c.h.b16 %v3706
  %v3771 = vunpack.c.l.b16 %v3707
  %v3772 = vunpack.c.h.b16 %v3707
  %v3773 = vunpack.c.l.b16 %v3708
  %v3774 = vunpack.c.h.b16 %v3708
  %v3775 = vunpack.c.l.b16 %v3709
  %v3776 = vunpack.c.h.b16 %v3709
  %v3777 = vunpack.c.l.b16 %v3710
  %v3778 = vunpack.c.h.b16 %v3710
  %v3779 = vunpack.c.l.b16 %v3711
  %v3780 = vunpack.c.h.b16 %v3711
  %v3781 = vunpack.c.l.b16 %v3712
  %v3782 = vunpack.c.h.b16 %v3712
  %v3783 = vunpack.c.l.b16 %v3713
  %v3784 = vunpack.c.h.b16 %v3713
  %v3785 = vunpack.c.l.b16 %v3714
  %v3786 = vunpack.c.h.b16 %v3714
  %v3787 = vunpack.c.l.b16 %v3715
  %v3788 = vunpack.c.h.b16 %v3715
  %v3789 = vunpack.c.l.b16 %v3716
  %v3790 = vunpack.c.h.b16 %v3716
  %v3791 = vunpack.c.l.b16 %v3717
  %v3792 = vunpack.c.h.b16 %v3717
  %v3793 = vpack.c.b16 %v3743, %v3743
  %v3794 = vpack.c.b16 %v3744, %v3744
  %v3795 = vpack.c.b16 %v3745, %v3745
  %v3796 = vpack.c.b16 %v3746, %v3746
  %v3797 = vpack.c.b16 %v3747, %v3747
  %v3798 = vpack.c.b16 %v3748, %v3748
  %v3799 = vpack.c.b16 %v3749, %v3749
  %v3800 = vpack.c.b16 %v3750, %v3750
  %v3801 = vpack.c.b16 %v3751, %v3751
  %v3802 = vpack.c.b16 %v3752, %v3752
  %v3803 = vpack.c.b16 %v3753, %v3753
  %v3804 = vpack.c.b16 %v3754, %v3754
  %v3805 = vpack.c.b16 %v3755, %v3755
  %v3806 = vpack.c.b16 %v3756, %v3756
  %v3807 = vpack.c.b16 %v3757, %v3757
  %v3808 = vpack.c.b16 %v3758, %v3758
  %v3809 = vpack.c.b16 %v3759, %v3759
  %v3810 = vpack.c.b16 %v3760, %v3760
  %v3811 = vpack.c.b16 %v3761, %v3761
  %v3812 = vpack.c.b16 %v3762, %v3762
  %v3813 = vpack.c.b16 %v3763, %v3763
  %v3814 = vpack.c.b16 %v3764, %v3764
  %v3815 = vpack.c.b16 %v3765, %v3765
  %v3816 = vpack.c.b16 %v3766, %v3766
  %v3817 = vpack.c.b16 %v3767, %v3767
  %v3818 = vpack.c.b16 %v3768, %v3768
  %v3819 = vpack.c.b16 %v3769, %v3769
  %v3820 = vpack.c.b16 %v3770, %v3770
  %v3821 = vpack.c.b16 %v3771, %v3771
  %v3822 = vpack.c.b16 %v3772, %v3772
  %v3823 = vpack.c.b16 %v3773, %v3773
  %v3824 = vpack.c.b16 %v3774, %v3774
  %v3825 = vpack.c.b16 %v3775, %v3775
  %v3826 = vpack.c.b16 %v3776, %v3776
  %v3827 = vpack.c.b16 %v3777, %v3777
  %v3828 = vpack.c.b16 %v3778, %v3778
  %v3829 = vpack.c.b16 %v3779, %v3779
  %v3830 = vpack.c.b16 %v3780, %v3780
  %v3831 = vpack.c.b16 %v3781, %v3781
  %v3832 = vpack.c.b16 %v3782, %v3782
  %v3833 = vpack.c.b16 %v3783, %v3783
  %v3834 = vpack.c.b16 %v3784, %v3784
  %v3835 = vpack.c.b16 %v3785, %v3785
  %v3836 = vpack.c.b16 %v3786, %v3786
  %v3837 = vpack.c.b16 %v3787, %v3787
  %v3838 = vpack.c.b16 %v3788, %v3788
  %v3839 = vpack.c.b16 %v3789, %v3789
  %v3840 = vpack.c.b16 %v3790, %v3790
  %v3841 = vpack.c.b16 %v3791, %v3791
  %v3842 = vpack.c.b16 %v3792, %v3792
  %s3893 = scalar_lea.vmem %s5, 400
  %3894 = vst.msk [vmem:[%s3893] sm:$0xf] %vm1371, %v3793
  %3895 = vst.msk [vmem:[%s3893 + $0x4] sm:$0xf] %vm1371, %v3794
  %3896 = vst.msk [vmem:[%s3893 + $0x8] sm:$0xf] %vm1371, %v3795
  %3897 = vst.msk [vmem:[%s3893 + $0xc] sm:$0xf] %vm1371, %v3796
  %3898 = vst.msk [vmem:[%s3893 + $0x10] sm:$0xf] %vm1371, %v3797
  %3899 = vst.msk [vmem:[%s3893 + $0x14] sm:$0xf] %vm1371, %v3798
  %3900 = vst.msk [vmem:[%s3893 + $0x18] sm:$0xf] %vm1371, %v3799
  %3901 = vst.msk [vmem:[%s3893 + $0x1c] sm:$0xf] %vm1371, %v3800
  %3902 = vst.msk [vmem:[%s3893 + $0x20] sm:$0xf] %vm1371, %v3801
  %3903 = vst.msk [vmem:[%s3893 + $0x24] sm:$0xf] %vm1371, %v3802
  %3904 = vst.msk [vmem:[%s3893 + $0x28] sm:$0xf] %vm1371, %v3803
  %3905 = vst.msk [vmem:[%s3893 + $0x2c] sm:$0xf] %vm1371, %v3804
  %3906 = vst.msk [vmem:[%s3893 + $0x30] sm:$0xf] %vm1371, %v3805
  %3907 = vst.msk [vmem:[%s3893 + $0x34] sm:$0xf] %vm1371, %v3806
  %3908 = vst.msk [vmem:[%s3893 + $0x38] sm:$0xf] %vm1371, %v3807
  %3909 = vst.msk [vmem:[%s3893 + $0x3c] sm:$0xf] %vm1371, %v3808
  %3910 = vst.msk [vmem:[%s3893 + $0x40] sm:$0xf] %vm1371, %v3809
  %3911 = vst.msk [vmem:[%s3893 + $0x44] sm:$0xf] %vm1371, %v3810
  %3912 = vst.msk [vmem:[%s3893 + $0x48] sm:$0xf] %vm1371, %v3811
  %3913 = vst.msk [vmem:[%s3893 + $0x4c] sm:$0xf] %vm1371, %v3812
  %3914 = vst.msk [vmem:[%s3893 + $0x50] sm:$0xf] %vm1371, %v3813
  %3915 = vst.msk [vmem:[%s3893 + $0x54] sm:$0xf] %vm1371, %v3814
  %3916 = vst.msk [vmem:[%s3893 + $0x58] sm:$0xf] %vm1371, %v3815
  %3917 = vst.msk [vmem:[%s3893 + $0x5c] sm:$0xf] %vm1371, %v3816
  %3918 = vst.msk [vmem:[%s3893 + $0x60] sm:$0xf] %vm1371, %v3817
  %3919 = vst.msk [vmem:[%s3893 + $0x64] sm:$0xf] %vm1371, %v3818
  %3920 = vst.msk [vmem:[%s3893 + $0x68] sm:$0xf] %vm1371, %v3819
  %3921 = vst.msk [vmem:[%s3893 + $0x6c] sm:$0xf] %vm1371, %v3820
  %3922 = vst.msk [vmem:[%s3893 + $0x70] sm:$0xf] %vm1371, %v3821
  %3923 = vst.msk [vmem:[%s3893 + $0x74] sm:$0xf] %vm1371, %v3822
  %3924 = vst.msk [vmem:[%s3893 + $0x78] sm:$0xf] %vm1371, %v3823
  %3925 = vst.msk [vmem:[%s3893 + $0x7c] sm:$0xf] %vm1371, %v3824
  %3926 = vst.msk [vmem:[%s3893 + $0x80] sm:$0xf] %vm1371, %v3825
  %3927 = vst.msk [vmem:[%s3893 + $0x84] sm:$0xf] %vm1371, %v3826
  %3928 = vst.msk [vmem:[%s3893 + $0x88] sm:$0xf] %vm1371, %v3827
  %3929 = vst.msk [vmem:[%s3893 + $0x8c] sm:$0xf] %vm1371, %v3828
  %3930 = vst.msk [vmem:[%s3893 + $0x90] sm:$0xf] %vm1371, %v3829
  %3931 = vst.msk [vmem:[%s3893 + $0x94] sm:$0xf] %vm1371, %v3830
  %3932 = vst.msk [vmem:[%s3893 + $0x98] sm:$0xf] %vm1371, %v3831
  %3933 = vst.msk [vmem:[%s3893 + $0x9c] sm:$0xf] %vm1371, %v3832
  %3934 = vst.msk [vmem:[%s3893 + $0xa0] sm:$0xf] %vm1371, %v3833
  %3935 = vst.msk [vmem:[%s3893 + $0xa4] sm:$0xf] %vm1371, %v3834
  %3936 = vst.msk [vmem:[%s3893 + $0xa8] sm:$0xf] %vm1371, %v3835
  %3937 = vst.msk [vmem:[%s3893 + $0xac] sm:$0xf] %vm1371, %v3836
  %3938 = vst.msk [vmem:[%s3893 + $0xb0] sm:$0xf] %vm1371, %v3837
  %3939 = vst.msk [vmem:[%s3893 + $0xb4] sm:$0xf] %vm1371, %v3838
  %3940 = vst.msk [vmem:[%s3893 + $0xb8] sm:$0xf] %vm1371, %v3839
  %3941 = vst.msk [vmem:[%s3893 + $0xbc] sm:$0xf] %vm1371, %v3840
  %3942 = vst.msk [vmem:[%s3893 + $0xc0] sm:$0xf] %vm1371, %v3841
  %3943 = vst.msk [vmem:[%s3893 + $0xc4] sm:$0xf] %vm1371, %v3842
  %s3944 = scalar_lea.vmem %s0, 600
  %v3945 = vld [vmem:[%s3944] sm:$0xf]
  %v3946 = vld [vmem:[%s3944 + $0x4] sm:$0xf]
  %v3947 = vld [vmem:[%s3944 + $0x8] sm:$0xf]
  %v3948 = vld [vmem:[%s3944 + $0xc] sm:$0xf]
  %v3949 = vld [vmem:[%s3944 + $0x10] sm:$0xf]
  %v3950 = vld [vmem:[%s3944 + $0x14] sm:$0xf]
  %v3951 = vld [vmem:[%s3944 + $0x18] sm:$0xf]
  %v3952 = vld [vmem:[%s3944 + $0x1c] sm:$0xf]
  %v3953 = vld [vmem:[%s3944 + $0x20] sm:$0xf]
  %v3954 = vld [vmem:[%s3944 + $0x24] sm:$0xf]
  %v3955 = vld [vmem:[%s3944 + $0x28] sm:$0xf]
  %v3956 = vld [vmem:[%s3944 + $0x2c] sm:$0xf]
  %v3957 = vld [vmem:[%s3944 + $0x30] sm:$0xf]
  %v3958 = vld [vmem:[%s3944 + $0x34] sm:$0xf]
  %v3959 = vld [vmem:[%s3944 + $0x38] sm:$0xf]
  %v3960 = vld [vmem:[%s3944 + $0x3c] sm:$0xf]
  %v3961 = vld [vmem:[%s3944 + $0x40] sm:$0xf]
  %v3962 = vld [vmem:[%s3944 + $0x44] sm:$0xf]
  %v3963 = vld [vmem:[%s3944 + $0x48] sm:$0xf]
  %v3964 = vld [vmem:[%s3944 + $0x4c] sm:$0xf]
  %v3965 = vld [vmem:[%s3944 + $0x50] sm:$0xf]
  %v3966 = vld [vmem:[%s3944 + $0x54] sm:$0xf]
  %v3967 = vld [vmem:[%s3944 + $0x58] sm:$0xf]
  %v3968 = vld [vmem:[%s3944 + $0x5c] sm:$0xf]
  %v3969 = vld [vmem:[%s3944 + $0x60] sm:$0xf]
  %v3970 = vld [vmem:[%s3944 + $0x64] sm:$0xf]
  %v3971 = vld [vmem:[%s3944 + $0x68] sm:$0xf]
  %v3972 = vld [vmem:[%s3944 + $0x6c] sm:$0xf]
  %v3973 = vld [vmem:[%s3944 + $0x70] sm:$0xf]
  %v3974 = vld [vmem:[%s3944 + $0x74] sm:$0xf]
  %v3975 = vld [vmem:[%s3944 + $0x78] sm:$0xf]
  %v3976 = vld [vmem:[%s3944 + $0x7c] sm:$0xf]
  %v3977 = vld [vmem:[%s3944 + $0x80] sm:$0xf]
  %v3978 = vld [vmem:[%s3944 + $0x84] sm:$0xf]
  %v3979 = vld [vmem:[%s3944 + $0x88] sm:$0xf]
  %v3980 = vld [vmem:[%s3944 + $0x8c] sm:$0xf]
  %v3981 = vld [vmem:[%s3944 + $0x90] sm:$0xf]
  %v3982 = vld [vmem:[%s3944 + $0x94] sm:$0xf]
  %v3983 = vld [vmem:[%s3944 + $0x98] sm:$0xf]
  %v3984 = vld [vmem:[%s3944 + $0x9c] sm:$0xf]
  %v3985 = vld [vmem:[%s3944 + $0xa0] sm:$0xf]
  %v3986 = vld [vmem:[%s3944 + $0xa4] sm:$0xf]
  %v3987 = vld [vmem:[%s3944 + $0xa8] sm:$0xf]
  %v3988 = vld [vmem:[%s3944 + $0xac] sm:$0xf]
  %v3989 = vld [vmem:[%s3944 + $0xb0] sm:$0xf]
  %v3990 = vld [vmem:[%s3944 + $0xb4] sm:$0xf]
  %v3991 = vld [vmem:[%s3944 + $0xb8] sm:$0xf]
  %v3992 = vld [vmem:[%s3944 + $0xbc] sm:$0xf]
  %v3993 = vld [vmem:[%s3944 + $0xc0] sm:$0xf]
  %v3994 = vld [vmem:[%s3944 + $0xc4] sm:$0xf]
  %v4045 = vunpack.c.l.b16 %v3945
  %v4046 = vunpack.c.l.b16 %v3946
  %v4047 = vunpack.c.l.b16 %v3947
  %v4048 = vunpack.c.l.b16 %v3948
  %v4049 = vunpack.c.l.b16 %v3949
  %v4050 = vunpack.c.l.b16 %v3950
  %v4051 = vunpack.c.l.b16 %v3951
  %v4052 = vunpack.c.l.b16 %v3952
  %v4053 = vunpack.c.l.b16 %v3953
  %v4054 = vunpack.c.l.b16 %v3954
  %v4055 = vunpack.c.l.b16 %v3955
  %v4056 = vunpack.c.l.b16 %v3956
  %v4057 = vunpack.c.l.b16 %v3957
  %v4058 = vunpack.c.l.b16 %v3958
  %v4059 = vunpack.c.l.b16 %v3959
  %v4060 = vunpack.c.l.b16 %v3960
  %v4061 = vunpack.c.l.b16 %v3961
  %v4062 = vunpack.c.l.b16 %v3962
  %v4063 = vunpack.c.l.b16 %v3963
  %v4064 = vunpack.c.l.b16 %v3964
  %v4065 = vunpack.c.l.b16 %v3965
  %v4066 = vunpack.c.l.b16 %v3966
  %v4067 = vunpack.c.l.b16 %v3967
  %v4068 = vunpack.c.l.b16 %v3968
  %v4069 = vunpack.c.l.b16 %v3969
  %v4070 = vunpack.c.l.b16 %v3970
  %v4071 = vunpack.c.l.b16 %v3971
  %v4072 = vunpack.c.l.b16 %v3972
  %v4073 = vunpack.c.l.b16 %v3973
  %v4074 = vunpack.c.l.b16 %v3974
  %v4075 = vunpack.c.l.b16 %v3975
  %v4076 = vunpack.c.l.b16 %v3976
  %v4077 = vunpack.c.l.b16 %v3977
  %v4078 = vunpack.c.l.b16 %v3978
  %v4079 = vunpack.c.l.b16 %v3979
  %v4080 = vunpack.c.l.b16 %v3980
  %v4081 = vunpack.c.l.b16 %v3981
  %v4082 = vunpack.c.l.b16 %v3982
  %v4083 = vunpack.c.l.b16 %v3983
  %v4084 = vunpack.c.l.b16 %v3984
  %v4085 = vunpack.c.l.b16 %v3985
  %v4086 = vunpack.c.l.b16 %v3986
  %v4087 = vunpack.c.l.b16 %v3987
  %v4088 = vunpack.c.l.b16 %v3988
  %v4089 = vunpack.c.l.b16 %v3989
  %v4090 = vunpack.c.l.b16 %v3990
  %v4091 = vunpack.c.l.b16 %v3991
  %v4092 = vunpack.c.l.b16 %v3992
  %v4093 = vunpack.c.l.b16 %v3993
  %v4094 = vunpack.c.l.b16 %v3994
  %v4095 = vpack.c.b16 %v4046, %v4045
  %v4096 = vpack.c.b16 %v4048, %v4047
  %v4097 = vpack.c.b16 %v4050, %v4049
  %v4098 = vpack.c.b16 %v4052, %v4051
  %v4099 = vpack.c.b16 %v4054, %v4053
  %v4100 = vpack.c.b16 %v4056, %v4055
  %v4101 = vpack.c.b16 %v4058, %v4057
  %v4102 = vpack.c.b16 %v4060, %v4059
  %v4103 = vpack.c.b16 %v4062, %v4061
  %v4104 = vpack.c.b16 %v4064, %v4063
  %v4105 = vpack.c.b16 %v4066, %v4065
  %v4106 = vpack.c.b16 %v4068, %v4067
  %v4107 = vpack.c.b16 %v4070, %v4069
  %v4108 = vpack.c.b16 %v4072, %v4071
  %v4109 = vpack.c.b16 %v4074, %v4073
  %v4110 = vpack.c.b16 %v4076, %v4075
  %v4111 = vpack.c.b16 %v4078, %v4077
  %v4112 = vpack.c.b16 %v4080, %v4079
  %v4113 = vpack.c.b16 %v4082, %v4081
  %v4114 = vpack.c.b16 %v4084, %v4083
  %v4115 = vpack.c.b16 %v4086, %v4085
  %v4116 = vpack.c.b16 %v4088, %v4087
  %v4117 = vpack.c.b16 %v4090, %v4089
  %v4118 = vpack.c.b16 %v4092, %v4091
  %v4119 = vpack.c.b16 %v4094, %v4093
  %v4121 = vsel %vm335, %v4095, 0
  %v4124 = vsel %vm335, %v4096, 0
  %v4127 = vsel %vm335, %v4097, 0
  %v4130 = vsel %vm335, %v4098, 0
  %v4133 = vsel %vm335, %v4099, 0
  %v4136 = vsel %vm335, %v4100, 0
  %v4139 = vsel %vm335, %v4101, 0
  %v4142 = vsel %vm335, %v4102, 0
  %v4145 = vsel %vm335, %v4103, 0
  %v4148 = vsel %vm335, %v4104, 0
  %v4151 = vsel %vm335, %v4105, 0
  %v4154 = vsel %vm335, %v4106, 0
  %v4157 = vsel %vm335, %v4107, 0
  %v4160 = vsel %vm335, %v4108, 0
  %v4163 = vsel %vm335, %v4109, 0
  %v4166 = vsel %vm335, %v4110, 0
  %v4169 = vsel %vm335, %v4111, 0
  %v4172 = vsel %vm335, %v4112, 0
  %v4175 = vsel %vm335, %v4113, 0
  %v4178 = vsel %vm335, %v4114, 0
  %v4181 = vsel %vm335, %v4115, 0
  %v4184 = vsel %vm335, %v4116, 0
  %v4187 = vsel %vm335, %v4117, 0
  %v4190 = vsel %vm335, %v4118, 0
  %v4193 = vsel %vm335, %v4119, 0
  %4195 = vmatprep.subr.bf16.mxu0 0
  %4196 = vmatpush1.bf16.msra.mxu0 %v327
  %4197 = vmatprep.subr.bf16.mxu0 0
  %4198 = vmatpush1.bf16.msra.mxu0 %v328
  %4199 = vmatprep.subr.bf16.mxu0 0
  %4200 = vmatpush1.bf16.msra.mxu0 %v329
  %4201 = vmatprep.subr.bf16.mxu0 0
  %4202 = vmatpush1.bf16.msra.mxu0 %v330
  %4203 = vmatprep.subr.bf16.mxu0 0
  %4204 = vmatpush1.bf16.msra.mxu0 0
  %4205 = vmatprep.subr.bf16.mxu0 0
  %4206 = vmatpush1.bf16.msra.mxu0 0
  %4207 = vmatprep.subr.bf16.mxu0 0
  %4208 = vmatpush1.bf16.msra.mxu0 0
  %4209 = vmatprep.subr.bf16.mxu0 0
  %4210 = vmatpush1.bf16.msra.mxu0 0
  %4211 = vmatprep.subr.bf16.mxu0 0
  %4212 = vmatpush1.bf16.msra.mxu0 0
  %4213 = vmatprep.subr.bf16.mxu0 0
  %4214 = vmatpush1.bf16.msra.mxu0 0
  %4215 = vmatprep.subr.bf16.mxu0 0
  %4216 = vmatpush1.bf16.msra.mxu0 0
  %4217 = vmatprep.subr.bf16.mxu0 0
  %4218 = vmatpush1.bf16.msra.mxu0 0
  %4219 = vmatprep.subr.bf16.mxu0 0
  %4220 = vmatpush1.bf16.msra.mxu0 0
  %4221 = vmatprep.subr.bf16.mxu0 0
  %4222 = vmatpush1.bf16.msra.mxu0 0
  %4223 = vmatprep.subr.bf16.mxu0 0
  %4224 = vmatpush1.bf16.msra.mxu0 0
  %4225 = vmatprep.subr.bf16.mxu0 0
  %4226 = vmatpush1.bf16.msra.mxu0 0
  %4227 = vmatprep.mubr.bf16.mxu0 0
  %4228 = vmatmul.mubr.bf16.gmra.mrb[0].mxu0 %v4121
  %v4229 = vpop.f32.mrb[0].mxu0
  %v4230 = vadd.f32 %v184, %v4229
  %v4231 = vpop.f32.mrb[0].mxu0
  %v4232 = vpop.f32.mrb[0].mxu0
  %v4233 = vadd.f32 %v184, %v4232
  %v4234 = vpop.f32.mrb[0].mxu0
  %4235 = vmatprep.mubr.bf16.mxu0 0
  %4236 = vmatmul.mubr.bf16.gmra.mrb[0].mxu0 %v4124
  %v4237 = vpop.f32.mrb[0].mxu0
  %v4238 = vadd.f32 %v184, %v4237
  %v4239 = vpop.f32.mrb[0].mxu0
  %v4240 = vpop.f32.mrb[0].mxu0
  %v4241 = vadd.f32 %v184, %v4240
  %v4242 = vpop.f32.mrb[0].mxu0
  %4243 = vmatprep.mubr.bf16.mxu0 0
  %4244 = vmatmul.mubr.bf16.gmra.mrb[0].mxu0 %v4127
  %v4245 = vpop.f32.mrb[0].mxu0
  %v4246 = vadd.f32 %v184, %v4245
  %v4247 = vpop.f32.mrb[0].mxu0
  %v4248 = vpop.f32.mrb[0].mxu0
  %v4249 = vadd.f32 %v184, %v4248
  %v4250 = vpop.f32.mrb[0].mxu0
  %4251 = vmatprep.mubr.bf16.mxu0 0
  %4252 = vmatmul.mubr.bf16.gmra.mrb[0].mxu0 %v4130
  %v4253 = vpop.f32.mrb[0].mxu0
  %v4254 = vadd.f32 %v184, %v4253
  %v4255 = vpop.f32.mrb[0].mxu0
  %v4256 = vpop.f32.mrb[0].mxu0
  %v4257 = vadd.f32 %v184, %v4256
  %v4258 = vpop.f32.mrb[0].mxu0
  %4259 = vmatprep.mubr.bf16.mxu0 0
  %4260 = vmatmul.mubr.bf16.gmra.mrb[0].mxu0 %v4133
  %v4261 = vpop.f32.mrb[0].mxu0
  %v4262 = vadd.f32 %v184, %v4261
  %v4263 = vpop.f32.mrb[0].mxu0
  %v4264 = vpop.f32.mrb[0].mxu0
  %v4265 = vadd.f32 %v184, %v4264
  %v4266 = vpop.f32.mrb[0].mxu0
  %4267 = vmatprep.mubr.bf16.mxu0 0
  %4268 = vmatmul.mubr.bf16.gmra.mrb[0].mxu0 %v4136
  %v4269 = vpop.f32.mrb[0].mxu0
  %v4270 = vadd.f32 %v184, %v4269
  %v4271 = vpop.f32.mrb[0].mxu0
  %v4272 = vpop.f32.mrb[0].mxu0
  %v4273 = vadd.f32 %v184, %v4272
  %v4274 = vpop.f32.mrb[0].mxu0
  %4275 = vmatprep.mubr.bf16.mxu0 0
  %4276 = vmatmul.mubr.bf16.gmra.mrb[0].mxu0 %v4139
  %v4277 = vpop.f32.mrb[0].mxu0
  %v4278 = vadd.f32 %v184, %v4277
  %v4279 = vpop.f32.mrb[0].mxu0
  %v4280 = vpop.f32.mrb[0].mxu0
  %v4281 = vadd.f32 %v184, %v4280
  %v4282 = vpop.f32.mrb[0].mxu0
  %4283 = vmatprep.mubr.bf16.mxu0 0
  %4284 = vmatmul.mubr.bf16.gmra.mrb[0].mxu0 %v4142
  %v4285 = vpop.f32.mrb[0].mxu0
  %v4286 = vadd.f32 %v184, %v4285
  %v4287 = vpop.f32.mrb[0].mxu0
  %v4288 = vpop.f32.mrb[0].mxu0
  %v4289 = vadd.f32 %v184, %v4288
  %v4290 = vpop.f32.mrb[0].mxu0
  %4291 = vmatprep.mubr.bf16.mxu0 0
  %4292 = vmatmul.mubr.bf16.gmra.mrb[0].mxu0 %v4145
  %v4293 = vpop.f32.mrb[0].mxu0
  %v4294 = vadd.f32 %v184, %v4293
  %v4295 = vpop.f32.mrb[0].mxu0
  %v4296 = vpop.f32.mrb[0].mxu0
  %v4297 = vadd.f32 %v184, %v4296
  %v4298 = vpop.f32.mrb[0].mxu0
  %4299 = vmatprep.mubr.bf16.mxu0 0
  %4300 = vmatmul.mubr.bf16.gmra.mrb[0].mxu0 %v4148
  %v4301 = vpop.f32.mrb[0].mxu0
  %v4302 = vadd.f32 %v184, %v4301
  %v4303 = vpop.f32.mrb[0].mxu0
  %v4304 = vpop.f32.mrb[0].mxu0
  %v4305 = vadd.f32 %v184, %v4304
  %v4306 = vpop.f32.mrb[0].mxu0
  %4307 = vmatprep.mubr.bf16.mxu0 0
  %4308 = vmatmul.mubr.bf16.gmra.mrb[0].mxu0 %v4151
  %v4309 = vpop.f32.mrb[0].mxu0
  %v4310 = vadd.f32 %v184, %v4309
  %v4311 = vpop.f32.mrb[0].mxu0
  %v4312 = vpop.f32.mrb[0].mxu0
  %v4313 = vadd.f32 %v184, %v4312
  %v4314 = vpop.f32.mrb[0].mxu0
  %4315 = vmatprep.mubr.bf16.mxu0 0
  %4316 = vmatmul.mubr.bf16.gmra.mrb[0].mxu0 %v4154
  %v4317 = vpop.f32.mrb[0].mxu0
  %v4318 = vadd.f32 %v184, %v4317
  %v4319 = vpop.f32.mrb[0].mxu0
  %v4320 = vpop.f32.mrb[0].mxu0
  %v4321 = vadd.f32 %v184, %v4320
  %v4322 = vpop.f32.mrb[0].mxu0
  %4323 = vmatprep.mubr.bf16.mxu0 0
  %4324 = vmatmul.mubr.bf16.gmra.mrb[0].mxu0 %v4157
  %v4325 = vpop.f32.mrb[0].mxu0
  %v4326 = vadd.f32 %v184, %v4325
  %v4327 = vpop.f32.mrb[0].mxu0
  %v4328 = vpop.f32.mrb[0].mxu0
  %v4329 = vadd.f32 %v184, %v4328
  %v4330 = vpop.f32.mrb[0].mxu0
  %4331 = vmatprep.mubr.bf16.mxu0 0
  %4332 = vmatmul.mubr.bf16.gmra.mrb[0].mxu0 %v4160
  %v4333 = vpop.f32.mrb[0].mxu0
  %v4334 = vadd.f32 %v184, %v4333
  %v4335 = vpop.f32.mrb[0].mxu0
  %v4336 = vpop.f32.mrb[0].mxu0
  %v4337 = vadd.f32 %v184, %v4336
  %v4338 = vpop.f32.mrb[0].mxu0
  %4339 = vmatprep.mubr.bf16.mxu0 0
  %4340 = vmatmul.mubr.bf16.gmra.mrb[0].mxu0 %v4163
  %v4341 = vpop.f32.mrb[0].mxu0
  %v4342 = vadd.f32 %v184, %v4341
  %v4343 = vpop.f32.mrb[0].mxu0
  %v4344 = vpop.f32.mrb[0].mxu0
  %v4345 = vadd.f32 %v184, %v4344
  %v4346 = vpop.f32.mrb[0].mxu0
  %4347 = vmatprep.mubr.bf16.mxu0 0
  %4348 = vmatmul.mubr.bf16.gmra.mrb[0].mxu0 %v4166
  %v4349 = vpop.f32.mrb[0].mxu0
  %v4350 = vadd.f32 %v184, %v4349
  %v4351 = vpop.f32.mrb[0].mxu0
  %v4352 = vpop.f32.mrb[0].mxu0
  %v4353 = vadd.f32 %v184, %v4352
  %v4354 = vpop.f32.mrb[0].mxu0
  %4355 = vmatprep.mubr.bf16.mxu0 0
  %4356 = vmatmul.mubr.bf16.gmra.mrb[0].mxu0 %v4169
  %v4357 = vpop.f32.mrb[0].mxu0
  %v4358 = vadd.f32 %v184, %v4357
  %v4359 = vpop.f32.mrb[0].mxu0
  %v4360 = vpop.f32.mrb[0].mxu0
  %v4361 = vadd.f32 %v184, %v4360
  %v4362 = vpop.f32.mrb[0].mxu0
  %4363 = vmatprep.mubr.bf16.mxu0 0
  %4364 = vmatmul.mubr.bf16.gmra.mrb[0].mxu0 %v4172
  %v4365 = vpop.f32.mrb[0].mxu0
  %v4366 = vadd.f32 %v184, %v4365
  %v4367 = vpop.f32.mrb[0].mxu0
  %v4368 = vpop.f32.mrb[0].mxu0
  %v4369 = vadd.f32 %v184, %v4368
  %v4370 = vpop.f32.mrb[0].mxu0
  %4371 = vmatprep.mubr.bf16.mxu0 0
  %4372 = vmatmul.mubr.bf16.gmra.mrb[0].mxu0 %v4175
  %v4373 = vpop.f32.mrb[0].mxu0
  %v4374 = vadd.f32 %v184, %v4373
  %v4375 = vpop.f32.mrb[0].mxu0
  %v4376 = vpop.f32.mrb[0].mxu0
  %v4377 = vadd.f32 %v184, %v4376
  %v4378 = vpop.f32.mrb[0].mxu0
  %4379 = vmatprep.mubr.bf16.mxu0 0
  %4380 = vmatmul.mubr.bf16.gmra.mrb[0].mxu0 %v4178
  %v4381 = vpop.f32.mrb[0].mxu0
  %v4382 = vadd.f32 %v184, %v4381
  %v4383 = vpop.f32.mrb[0].mxu0
  %v4384 = vpop.f32.mrb[0].mxu0
  %v4385 = vadd.f32 %v184, %v4384
  %v4386 = vpop.f32.mrb[0].mxu0
  %4387 = vmatprep.mubr.bf16.mxu0 0
  %4388 = vmatmul.mubr.bf16.gmra.mrb[0].mxu0 %v4181
  %v4389 = vpop.f32.mrb[0].mxu0
  %v4390 = vadd.f32 %v184, %v4389
  %v4391 = vpop.f32.mrb[0].mxu0
  %v4392 = vpop.f32.mrb[0].mxu0
  %v4393 = vadd.f32 %v184, %v4392
  %v4394 = vpop.f32.mrb[0].mxu0
  %4395 = vmatprep.mubr.bf16.mxu0 0
  %4396 = vmatmul.mubr.bf16.gmra.mrb[0].mxu0 %v4184
  %v4397 = vpop.f32.mrb[0].mxu0
  %v4398 = vadd.f32 %v184, %v4397
  %v4399 = vpop.f32.mrb[0].mxu0
  %v4400 = vpop.f32.mrb[0].mxu0
  %v4401 = vadd.f32 %v184, %v4400
  %v4402 = vpop.f32.mrb[0].mxu0
  %4403 = vmatprep.mubr.bf16.mxu0 0
  %4404 = vmatmul.mubr.bf16.gmra.mrb[0].mxu0 %v4187
  %v4405 = vpop.f32.mrb[0].mxu0
  %v4406 = vadd.f32 %v184, %v4405
  %v4407 = vpop.f32.mrb[0].mxu0
  %v4408 = vpop.f32.mrb[0].mxu0
  %v4409 = vadd.f32 %v184, %v4408
  %v4410 = vpop.f32.mrb[0].mxu0
  %4411 = vmatprep.mubr.bf16.mxu0 0
  %4412 = vmatmul.mubr.bf16.gmra.mrb[0].mxu0 %v4190
  %v4413 = vpop.f32.mrb[0].mxu0
  %v4414 = vadd.f32 %v184, %v4413
  %v4415 = vpop.f32.mrb[0].mxu0
  %v4416 = vpop.f32.mrb[0].mxu0
  %v4417 = vadd.f32 %v184, %v4416
  %v4418 = vpop.f32.mrb[0].mxu0
  %4419 = vmatprep.mubr.bf16.mxu0 0
  %4420 = vmatmul.mubr.bf16.gmra.mrb[0].mxu0 %v4193
  %v4421 = vpop.f32.mrb[0].mxu0
  %v4422 = vadd.f32 %v184, %v4421
  %v4423 = vpop.f32.mrb[0].mxu0
  %v4424 = vpop.f32.mrb[0].mxu0
  %v4425 = vadd.f32 %v184, %v4424
  %v4426 = vpop.f32.mrb[0].mxu0
  %4427 = vdwg.mxu0
  %v4428 = vsel %vm644, %v4230, 0.0
  %v4429 = vsel %vm644, %v4233, 0.0
  %v4430 = vadd.f32 %v4428, %v4429
  %v4431 = vsel %vm644, %v4238, 0.0
  %v4432 = vadd.f32 %v4430, %v4431
  %v4433 = vsel %vm644, %v4241, 0.0
  %v4434 = vadd.f32 %v4432, %v4433
  %v4435 = vsel %vm644, %v4246, 0.0
  %v4436 = vadd.f32 %v4434, %v4435
  %v4437 = vsel %vm644, %v4249, 0.0
  %v4438 = vadd.f32 %v4436, %v4437
  %v4439 = vsel %vm644, %v4254, 0.0
  %v4440 = vadd.f32 %v4438, %v4439
  %v4441 = vsel %vm644, %v4257, 0.0
  %v4442 = vadd.f32 %v4440, %v4441
  %v4443 = vsel %vm644, %v4262, 0.0
  %v4444 = vadd.f32 %v4442, %v4443
  %v4445 = vsel %vm644, %v4265, 0.0
  %v4446 = vadd.f32 %v4444, %v4445
  %v4447 = vsel %vm644, %v4270, 0.0
  %v4448 = vadd.f32 %v4446, %v4447
  %v4449 = vsel %vm644, %v4273, 0.0
  %v4450 = vadd.f32 %v4448, %v4449
  %v4451 = vsel %vm644, %v4278, 0.0
  %v4452 = vadd.f32 %v4450, %v4451
  %v4453 = vsel %vm644, %v4281, 0.0
  %v4454 = vadd.f32 %v4452, %v4453
  %v4455 = vsel %vm644, %v4286, 0.0
  %v4456 = vadd.f32 %v4454, %v4455
  %v4457 = vsel %vm644, %v4289, 0.0
  %v4458 = vadd.f32 %v4456, %v4457
  %v4459 = vsel %vm644, %v4294, 0.0
  %v4460 = vadd.f32 %v4458, %v4459
  %v4461 = vsel %vm644, %v4297, 0.0
  %v4462 = vadd.f32 %v4460, %v4461
  %v4463 = vsel %vm644, %v4302, 0.0
  %v4464 = vadd.f32 %v4462, %v4463
  %v4465 = vsel %vm644, %v4305, 0.0
  %v4466 = vadd.f32 %v4464, %v4465
  %v4467 = vsel %vm644, %v4310, 0.0
  %v4468 = vadd.f32 %v4466, %v4467
  %v4469 = vsel %vm644, %v4313, 0.0
  %v4470 = vadd.f32 %v4468, %v4469
  %v4471 = vsel %vm644, %v4318, 0.0
  %v4472 = vadd.f32 %v4470, %v4471
  %v4473 = vsel %vm644, %v4321, 0.0
  %v4474 = vadd.f32 %v4472, %v4473
  %v4475 = vsel %vm644, %v4326, 0.0
  %v4476 = vadd.f32 %v4474, %v4475
  %v4477 = vsel %vm644, %v4329, 0.0
  %v4478 = vadd.f32 %v4476, %v4477
  %v4479 = vsel %vm644, %v4334, 0.0
  %v4480 = vadd.f32 %v4478, %v4479
  %v4481 = vsel %vm644, %v4337, 0.0
  %v4482 = vadd.f32 %v4480, %v4481
  %v4483 = vsel %vm644, %v4342, 0.0
  %v4484 = vadd.f32 %v4482, %v4483
  %v4485 = vsel %vm644, %v4345, 0.0
  %v4486 = vadd.f32 %v4484, %v4485
  %v4487 = vsel %vm644, %v4350, 0.0
  %v4488 = vadd.f32 %v4486, %v4487
  %v4489 = vsel %vm644, %v4353, 0.0
  %v4490 = vadd.f32 %v4488, %v4489
  %v4491 = vsel %vm644, %v4358, 0.0
  %v4492 = vadd.f32 %v4490, %v4491
  %v4493 = vsel %vm644, %v4361, 0.0
  %v4494 = vadd.f32 %v4492, %v4493
  %v4495 = vsel %vm644, %v4366, 0.0
  %v4496 = vadd.f32 %v4494, %v4495
  %v4497 = vsel %vm644, %v4369, 0.0
  %v4498 = vadd.f32 %v4496, %v4497
  %v4499 = vsel %vm644, %v4374, 0.0
  %v4500 = vadd.f32 %v4498, %v4499
  %v4501 = vsel %vm644, %v4377, 0.0
  %v4502 = vadd.f32 %v4500, %v4501
  %v4503 = vsel %vm644, %v4382, 0.0
  %v4504 = vadd.f32 %v4502, %v4503
  %v4505 = vsel %vm644, %v4385, 0.0
  %v4506 = vadd.f32 %v4504, %v4505
  %v4507 = vsel %vm644, %v4390, 0.0
  %v4508 = vadd.f32 %v4506, %v4507
  %v4509 = vsel %vm644, %v4393, 0.0
  %v4510 = vadd.f32 %v4508, %v4509
  %v4511 = vsel %vm644, %v4398, 0.0
  %v4512 = vadd.f32 %v4510, %v4511
  %v4513 = vsel %vm644, %v4401, 0.0
  %v4514 = vadd.f32 %v4512, %v4513
  %v4515 = vsel %vm644, %v4406, 0.0
  %v4516 = vadd.f32 %v4514, %v4515
  %v4517 = vsel %vm644, %v4409, 0.0
  %v4518 = vadd.f32 %v4516, %v4517
  %v4519 = vsel %vm644, %v4414, 0.0
  %v4520 = vadd.f32 %v4518, %v4519
  %v4521 = vsel %vm644, %v4417, 0.0
  %v4522 = vadd.f32 %v4520, %v4521
  %v4523 = vsel %vm644, %v4422, 0.0
  %v4524 = vadd.f32 %v4522, %v4523
  %v4525 = vsel %vm644, %v4425, 0.0
  %v4526 = vadd.f32 %v4524, %v4525
  %4527 = vadd.xlane.f32.xlu0 %v4526
  %v4528 = vpop.xlane.xlu0 %4527
  %v4529 = vrot.slane %v4528, 4
  %v4530 = vadd.f32 %v4528, %v4529
  %v4531 = vrot.slane %v4530, 2
  %v4532 = vadd.f32 %v4530, %v4531
  %v4533 = vrot.slane %v4532, 1
  %v4534 = vadd.f32 %v4532, %v4533
  %s4535 = vtos %v4534
  %s4536 = smul.f32 %s4535, 7.8125e-05
  %v4537 = vmul.f32 %v4230, %v4230
  %v4538 = vmul.f32 %v4233, %v4233
  %v4539 = vmul.f32 %v4238, %v4238
  %v4540 = vmul.f32 %v4241, %v4241
  %v4541 = vmul.f32 %v4246, %v4246
  %v4542 = vmul.f32 %v4249, %v4249
  %v4543 = vmul.f32 %v4254, %v4254
  %v4544 = vmul.f32 %v4257, %v4257
  %v4545 = vmul.f32 %v4262, %v4262
  %v4546 = vmul.f32 %v4265, %v4265
  %v4547 = vmul.f32 %v4270, %v4270
  %v4548 = vmul.f32 %v4273, %v4273
  %v4549 = vmul.f32 %v4278, %v4278
  %v4550 = vmul.f32 %v4281, %v4281
  %v4551 = vmul.f32 %v4286, %v4286
  %v4552 = vmul.f32 %v4289, %v4289
  %v4553 = vmul.f32 %v4294, %v4294
  %v4554 = vmul.f32 %v4297, %v4297
  %v4555 = vmul.f32 %v4302, %v4302
  %v4556 = vmul.f32 %v4305, %v4305
  %v4557 = vmul.f32 %v4310, %v4310
  %v4558 = vmul.f32 %v4313, %v4313
  %v4559 = vmul.f32 %v4318, %v4318
  %v4560 = vmul.f32 %v4321, %v4321
  %v4561 = vmul.f32 %v4326, %v4326
  %v4562 = vmul.f32 %v4329, %v4329
  %v4563 = vmul.f32 %v4334, %v4334
  %v4564 = vmul.f32 %v4337, %v4337
  %v4565 = vmul.f32 %v4342, %v4342
  %v4566 = vmul.f32 %v4345, %v4345
  %v4567 = vmul.f32 %v4350, %v4350
  %v4568 = vmul.f32 %v4353, %v4353
  %v4569 = vmul.f32 %v4358, %v4358
  %v4570 = vmul.f32 %v4361, %v4361
  %v4571 = vmul.f32 %v4366, %v4366
  %v4572 = vmul.f32 %v4369, %v4369
  %v4573 = vmul.f32 %v4374, %v4374
  %v4574 = vmul.f32 %v4377, %v4377
  %v4575 = vmul.f32 %v4382, %v4382
  %v4576 = vmul.f32 %v4385, %v4385
  %v4577 = vmul.f32 %v4390, %v4390
  %v4578 = vmul.f32 %v4393, %v4393
  %v4579 = vmul.f32 %v4398, %v4398
  %v4580 = vmul.f32 %v4401, %v4401
  %v4581 = vmul.f32 %v4406, %v4406
  %v4582 = vmul.f32 %v4409, %v4409
  %v4583 = vmul.f32 %v4414, %v4414
  %v4584 = vmul.f32 %v4417, %v4417
  %v4585 = vmul.f32 %v4422, %v4422
  %v4586 = vmul.f32 %v4425, %v4425
  %v4587 = vsel %vm644, %v4537, 0.0
  %v4588 = vsel %vm644, %v4538, 0.0
  %v4589 = vadd.f32 %v4587, %v4588
  %v4590 = vsel %vm644, %v4539, 0.0
  %v4591 = vadd.f32 %v4589, %v4590
  %v4592 = vsel %vm644, %v4540, 0.0
  %v4593 = vadd.f32 %v4591, %v4592
  %v4594 = vsel %vm644, %v4541, 0.0
  %v4595 = vadd.f32 %v4593, %v4594
  %v4596 = vsel %vm644, %v4542, 0.0
  %v4597 = vadd.f32 %v4595, %v4596
  %v4598 = vsel %vm644, %v4543, 0.0
  %v4599 = vadd.f32 %v4597, %v4598
  %v4600 = vsel %vm644, %v4544, 0.0
  %v4601 = vadd.f32 %v4599, %v4600
  %v4602 = vsel %vm644, %v4545, 0.0
  %v4603 = vadd.f32 %v4601, %v4602
  %v4604 = vsel %vm644, %v4546, 0.0
  %v4605 = vadd.f32 %v4603, %v4604
  %v4606 = vsel %vm644, %v4547, 0.0
  %v4607 = vadd.f32 %v4605, %v4606
  %v4608 = vsel %vm644, %v4548, 0.0
  %v4609 = vadd.f32 %v4607, %v4608
  %v4610 = vsel %vm644, %v4549, 0.0
  %v4611 = vadd.f32 %v4609, %v4610
  %v4612 = vsel %vm644, %v4550, 0.0
  %v4613 = vadd.f32 %v4611, %v4612
  %v4614 = vsel %vm644, %v4551, 0.0
  %v4615 = vadd.f32 %v4613, %v4614
  %v4616 = vsel %vm644, %v4552, 0.0
  %v4617 = vadd.f32 %v4615, %v4616
  %v4618 = vsel %vm644, %v4553, 0.0
  %v4619 = vadd.f32 %v4617, %v4618
  %v4620 = vsel %vm644, %v4554, 0.0
  %v4621 = vadd.f32 %v4619, %v4620
  %v4622 = vsel %vm644, %v4555, 0.0
  %v4623 = vadd.f32 %v4621, %v4622
  %v4624 = vsel %vm644, %v4556, 0.0
  %v4625 = vadd.f32 %v4623, %v4624
  %v4626 = vsel %vm644, %v4557, 0.0
  %v4627 = vadd.f32 %v4625, %v4626
  %v4628 = vsel %vm644, %v4558, 0.0
  %v4629 = vadd.f32 %v4627, %v4628
  %v4630 = vsel %vm644, %v4559, 0.0
  %v4631 = vadd.f32 %v4629, %v4630
  %v4632 = vsel %vm644, %v4560, 0.0
  %v4633 = vadd.f32 %v4631, %v4632
  %v4634 = vsel %vm644, %v4561, 0.0
  %v4635 = vadd.f32 %v4633, %v4634
  %v4636 = vsel %vm644, %v4562, 0.0
  %v4637 = vadd.f32 %v4635, %v4636
  %v4638 = vsel %vm644, %v4563, 0.0
  %v4639 = vadd.f32 %v4637, %v4638
  %v4640 = vsel %vm644, %v4564, 0.0
  %v4641 = vadd.f32 %v4639, %v4640
  %v4642 = vsel %vm644, %v4565, 0.0
  %v4643 = vadd.f32 %v4641, %v4642
  %v4644 = vsel %vm644, %v4566, 0.0
  %v4645 = vadd.f32 %v4643, %v4644
  %v4646 = vsel %vm644, %v4567, 0.0
  %v4647 = vadd.f32 %v4645, %v4646
  %v4648 = vsel %vm644, %v4568, 0.0
  %v4649 = vadd.f32 %v4647, %v4648
  %v4650 = vsel %vm644, %v4569, 0.0
  %v4651 = vadd.f32 %v4649, %v4650
  %v4652 = vsel %vm644, %v4570, 0.0
  %v4653 = vadd.f32 %v4651, %v4652
  %v4654 = vsel %vm644, %v4571, 0.0
  %v4655 = vadd.f32 %v4653, %v4654
  %v4656 = vsel %vm644, %v4572, 0.0
  %v4657 = vadd.f32 %v4655, %v4656
  %v4658 = vsel %vm644, %v4573, 0.0
  %v4659 = vadd.f32 %v4657, %v4658
  %v4660 = vsel %vm644, %v4574, 0.0
  %v4661 = vadd.f32 %v4659, %v4660
  %v4662 = vsel %vm644, %v4575, 0.0
  %v4663 = vadd.f32 %v4661, %v4662
  %v4664 = vsel %vm644, %v4576, 0.0
  %v4665 = vadd.f32 %v4663, %v4664
  %v4666 = vsel %vm644, %v4577, 0.0
  %v4667 = vadd.f32 %v4665, %v4666
  %v4668 = vsel %vm644, %v4578, 0.0
  %v4669 = vadd.f32 %v4667, %v4668
  %v4670 = vsel %vm644, %v4579, 0.0
  %v4671 = vadd.f32 %v4669, %v4670
  %v4672 = vsel %vm644, %v4580, 0.0
  %v4673 = vadd.f32 %v4671, %v4672
  %v4674 = vsel %vm644, %v4581, 0.0
  %v4675 = vadd.f32 %v4673, %v4674
  %v4676 = vsel %vm644, %v4582, 0.0
  %v4677 = vadd.f32 %v4675, %v4676
  %v4678 = vsel %vm644, %v4583, 0.0
  %v4679 = vadd.f32 %v4677, %v4678
  %v4680 = vsel %vm644, %v4584, 0.0
  %v4681 = vadd.f32 %v4679, %v4680
  %v4682 = vsel %vm644, %v4585, 0.0
  %v4683 = vadd.f32 %v4681, %v4682
  %v4684 = vsel %vm644, %v4586, 0.0
  %v4685 = vadd.f32 %v4683, %v4684
  %4686 = vadd.xlane.f32.xlu0 %v4685
  %v4687 = vpop.xlane.xlu0 %4686
  %v4688 = vrot.slane %v4687, 4
  %v4689 = vadd.f32 %v4687, %v4688
  %v4690 = vrot.slane %v4689, 2
  %v4691 = vadd.f32 %v4689, %v4690
  %v4692 = vrot.slane %v4691, 1
  %v4693 = vadd.f32 %v4691, %v4692
  %s4694 = vtos %v4693
  %s4695 = smul.f32 %s4694, 7.8125e-05
  %s4696 = smul.f32 %s4536, %s4536
  %s4697 = ssub.f32 %s4695, %s4696
  %v4698 = vstv %s4536
  %v4699 = vsub.f32 %v4230, %v4698
  %v4700 = vsub.f32 %v4233, %v4698
  %v4701 = vsub.f32 %v4238, %v4698
  %v4702 = vsub.f32 %v4241, %v4698
  %v4703 = vsub.f32 %v4246, %v4698
  %v4704 = vsub.f32 %v4249, %v4698
  %v4705 = vsub.f32 %v4254, %v4698
  %v4706 = vsub.f32 %v4257, %v4698
  %v4707 = vsub.f32 %v4262, %v4698
  %v4708 = vsub.f32 %v4265, %v4698
  %v4709 = vsub.f32 %v4270, %v4698
  %v4710 = vsub.f32 %v4273, %v4698
  %v4711 = vsub.f32 %v4278, %v4698
  %v4712 = vsub.f32 %v4281, %v4698
  %v4713 = vsub.f32 %v4286, %v4698
  %v4714 = vsub.f32 %v4289, %v4698
  %v4715 = vsub.f32 %v4294, %v4698
  %v4716 = vsub.f32 %v4297, %v4698
  %v4717 = vsub.f32 %v4302, %v4698
  %v4718 = vsub.f32 %v4305, %v4698
  %v4719 = vsub.f32 %v4310, %v4698
  %v4720 = vsub.f32 %v4313, %v4698
  %v4721 = vsub.f32 %v4318, %v4698
  %v4722 = vsub.f32 %v4321, %v4698
  %v4723 = vsub.f32 %v4326, %v4698
  %v4724 = vsub.f32 %v4329, %v4698
  %v4725 = vsub.f32 %v4334, %v4698
  %v4726 = vsub.f32 %v4337, %v4698
  %v4727 = vsub.f32 %v4342, %v4698
  %v4728 = vsub.f32 %v4345, %v4698
  %v4729 = vsub.f32 %v4350, %v4698
  %v4730 = vsub.f32 %v4353, %v4698
  %v4731 = vsub.f32 %v4358, %v4698
  %v4732 = vsub.f32 %v4361, %v4698
  %v4733 = vsub.f32 %v4366, %v4698
  %v4734 = vsub.f32 %v4369, %v4698
  %v4735 = vsub.f32 %v4374, %v4698
  %v4736 = vsub.f32 %v4377, %v4698
  %v4737 = vsub.f32 %v4382, %v4698
  %v4738 = vsub.f32 %v4385, %v4698
  %v4739 = vsub.f32 %v4390, %v4698
  %v4740 = vsub.f32 %v4393, %v4698
  %v4741 = vsub.f32 %v4398, %v4698
  %v4742 = vsub.f32 %v4401, %v4698
  %v4743 = vsub.f32 %v4406, %v4698
  %v4744 = vsub.f32 %v4409, %v4698
  %v4745 = vsub.f32 %v4414, %v4698
  %v4746 = vsub.f32 %v4417, %v4698
  %v4747 = vsub.f32 %v4422, %v4698
  %v4748 = vsub.f32 %v4425, %v4698
  %s4749 = sadd.f32 %s4697, 1e-05
  %v4750 = vstv %s4749
  %v4751 = vrsqrt.pop %v4750
  %s4752 = vtos %v4751
  %v4753 = vstv %s4752
  %v4754 = vmul.f32 %v4699, %v4753
  %v4755 = vmul.f32 %v4700, %v4753
  %v4756 = vmul.f32 %v4701, %v4753
  %v4757 = vmul.f32 %v4702, %v4753
  %v4758 = vmul.f32 %v4703, %v4753
  %v4759 = vmul.f32 %v4704, %v4753
  %v4760 = vmul.f32 %v4705, %v4753
  %v4761 = vmul.f32 %v4706, %v4753
  %v4762 = vmul.f32 %v4707, %v4753
  %v4763 = vmul.f32 %v4708, %v4753
  %v4764 = vmul.f32 %v4709, %v4753
  %v4765 = vmul.f32 %v4710, %v4753
  %v4766 = vmul.f32 %v4711, %v4753
  %v4767 = vmul.f32 %v4712, %v4753
  %v4768 = vmul.f32 %v4713, %v4753
  %v4769 = vmul.f32 %v4714, %v4753
  %v4770 = vmul.f32 %v4715, %v4753
  %v4771 = vmul.f32 %v4716, %v4753
  %v4772 = vmul.f32 %v4717, %v4753
  %v4773 = vmul.f32 %v4718, %v4753
  %v4774 = vmul.f32 %v4719, %v4753
  %v4775 = vmul.f32 %v4720, %v4753
  %v4776 = vmul.f32 %v4721, %v4753
  %v4777 = vmul.f32 %v4722, %v4753
  %v4778 = vmul.f32 %v4723, %v4753
  %v4779 = vmul.f32 %v4724, %v4753
  %v4780 = vmul.f32 %v4725, %v4753
  %v4781 = vmul.f32 %v4726, %v4753
  %v4782 = vmul.f32 %v4727, %v4753
  %v4783 = vmul.f32 %v4728, %v4753
  %v4784 = vmul.f32 %v4729, %v4753
  %v4785 = vmul.f32 %v4730, %v4753
  %v4786 = vmul.f32 %v4731, %v4753
  %v4787 = vmul.f32 %v4732, %v4753
  %v4788 = vmul.f32 %v4733, %v4753
  %v4789 = vmul.f32 %v4734, %v4753
  %v4790 = vmul.f32 %v4735, %v4753
  %v4791 = vmul.f32 %v4736, %v4753
  %v4792 = vmul.f32 %v4737, %v4753
  %v4793 = vmul.f32 %v4738, %v4753
  %v4794 = vmul.f32 %v4739, %v4753
  %v4795 = vmul.f32 %v4740, %v4753
  %v4796 = vmul.f32 %v4741, %v4753
  %v4797 = vmul.f32 %v4742, %v4753
  %v4798 = vmul.f32 %v4743, %v4753
  %v4799 = vmul.f32 %v4744, %v4753
  %v4800 = vmul.f32 %v4745, %v4753
  %v4801 = vmul.f32 %v4746, %v4753
  %v4802 = vmul.f32 %v4747, %v4753
  %v4803 = vmul.f32 %v4748, %v4753
  %v4804 = vmul.f32 %v4754, %v30
  %v4805 = vmul.f32 %v4755, %v31
  %v4806 = vmul.f32 %v4756, %v32
  %v4807 = vmul.f32 %v4757, %v33
  %v4808 = vmul.f32 %v4758, %v34
  %v4809 = vmul.f32 %v4759, %v35
  %v4810 = vmul.f32 %v4760, %v36
  %v4811 = vmul.f32 %v4761, %v37
  %v4812 = vmul.f32 %v4762, %v38
  %v4813 = vmul.f32 %v4763, %v39
  %v4814 = vmul.f32 %v4764, %v40
  %v4815 = vmul.f32 %v4765, %v41
  %v4816 = vmul.f32 %v4766, %v42
  %v4817 = vmul.f32 %v4767, %v43
  %v4818 = vmul.f32 %v4768, %v44
  %v4819 = vmul.f32 %v4769, %v45
  %v4820 = vmul.f32 %v4770, %v46
  %v4821 = vmul.f32 %v4771, %v47
  %v4822 = vmul.f32 %v4772, %v48
  %v4823 = vmul.f32 %v4773, %v49
  %v4824 = vmul.f32 %v4774, %v50
  %v4825 = vmul.f32 %v4775, %v51
  %v4826 = vmul.f32 %v4776, %v52
  %v4827 = vmul.f32 %v4777, %v53
  %v4828 = vmul.f32 %v4778, %v54
  %v4829 = vmul.f32 %v4779, %v55
  %v4830 = vmul.f32 %v4780, %v56
  %v4831 = vmul.f32 %v4781, %v57
  %v4832 = vmul.f32 %v4782, %v58
  %v4833 = vmul.f32 %v4783, %v59
  %v4834 = vmul.f32 %v4784, %v60
  %v4835 = vmul.f32 %v4785, %v61
  %v4836 = vmul.f32 %v4786, %v62
  %v4837 = vmul.f32 %v4787, %v63
  %v4838 = vmul.f32 %v4788, %v64
  %v4839 = vmul.f32 %v4789, %v65
  %v4840 = vmul.f32 %v4790, %v66
  %v4841 = vmul.f32 %v4791, %v67
  %v4842 = vmul.f32 %v4792, %v68
  %v4843 = vmul.f32 %v4793, %v69
  %v4844 = vmul.f32 %v4794, %v70
  %v4845 = vmul.f32 %v4795, %v71
  %v4846 = vmul.f32 %v4796, %v72
  %v4847 = vmul.f32 %v4797, %v73
  %v4848 = vmul.f32 %v4798, %v74
  %v4849 = vmul.f32 %v4799, %v75
  %v4850 = vmul.f32 %v4800, %v76
  %v4851 = vmul.f32 %v4801, %v77
  %v4852 = vmul.f32 %v4802, %v78
  %v4853 = vmul.f32 %v4803, %v79
  %v4854 = vadd.f32 %v4804, %v80
  %v4855 = vadd.f32 %v4805, %v81
  %v4856 = vadd.f32 %v4806, %v82
  %v4857 = vadd.f32 %v4807, %v83
  %v4858 = vadd.f32 %v4808, %v84
  %v4859 = vadd.f32 %v4809, %v85
  %v4860 = vadd.f32 %v4810, %v86
  %v4861 = vadd.f32 %v4811, %v87
  %v4862 = vadd.f32 %v4812, %v88
  %v4863 = vadd.f32 %v4813, %v89
  %v4864 = vadd.f32 %v4814, %v90
  %v4865 = vadd.f32 %v4815, %v91
  %v4866 = vadd.f32 %v4816, %v92
  %v4867 = vadd.f32 %v4817, %v93
  %v4868 = vadd.f32 %v4818, %v94
  %v4869 = vadd.f32 %v4819, %v95
  %v4870 = vadd.f32 %v4820, %v96
  %v4871 = vadd.f32 %v4821, %v97
  %v4872 = vadd.f32 %v4822, %v98
  %v4873 = vadd.f32 %v4823, %v99
  %v4874 = vadd.f32 %v4824, %v100
  %v4875 = vadd.f32 %v4825, %v101
  %v4876 = vadd.f32 %v4826, %v102
  %v4877 = vadd.f32 %v4827, %v103
  %v4878 = vadd.f32 %v4828, %v104
  %v4879 = vadd.f32 %v4829, %v105
  %v4880 = vadd.f32 %v4830, %v106
  %v4881 = vadd.f32 %v4831, %v107
  %v4882 = vadd.f32 %v4832, %v108
  %v4883 = vadd.f32 %v4833, %v109
  %v4884 = vadd.f32 %v4834, %v110
  %v4885 = vadd.f32 %v4835, %v111
  %v4886 = vadd.f32 %v4836, %v112
  %v4887 = vadd.f32 %v4837, %v113
  %v4888 = vadd.f32 %v4838, %v114
  %v4889 = vadd.f32 %v4839, %v115
  %v4890 = vadd.f32 %v4840, %v116
  %v4891 = vadd.f32 %v4841, %v117
  %v4892 = vadd.f32 %v4842, %v118
  %v4893 = vadd.f32 %v4843, %v119
  %v4894 = vadd.f32 %v4844, %v120
  %v4895 = vadd.f32 %v4845, %v121
  %v4896 = vadd.f32 %v4846, %v122
  %v4897 = vadd.f32 %v4847, %v123
  %v4898 = vadd.f32 %v4848, %v124
  %v4899 = vadd.f32 %v4849, %v125
  %v4900 = vadd.f32 %v4850, %v126
  %v4901 = vadd.f32 %v4851, %v127
  %v4902 = vadd.f32 %v4852, %v128
  %v4903 = vadd.f32 %v4853, %v129
  %v4904 = vmax.f32 %v4854, 0.0
  %v4905 = vmax.f32 %v4855, 0.0
  %v4906 = vmax.f32 %v4856, 0.0
  %v4907 = vmax.f32 %v4857, 0.0
  %v4908 = vmax.f32 %v4858, 0.0
  %v4909 = vmax.f32 %v4859, 0.0
  %v4910 = vmax.f32 %v4860, 0.0
  %v4911 = vmax.f32 %v4861, 0.0
  %v4912 = vmax.f32 %v4862, 0.0
  %v4913 = vmax.f32 %v4863, 0.0
  %v4914 = vmax.f32 %v4864, 0.0
  %v4915 = vmax.f32 %v4865, 0.0
  %v4916 = vmax.f32 %v4866, 0.0
  %v4917 = vmax.f32 %v4867, 0.0
  %v4918 = vmax.f32 %v4868, 0.0
  %v4919 = vmax.f32 %v4869, 0.0
  %v4920 = vmax.f32 %v4870, 0.0
  %v4921 = vmax.f32 %v4871, 0.0
  %v4922 = vmax.f32 %v4872, 0.0
  %v4923 = vmax.f32 %v4873, 0.0
  %v4924 = vmax.f32 %v4874, 0.0
  %v4925 = vmax.f32 %v4875, 0.0
  %v4926 = vmax.f32 %v4876, 0.0
  %v4927 = vmax.f32 %v4877, 0.0
  %v4928 = vmax.f32 %v4878, 0.0
  %v4929 = vmax.f32 %v4879, 0.0
  %v4930 = vmax.f32 %v4880, 0.0
  %v4931 = vmax.f32 %v4881, 0.0
  %v4932 = vmax.f32 %v4882, 0.0
  %v4933 = vmax.f32 %v4883, 0.0
  %v4934 = vmax.f32 %v4884, 0.0
  %v4935 = vmax.f32 %v4885, 0.0
  %v4936 = vmax.f32 %v4886, 0.0
  %v4937 = vmax.f32 %v4887, 0.0
  %v4938 = vmax.f32 %v4888, 0.0
  %v4939 = vmax.f32 %v4889, 0.0
  %v4940 = vmax.f32 %v4890, 0.0
  %v4941 = vmax.f32 %v4891, 0.0
  %v4942 = vmax.f32 %v4892, 0.0
  %v4943 = vmax.f32 %v4893, 0.0
  %v4944 = vmax.f32 %v4894, 0.0
  %v4945 = vmax.f32 %v4895, 0.0
  %v4946 = vmax.f32 %v4896, 0.0
  %v4947 = vmax.f32 %v4897, 0.0
  %v4948 = vmax.f32 %v4898, 0.0
  %v4949 = vmax.f32 %v4899, 0.0
  %v4950 = vmax.f32 %v4900, 0.0
  %v4951 = vmax.f32 %v4901, 0.0
  %v4952 = vmax.f32 %v4902, 0.0
  %v4953 = vmax.f32 %v4903, 0.0
  %v4954 = vpack.c.bf16 %v4905, %v4904
  %v4955 = vpack.c.bf16 %v4907, %v4906
  %v4956 = vpack.c.bf16 %v4909, %v4908
  %v4957 = vpack.c.bf16 %v4911, %v4910
  %v4958 = vpack.c.bf16 %v4913, %v4912
  %v4959 = vpack.c.bf16 %v4915, %v4914
  %v4960 = vpack.c.bf16 %v4917, %v4916
  %v4961 = vpack.c.bf16 %v4919, %v4918
  %v4962 = vpack.c.bf16 %v4921, %v4920
  %v4963 = vpack.c.bf16 %v4923, %v4922
  %v4964 = vpack.c.bf16 %v4925, %v4924
  %v4965 = vpack.c.bf16 %v4927, %v4926
  %v4966 = vpack.c.bf16 %v4929, %v4928
  %v4967 = vpack.c.bf16 %v4931, %v4930
  %v4968 = vpack.c.bf16 %v4933, %v4932
  %v4969 = vpack.c.bf16 %v4935, %v4934
  %v4970 = vpack.c.bf16 %v4937, %v4936
  %v4971 = vpack.c.bf16 %v4939, %v4938
  %v4972 = vpack.c.bf16 %v4941, %v4940
  %v4973 = vpack.c.bf16 %v4943, %v4942
  %v4974 = vpack.c.bf16 %v4945, %v4944
  %v4975 = vpack.c.bf16 %v4947, %v4946
  %v4976 = vpack.c.bf16 %v4949, %v4948
  %v4977 = vpack.c.bf16 %v4951, %v4950
  %v4978 = vpack.c.bf16 %v4953, %v4952
  %v5004 = vunpack.c.l.b16 %v4954
  %v5005 = vunpack.c.h.b16 %v4954
  %v5006 = vunpack.c.l.b16 %v4955
  %v5007 = vunpack.c.h.b16 %v4955
  %v5008 = vunpack.c.l.b16 %v4956
  %v5009 = vunpack.c.h.b16 %v4956
  %v5010 = vunpack.c.l.b16 %v4957
  %v5011 = vunpack.c.h.b16 %v4957
  %v5012 = vunpack.c.l.b16 %v4958
  %v5013 = vunpack.c.h.b16 %v4958
  %v5014 = vunpack.c.l.b16 %v4959
  %v5015 = vunpack.c.h.b16 %v4959
  %v5016 = vunpack.c.l.b16 %v4960
  %v5017 = vunpack.c.h.b16 %v4960
  %v5018 = vunpack.c.l.b16 %v4961
  %v5019 = vunpack.c.h.b16 %v4961
  %v5020 = vunpack.c.l.b16 %v4962
  %v5021 = vunpack.c.h.b16 %v4962
  %v5022 = vunpack.c.l.b16 %v4963
  %v5023 = vunpack.c.h.b16 %v4963
  %v5024 = vunpack.c.l.b16 %v4964
  %v5025 = vunpack.c.h.b16 %v4964
  %v5026 = vunpack.c.l.b16 %v4965
  %v5027 = vunpack.c.h.b16 %v4965
  %v5028 = vunpack.c.l.b16 %v4966
  %v5029 = vunpack.c.h.b16 %v4966
  %v5030 = vunpack.c.l.b16 %v4967
  %v5031 = vunpack.c.h.b16 %v4967
  %v5032 = vunpack.c.l.b16 %v4968
  %v5033 = vunpack.c.h.b16 %v4968
  %v5034 = vunpack.c.l.b16 %v4969
  %v5035 = vunpack.c.h.b16 %v4969
  %v5036 = vunpack.c.l.b16 %v4970
  %v5037 = vunpack.c.h.b16 %v4970
  %v5038 = vunpack.c.l.b16 %v4971
  %v5039 = vunpack.c.h.b16 %v4971
  %v5040 = vunpack.c.l.b16 %v4972
  %v5041 = vunpack.c.h.b16 %v4972
  %v5042 = vunpack.c.l.b16 %v4973
  %v5043 = vunpack.c.h.b16 %v4973
  %v5044 = vunpack.c.l.b16 %v4974
  %v5045 = vunpack.c.h.b16 %v4974
  %v5046 = vunpack.c.l.b16 %v4975
  %v5047 = vunpack.c.h.b16 %v4975
  %v5048 = vunpack.c.l.b16 %v4976
  %v5049 = vunpack.c.h.b16 %v4976
  %v5050 = vunpack.c.l.b16 %v4977
  %v5051 = vunpack.c.h.b16 %v4977
  %v5052 = vunpack.c.l.b16 %v4978
  %v5053 = vunpack.c.h.b16 %v4978
  %v5054 = vpack.c.b16 %v5004, %v5004
  %v5055 = vpack.c.b16 %v5005, %v5005
  %v5056 = vpack.c.b16 %v5006, %v5006
  %v5057 = vpack.c.b16 %v5007, %v5007
  %v5058 = vpack.c.b16 %v5008, %v5008
  %v5059 = vpack.c.b16 %v5009, %v5009
  %v5060 = vpack.c.b16 %v5010, %v5010
  %v5061 = vpack.c.b16 %v5011, %v5011
  %v5062 = vpack.c.b16 %v5012, %v5012
  %v5063 = vpack.c.b16 %v5013, %v5013
  %v5064 = vpack.c.b16 %v5014, %v5014
  %v5065 = vpack.c.b16 %v5015, %v5015
  %v5066 = vpack.c.b16 %v5016, %v5016
  %v5067 = vpack.c.b16 %v5017, %v5017
  %v5068 = vpack.c.b16 %v5018, %v5018
  %v5069 = vpack.c.b16 %v5019, %v5019
  %v5070 = vpack.c.b16 %v5020, %v5020
  %v5071 = vpack.c.b16 %v5021, %v5021
  %v5072 = vpack.c.b16 %v5022, %v5022
  %v5073 = vpack.c.b16 %v5023, %v5023
  %v5074 = vpack.c.b16 %v5024, %v5024
  %v5075 = vpack.c.b16 %v5025, %v5025
  %v5076 = vpack.c.b16 %v5026, %v5026
  %v5077 = vpack.c.b16 %v5027, %v5027
  %v5078 = vpack.c.b16 %v5028, %v5028
  %v5079 = vpack.c.b16 %v5029, %v5029
  %v5080 = vpack.c.b16 %v5030, %v5030
  %v5081 = vpack.c.b16 %v5031, %v5031
  %v5082 = vpack.c.b16 %v5032, %v5032
  %v5083 = vpack.c.b16 %v5033, %v5033
  %v5084 = vpack.c.b16 %v5034, %v5034
  %v5085 = vpack.c.b16 %v5035, %v5035
  %v5086 = vpack.c.b16 %v5036, %v5036
  %v5087 = vpack.c.b16 %v5037, %v5037
  %v5088 = vpack.c.b16 %v5038, %v5038
  %v5089 = vpack.c.b16 %v5039, %v5039
  %v5090 = vpack.c.b16 %v5040, %v5040
  %v5091 = vpack.c.b16 %v5041, %v5041
  %v5092 = vpack.c.b16 %v5042, %v5042
  %v5093 = vpack.c.b16 %v5043, %v5043
  %v5094 = vpack.c.b16 %v5044, %v5044
  %v5095 = vpack.c.b16 %v5045, %v5045
  %v5096 = vpack.c.b16 %v5046, %v5046
  %v5097 = vpack.c.b16 %v5047, %v5047
  %v5098 = vpack.c.b16 %v5048, %v5048
  %v5099 = vpack.c.b16 %v5049, %v5049
  %v5100 = vpack.c.b16 %v5050, %v5050
  %v5101 = vpack.c.b16 %v5051, %v5051
  %v5102 = vpack.c.b16 %v5052, %v5052
  %v5103 = vpack.c.b16 %v5053, %v5053
  %s5154 = scalar_lea.vmem %s5, 600
  %5155 = vst.msk [vmem:[%s5154] sm:$0xf] %vm1371, %v5054
  %5156 = vst.msk [vmem:[%s5154 + $0x4] sm:$0xf] %vm1371, %v5055
  %5157 = vst.msk [vmem:[%s5154 + $0x8] sm:$0xf] %vm1371, %v5056
  %5158 = vst.msk [vmem:[%s5154 + $0xc] sm:$0xf] %vm1371, %v5057
  %5159 = vst.msk [vmem:[%s5154 + $0x10] sm:$0xf] %vm1371, %v5058
  %5160 = vst.msk [vmem:[%s5154 + $0x14] sm:$0xf] %vm1371, %v5059
  %5161 = vst.msk [vmem:[%s5154 + $0x18] sm:$0xf] %vm1371, %v5060
  %5162 = vst.msk [vmem:[%s5154 + $0x1c] sm:$0xf] %vm1371, %v5061
  %5163 = vst.msk [vmem:[%s5154 + $0x20] sm:$0xf] %vm1371, %v5062
  %5164 = vst.msk [vmem:[%s5154 + $0x24] sm:$0xf] %vm1371, %v5063
  %5165 = vst.msk [vmem:[%s5154 + $0x28] sm:$0xf] %vm1371, %v5064
  %5166 = vst.msk [vmem:[%s5154 + $0x2c] sm:$0xf] %vm1371, %v5065
  %5167 = vst.msk [vmem:[%s5154 + $0x30] sm:$0xf] %vm1371, %v5066
  %5168 = vst.msk [vmem:[%s5154 + $0x34] sm:$0xf] %vm1371, %v5067
  %5169 = vst.msk [vmem:[%s5154 + $0x38] sm:$0xf] %vm1371, %v5068
  %5170 = vst.msk [vmem:[%s5154 + $0x3c] sm:$0xf] %vm1371, %v5069
  %5171 = vst.msk [vmem:[%s5154 + $0x40] sm:$0xf] %vm1371, %v5070
  %5172 = vst.msk [vmem:[%s5154 + $0x44] sm:$0xf] %vm1371, %v5071
  %5173 = vst.msk [vmem:[%s5154 + $0x48] sm:$0xf] %vm1371, %v5072
  %5174 = vst.msk [vmem:[%s5154 + $0x4c] sm:$0xf] %vm1371, %v5073
  %5175 = vst.msk [vmem:[%s5154 + $0x50] sm:$0xf] %vm1371, %v5074
  %5176 = vst.msk [vmem:[%s5154 + $0x54] sm:$0xf] %vm1371, %v5075
  %5177 = vst.msk [vmem:[%s5154 + $0x58] sm:$0xf] %vm1371, %v5076
  %5178 = vst.msk [vmem:[%s5154 + $0x5c] sm:$0xf] %vm1371, %v5077
  %5179 = vst.msk [vmem:[%s5154 + $0x60] sm:$0xf] %vm1371, %v5078
  %5180 = vst.msk [vmem:[%s5154 + $0x64] sm:$0xf] %vm1371, %v5079
  %5181 = vst.msk [vmem:[%s5154 + $0x68] sm:$0xf] %vm1371, %v5080
  %5182 = vst.msk [vmem:[%s5154 + $0x6c] sm:$0xf] %vm1371, %v5081
  %5183 = vst.msk [vmem:[%s5154 + $0x70] sm:$0xf] %vm1371, %v5082
  %5184 = vst.msk [vmem:[%s5154 + $0x74] sm:$0xf] %vm1371, %v5083
  %5185 = vst.msk [vmem:[%s5154 + $0x78] sm:$0xf] %vm1371, %v5084
  %5186 = vst.msk [vmem:[%s5154 + $0x7c] sm:$0xf] %vm1371, %v5085
  %5187 = vst.msk [vmem:[%s5154 + $0x80] sm:$0xf] %vm1371, %v5086
  %5188 = vst.msk [vmem:[%s5154 + $0x84] sm:$0xf] %vm1371, %v5087
  %5189 = vst.msk [vmem:[%s5154 + $0x88] sm:$0xf] %vm1371, %v5088
  %5190 = vst.msk [vmem:[%s5154 + $0x8c] sm:$0xf] %vm1371, %v5089
  %5191 = vst.msk [vmem:[%s5154 + $0x90] sm:$0xf] %vm1371, %v5090
  %5192 = vst.msk [vmem:[%s5154 + $0x94] sm:$0xf] %vm1371, %v5091
  %5193 = vst.msk [vmem:[%s5154 + $0x98] sm:$0xf] %vm1371, %v5092
  %5194 = vst.msk [vmem:[%s5154 + $0x9c] sm:$0xf] %vm1371, %v5093
  %5195 = vst.msk [vmem:[%s5154 + $0xa0] sm:$0xf] %vm1371, %v5094
  %5196 = vst.msk [vmem:[%s5154 + $0xa4] sm:$0xf] %vm1371, %v5095
  %5197 = vst.msk [vmem:[%s5154 + $0xa8] sm:$0xf] %vm1371, %v5096
  %5198 = vst.msk [vmem:[%s5154 + $0xac] sm:$0xf] %vm1371, %v5097
  %5199 = vst.msk [vmem:[%s5154 + $0xb0] sm:$0xf] %vm1371, %v5098
  %5200 = vst.msk [vmem:[%s5154 + $0xb4] sm:$0xf] %vm1371, %v5099
  %5201 = vst.msk [vmem:[%s5154 + $0xb8] sm:$0xf] %vm1371, %v5100
  %5202 = vst.msk [vmem:[%s5154 + $0xbc] sm:$0xf] %vm1371, %v5101
  %5203 = vst.msk [vmem:[%s5154 + $0xc0] sm:$0xf] %vm1371, %v5102
  %5204 = vst.msk [vmem:[%s5154 + $0xc4] sm:$0xf] %vm1371, %v5103
  // Predicated region
  $region22: #{tpu_custom_call.1} parent=0 // pred_check
    _
  $region23: #{tpu_custom_call.1} parent=0 // pred_check_branch
    %5206 = sbr.rel (0) target = $region25
  $region24: #{tpu_custom_call.1} parent=0 // pred_region
    _
  $region25: #{tpu_custom_call.1} parent=0 // pred_fallthru
    _
  // Predicated region
  $region26: #{tpu_custom_call.1} parent=0 // pred_check
    _
  $region27: #{tpu_custom_call.1} parent=0 // pred_check_branch
    %5208 = sbr.rel (0) target = $region29
  $region28: #{tpu_custom_call.1} parent=0 // pred_region
    _
  $region29: #{tpu_custom_call.1} parent=0 // pred_fallthru
    _

</llo_original>
